<compile_context>
chip_gen: v7x
topology: tpu7x:2x2x1
jax: 0.10.0
libtpu: 0.0.40
codegen_flags: <defaults>
</compile_context>

<pallas_src>
import functools

import jax
import jax.numpy as jnp
from jax import lax
from jax.experimental import pallas as pl
from jax.experimental.pallas import tpu as pltpu


# ---------------------------------------------------------------------------
# Pallas kernel: one block of B_BLK sequences, rows ordered row = t*B_BLK + b
# ---------------------------------------------------------------------------
def dkvmn_kernel(x_ref, cr_ref,
                 wk_ref, bk_ref, wvh_ref, wvl_ref, bv_ref,
                 we_ref, be_ref, wa_ref, ba_ref,
                 wfr_ref, wfk_ref, bf_ref, wp_ref, bp_ref,
                 mkt_ref, mv0_ref,
                 p_ref,
                 w_s, e_s, a_s, k_s, reads_s,
                 *, b_blk, seq_len, unroll):
    x = x_ref[0]      # (N, 2D), N = seq_len * b_blk, time-major rows
    cr = cr_ref[0]    # (N, 1)   response bit per row

    # k / v projections (v computed from x + response bit -> no 4D-wide e_emb input)
    k = jnp.dot(x, wk_ref[...], preferred_element_type=jnp.float32) + bk_ref[...]
    v = (cr * jnp.dot(x, wvh_ref[...], preferred_element_type=jnp.float32)
         + (1.0 - cr) * jnp.dot(x, wvl_ref[...], preferred_element_type=jnp.float32)
         + bv_ref[...])

    # attention over memory keys: softmax(k @ Mk.T); Mk pre-transposed host-side
    logits = jnp.dot(k, mkt_ref[...], preferred_element_type=jnp.float32)     # (N, M)
    logits = logits - jnp.max(logits, axis=-1, keepdims=True)
    ex = jnp.exp(logits)
    w = ex / jnp.sum(ex, axis=-1, keepdims=True)

    e = jax.nn.sigmoid(
        jnp.dot(v, we_ref[...], preferred_element_type=jnp.float32) + be_ref[...])
    a = jnp.tanh(
        jnp.dot(v, wa_ref[...], preferred_element_type=jnp.float32) + ba_ref[...])

    # stash per-row tensors so the recurrence reads aligned (b_blk, ·) row groups
    k_s[...] = k
    w_s[...] = w
    e_s[...] = e
    a_s[...] = a

    M, D = mv0_ref.shape
    mv_init = jnp.broadcast_to(mv0_ref[...], (b_blk, M, D))      # (b_blk, M, D)

    def body(t, mv):
        row = pl.multiple_of(t * b_blk, b_blk)
        w_t = w_s[pl.ds(row, b_blk), :]            # (b_blk, M)
        e_t = e_s[pl.ds(row, b_blk), :]            # (b_blk, D)
        a_t = a_s[pl.ds(row, b_blk), :]            # (b_blk, D)
        # read_t uses the memory state BEFORE the t-th write (== Mv[:, :-1] in torch)
        reads_s[pl.ds(row, b_blk), :] = jnp.sum(w_t[:, :, None] * mv, axis=1)
        w3 = w_t[:, :, None]                        # (b_blk, M, 1)
        return mv * (1.0 - w3 * e_t[:, None, :]) + w3 * a_t[:, None, :]

    lax.fori_loop(0, seq_len, body, mv_init, unroll=unroll)

    # f = tanh([read, k] @ Wf + bf) with Wf pre-split -> no lane-axis concatenate
    f = jnp.tanh(
        jnp.dot(reads_s[...], wfr_ref[...], preferred_element_type=jnp.float32)
        + jnp.dot(k_s[...], wfk_ref[...], preferred_element_type=jnp.float32)
        + bf_ref[...])
    # TODO(synk): Dropout(0.2) on f is omitted (deterministic / eval-mode forward).
    p = jax.nn.sigmoid(jnp.sum(f * wp_ref[...], axis=-1, keepdims=True) + bp_ref[...])
    p_ref[0] = p


# ---------------------------------------------------------------------------
# Wrapper: batch-block the grid, repack to time-major rows, call pallas_call
# ---------------------------------------------------------------------------
def dkvmn_core(x, cr, params, *, b_blk=8):
    B, L, twoD = x.shape
    D = twoD // 2
    M = params["Mk"].shape[0]
    f32 = jnp.float32

    # pad batch to a multiple of b_blk (padded rows are discarded after the call)
    Bp = ((B + b_blk - 1) // b_blk) * b_blk
    xb = jnp.pad(x.astype(f32), ((0, Bp - B), (0, 0), (0, 0)))
    crb = jnp.pad(cr.astype(f32), ((0, Bp - B), (0, 0)))
    nb = Bp // b_blk
    N = L * b_blk

    # repack (Bp, L, F) -> (nb, L*b_blk, F), rows time-major within a block
    def pack(a):
        F = a.shape[-1]
        return (a.reshape(nb, b_blk, L, F)
                 .transpose(0, 2, 1, 3)
                 .reshape(nb, N, F))

    xp = pack(xb)                       # (nb, N, 2D)
    crp = pack(crb[..., None])          # (nb, N, 1)

    # split / pre-transpose weights host-side (free; avoids in-kernel concat/transpose)
    wv_hi, wv_lo = params["Wv"][:2 * D], params["Wv"][2 * D:]
    wf_r, wf_k = params["Wf"][:D], params["Wf"][D:]
    mkT = params["Mk"].T                # (D, M)

    def full_spec(shape):
        n = len(shape)
        return pl.BlockSpec(shape, lambda i, _n=n: (0,) * _n)

    in_specs = [
        pl.BlockSpec((1, N, 2 * D), lambda i: (i, 0, 0)),   # x
        pl.BlockSpec((1, N, 1), lambda i: (i, 0, 0)),       # cr
        full_spec((2 * D, D)), full_spec((1, D)),           # Wk, bk
        full_spec((2 * D, D)), full_spec((2 * D, D)),       # Wv_hi, Wv_lo
        full_spec((1, D)),                                  # bv
        full_spec((D, D)), full_spec((1, D)),               # We, be
        full_spec((D, D)), full_spec((1, D)),               # Wa, ba
        full_spec((D, D)), full_spec((D, D)),               # Wf_r, Wf_k
        full_spec((1, D)),                                  # bf
        full_spec((1, D)), full_spec((1, 1)),               # Wp(row), bp
        full_spec((D, M)), full_spec((M, D)),               # Mk.T, Mv0
    ]
    out_spec = pl.BlockSpec((1, N, 1), lambda i: (i, 0, 0))

    scratch = [
        pltpu.VMEM((N, M), f32),   # w
        pltpu.VMEM((N, D), f32),   # e
        pltpu.VMEM((N, D), f32),   # a
        pltpu.VMEM((N, D), f32),   # k
        pltpu.VMEM((N, D), f32),   # reads
    ]

    kernel = functools.partial(
        dkvmn_kernel, b_blk=b_blk, seq_len=L,
        unroll=(True if L <= 16 else 8))

    out = pl.pallas_call(
        kernel,
        out_shape=jax.ShapeDtypeStruct((nb, N, 1), f32),
        grid_spec=pltpu.PrefetchScalarGridSpec(
            num_scalar_prefetch=0,
            grid=(nb,),
            in_specs=in_specs,
            out_specs=out_spec,
            scratch_shapes=scratch,
        ),
        compiler_params=pltpu.CompilerParams(
            dimension_semantics=("parallel",),
            vmem_limit_bytes=48 * 1024 * 1024,
        ),
    )(
        xp, crp,
        params["Wk"], params["bk"][None, :],
        wv_hi, wv_lo, params["bv"][None, :],
        params["We"], params["be"][None, :],
        params["Wa"], params["ba"][None, :],
        wf_r, wf_k, params["bf"][None, :],
        params["Wp"].reshape(1, D), params["bp"].reshape(1, 1),
        mkT, params["Mv0"],
    )

    # unpack: (nb, N, 1) rows t*b_blk + b  ->  (B, L)
    p = out[..., 0].reshape(nb, L, b_blk).transpose(0, 2, 1).reshape(Bp, L)
    return p[:B]


# ---------------------------------------------------------------------------
# Plain-JAX glue: embeddings, response gating, masking, BCE loss
# ---------------------------------------------------------------------------
def multi_skills_embedding(c_table, c):
    # c: (B, L, K) with -1 padding; c_table row 0 is the padding (zero) row.
    emb_sum = c_table[c + 1].sum(-2)                         # (B, L, D)
    num = jnp.where(c < 0, 0, 1).sum(-1, keepdims=True)
    num = jnp.where(num == 0, 1, num)
    return emb_sum / num


def dkvmn_forward(params, data, num_q):
    q, c, r = data["qseqs"], data["cseqs"], data["rseqs"]
    qshft, cshft, rshft = data["shft_qseqs"], data["shft_cseqs"], data["shft_rseqs"]
    sm = data["smasks"]

    cq = jnp.concatenate([q[:, 0:1], qshft], axis=1)                 # (B, L)
    cc = jnp.concatenate([c[:, 0:1, :], cshft], axis=1)              # (B, L, K)
    cr = jnp.concatenate([r[:, 0:1], rshft], axis=1)                 # (B, L)

    q_emb = params["q_emb"][cq]                                      # (B, L, D)
    c_emb = multi_skills_embedding(params["c_emb"], cc)              # (B, L, D)
    x = jnp.concatenate([q_emb, c_emb], axis=-1)                     # (B, L, 2D)

    p = dkvmn_core(x, cr, params)                                    # (B, L)

    # masked select + BCE (done eagerly in plain JAX)
    y = p[:, 1:][sm]
    q_sel = qshft[sm]
    t_sel = rshft[sm]
    eps = 1e-7
    yc = jnp.clip(y, eps, 1.0 - eps)
    tf = t_sel.astype(jnp.float32)
    loss = -jnp.mean(tf * jnp.log(yc) + (1.0 - tf) * jnp.log(1.0 - yc))
    return loss, y, t_sel, q_sel + num_q * t_sel


# ---------------------------------------------------------------------------
# Deterministic parameter init (synthetic; mirrors the shapes in __init__)
# ---------------------------------------------------------------------------
def init_params(key, num_c, num_q, dim_s, size_m):
    ks = jax.random.split(key, 16)
    D, M = dim_s, size_m

    def lin(k, fan_in, fan_out):
        kw, kb = jax.random.split(k)
        lim = 1.0 / jnp.sqrt(fan_in)
        W = jax.random.uniform(kw, (fan_in, fan_out), jnp.float32, -lim, lim)
        b = jax.random.uniform(kb, (fan_out,), jnp.float32, -lim, lim)
        return W, b

    Wk, bk = lin(ks[0], 2 * D, D)
    Wv, bv = lin(ks[1], 4 * D, D)
    We, be = lin(ks[2], D, D)
    Wa, ba = lin(ks[3], D, D)
    Wf, bf = lin(ks[4], 2 * D, D)
    Wp, bp = lin(ks[5], D, 1)

    Mk = jax.random.normal(ks[6], (M, D), jnp.float32) * jnp.sqrt(2.0 / D)   # kaiming_normal_
    Mv0 = jax.random.normal(ks[7], (M, D), jnp.float32) * jnp.sqrt(2.0 / D)

    c_emb = jax.random.normal(ks[8], (num_c + 1, D), jnp.float32) * 0.1
    c_emb = c_emb.at[0].set(0.0)                                             # padding_idx=0
    q_emb = jax.random.normal(ks[9], (num_q, D), jnp.float32) * 0.1

    return dict(Wk=Wk, bk=bk, Wv=Wv, bv=bv, We=We, be=be, Wa=Wa, ba=ba,
                Wf=Wf, bf=bf, Wp=Wp, bp=bp, Mk=Mk, Mv0=Mv0,
                c_emb=c_emb, q_emb=q_emb)


if __name__ == "__main__":
    num_c, num_q, dim_s, size_m = 10, 20, 32, 16
    B, S, K = 2, 7, 3          # sequences of length S; cq/cc/cr become length S+1 = 8

    key = jax.random.PRNGKey(0)
    kp, k1, k2, k3, k4, k5, k6, k7, k8 = jax.random.split(key, 9)
    params = init_params(kp, num_c, num_q, dim_s, size_m)

    data = {
        "qseqs":      jax.random.randint(k1, (B, S), 0, num_q),
        "shft_qseqs": jax.random.randint(k2, (B, S), 0, num_q),
        "cseqs":      jax.random.randint(k3, (B, S, K), -1, num_c),
        "shft_cseqs": jax.random.randint(k4, (B, S, K), -1, num_c),
        "rseqs":      jax.random.randint(k5, (B, S), 0, 2),
        "shft_rseqs": jax.random.randint(k6, (B, S), 0, 2),
        "tseqs":      jnp.zeros((B, S), jnp.int32),
        "shft_tseqs": jnp.zeros((B, S), jnp.int32),
        "masks":      jnp.ones((B, S), bool),
        "smasks":     jax.random.bernoulli(k7, 0.8, (B, S)).at[:, 0].set(True),
    }

    loss, y, t, qid = dkvmn_forward(params, data, num_q)
    jax.block_until_ready(loss)
    jax.block_until_ready(y)
    assert y.shape[0] == int(data["smasks"].sum())
    assert bool(jnp.all((y > 0.0) & (y < 1.0)))
    assert bool(jnp.isfinite(loss))
    print("KERNEL_OK")
</pallas_src>

<mosaic_0001>
module attributes {stable_mosaic.version = 11 : i64} {
  func.func @dkvmn_kernel(%arg0: i32, %arg1: memref<1x64x64xf32, #tpu.memory_space<vmem>>, %arg2: memref<1x64x1xf32, #tpu.memory_space<vmem>>, %arg3: memref<64x32xf32, #tpu.memory_space<vmem>>, %arg4: memref<1x32xf32, #tpu.memory_space<vmem>>, %arg5: memref<64x32xf32, #tpu.memory_space<vmem>>, %arg6: memref<64x32xf32, #tpu.memory_space<vmem>>, %arg7: memref<1x32xf32, #tpu.memory_space<vmem>>, %arg8: memref<32x32xf32, #tpu.memory_space<vmem>>, %arg9: memref<1x32xf32, #tpu.memory_space<vmem>>, %arg10: memref<32x32xf32, #tpu.memory_space<vmem>>, %arg11: memref<1x32xf32, #tpu.memory_space<vmem>>, %arg12: memref<32x32xf32, #tpu.memory_space<vmem>>, %arg13: memref<32x32xf32, #tpu.memory_space<vmem>>, %arg14: memref<1x32xf32, #tpu.memory_space<vmem>>, %arg15: memref<1x32xf32, #tpu.memory_space<vmem>>, %arg16: memref<1x1xf32, #tpu.memory_space<vmem>>, %arg17: memref<32x16xf32, #tpu.memory_space<vmem>>, %arg18: memref<16x32xf32, #tpu.memory_space<vmem>>, %arg19: memref<1x64x1xf32, #tpu.memory_space<vmem>>, %arg20: memref<64x16xf32, #tpu.memory_space<vmem>>, %arg21: memref<64x32xf32, #tpu.memory_space<vmem>>, %arg22: memref<64x32xf32, #tpu.memory_space<vmem>>, %arg23: memref<64x32xf32, #tpu.memory_space<vmem>>, %arg24: memref<64x32xf32, #tpu.memory_space<vmem>>) attributes {dimension_semantics = [#tpu.dimension_semantics<parallel>], iteration_bounds = array<i64: 1>, scalar_prefetch = 0 : i64, scratch_operands = 5 : i64, tpu.core_type = #tpu.core_type<tc>, window_params = [{transform_indices = @transform_0, window_bounds = array<i64: 1, 64, 64>}, {transform_indices = @transform_1, window_bounds = array<i64: 1, 64, 1>}, {pipeline_mode = #tpu.pipeline_mode<synchronous>, transform_indices = @transform_2, window_bounds = array<i64: 64, 32>}, {pipeline_mode = #tpu.pipeline_mode<synchronous>, transform_indices = @transform_3, window_bounds = array<i64: 1, 32>}, {pipeline_mode = #tpu.pipeline_mode<synchronous>, transform_indices = @transform_4, window_bounds = array<i64: 64, 32>}, {pipeline_mode = #tpu.pipeline_mode<synchronous>, transform_indices = @transform_5, window_bounds = array<i64: 64, 32>}, {pipeline_mode = #tpu.pipeline_mode<synchronous>, transform_indices = @transform_6, window_bounds = array<i64: 1, 32>}, {pipeline_mode = #tpu.pipeline_mode<synchronous>, transform_indices = @transform_7, window_bounds = array<i64: 32, 32>}, {pipeline_mode = #tpu.pipeline_mode<synchronous>, transform_indices = @transform_8, window_bounds = array<i64: 1, 32>}, {pipeline_mode = #tpu.pipeline_mode<synchronous>, transform_indices = @transform_9, window_bounds = array<i64: 32, 32>}, {pipeline_mode = #tpu.pipeline_mode<synchronous>, transform_indices = @transform_10, window_bounds = array<i64: 1, 32>}, {pipeline_mode = #tpu.pipeline_mode<synchronous>, transform_indices = @transform_11, window_bounds = array<i64: 32, 32>}, {pipeline_mode = #tpu.pipeline_mode<synchronous>, transform_indices = @transform_12, window_bounds = array<i64: 32, 32>}, {pipeline_mode = #tpu.pipeline_mode<synchronous>, transform_indices = @transform_13, window_bounds = array<i64: 1, 32>}, {pipeline_mode = #tpu.pipeline_mode<synchronous>, transform_indices = @transform_14, window_bounds = array<i64: 1, 32>}, {pipeline_mode = #tpu.pipeline_mode<synchronous>, transform_indices = @transform_15, window_bounds = array<i64: 1, 1>}, {pipeline_mode = #tpu.pipeline_mode<synchronous>, transform_indices = @transform_16, window_bounds = array<i64: 32, 16>}, {pipeline_mode = #tpu.pipeline_mode<synchronous>, transform_indices = @transform_17, window_bounds = array<i64: 16, 32>}, {transform_indices = @transform_18, window_bounds = array<i64: 1, 64, 1>}]} {
    %c0 = arith.constant 0 : index
    %c0_0 = arith.constant 0 : index
    %c0_1 = arith.constant 0 : index
    %0 = vector.load %arg1[%c0, %c0_0, %c0_1] : memref<1x64x64xf32, #tpu.memory_space<vmem>>, vector<1x64x64xf32>
    %1 = vector.shape_cast %0 : vector<1x64x64xf32> to vector<64x64xf32>
    %c0_2 = arith.constant 0 : index
    %c0_3 = arith.constant 0 : index
    %c0_4 = arith.constant 0 : index
    %2 = vector.load %arg2[%c0_2, %c0_3, %c0_4] : memref<1x64x1xf32, #tpu.memory_space<vmem>>, vector<1x64x1xf32>
    %3 = vector.shape_cast %2 : vector<1x64x1xf32> to vector<64x1xf32>
    %c0_5 = arith.constant 0 : index
    %c0_6 = arith.constant 0 : index
    %4 = vector.load %arg3[%c0_5, %c0_6] : memref<64x32xf32, #tpu.memory_space<vmem>>, vector<64x32xf32>
    %cst = arith.constant dense<0.000000e+00> : vector<64x32xf32>
    %5 = tpu.matmul %1, %4, %cst {dimension_numbers = #tpu.dot_dimension_numbers<[1], [0], [0], [1], [0, 0, 1, 1], [], []>} : vector<64x64xf32>, vector<64x32xf32>, vector<64x32xf32> -> vector<64x32xf32>
    %c0_7 = arith.constant 0 : index
    %c0_8 = arith.constant 0 : index
    %6 = vector.load %arg4[%c0_7, %c0_8] : memref<1x32xf32, #tpu.memory_space<vmem>>, vector<1x32xf32>
    %7 = vector.broadcast %6 : vector<1x32xf32> to vector<64x32xf32>
    %8 = arith.addf %5, %7 : vector<64x32xf32>
    %c0_9 = arith.constant 0 : index
    %c0_10 = arith.constant 0 : index
    %9 = vector.load %arg5[%c0_9, %c0_10] : memref<64x32xf32, #tpu.memory_space<vmem>>, vector<64x32xf32>
    %cst_11 = arith.constant dense<0.000000e+00> : vector<64x32xf32>
    %10 = tpu.matmul %1, %9, %cst_11 {dimension_numbers = #tpu.dot_dimension_numbers<[1], [0], [0], [1], [0, 0, 1, 1], [], []>} : vector<64x64xf32>, vector<64x32xf32>, vector<64x32xf32> -> vector<64x32xf32>
    %11 = vector.broadcast %3 : vector<64x1xf32> to vector<64x32xf32>
    %12 = arith.mulf %11, %10 : vector<64x32xf32>
    %cst_12 = arith.constant 1.000000e+00 : f32
    %13 = vector.broadcast %cst_12 : f32 to vector<64x1xf32>
    %14 = arith.subf %13, %3 : vector<64x1xf32>
    %c0_13 = arith.constant 0 : index
    %c0_14 = arith.constant 0 : index
    %15 = vector.load %arg6[%c0_13, %c0_14] : memref<64x32xf32, #tpu.memory_space<vmem>>, vector<64x32xf32>
    %cst_15 = arith.constant dense<0.000000e+00> : vector<64x32xf32>
    %16 = tpu.matmul %1, %15, %cst_15 {dimension_numbers = #tpu.dot_dimension_numbers<[1], [0], [0], [1], [0, 0, 1, 1], [], []>} : vector<64x64xf32>, vector<64x32xf32>, vector<64x32xf32> -> vector<64x32xf32>
    %17 = vector.broadcast %14 : vector<64x1xf32> to vector<64x32xf32>
    %18 = arith.mulf %17, %16 : vector<64x32xf32>
    %19 = arith.addf %12, %18 : vector<64x32xf32>
    %c0_16 = arith.constant 0 : index
    %c0_17 = arith.constant 0 : index
    %20 = vector.load %arg7[%c0_16, %c0_17] : memref<1x32xf32, #tpu.memory_space<vmem>>, vector<1x32xf32>
    %21 = vector.broadcast %20 : vector<1x32xf32> to vector<64x32xf32>
    %22 = arith.addf %19, %21 : vector<64x32xf32>
    %c0_18 = arith.constant 0 : index
    %c0_19 = arith.constant 0 : index
    %23 = vector.load %arg17[%c0_18, %c0_19] : memref<32x16xf32, #tpu.memory_space<vmem>>, vector<32x16xf32>
    %cst_20 = arith.constant dense<0.000000e+00> : vector<64x16xf32>
    %24 = tpu.matmul %8, %23, %cst_20 {dimension_numbers = #tpu.dot_dimension_numbers<[1], [0], [0], [1], [0, 0, 1, 1], [], []>} : vector<64x32xf32>, vector<32x16xf32>, vector<64x16xf32> -> vector<64x16xf32>
    %cst_21 = arith.constant dense<0xFF800000> : vector<64xf32>
    %25 = vector.multi_reduction <maximumf>, %24, %cst_21 [1] : vector<64x16xf32> to vector<64xf32>
    %26 = vector.shape_cast %25 : vector<64xf32> to vector<64x1xf32>
    %27 = vector.broadcast %26 : vector<64x1xf32> to vector<64x16xf32>
    %28 = arith.subf %24, %27 : vector<64x16xf32>
    %29 = math.exp %28 : vector<64x16xf32>
    %cst_22 = arith.constant dense<0.000000e+00> : vector<64xf32>
    %30 = vector.multi_reduction <add>, %29, %cst_22 [1] : vector<64x16xf32> to vector<64xf32>
    %31 = vector.shape_cast %30 : vector<64xf32> to vector<64x1xf32>
    %32 = vector.broadcast %31 : vector<64x1xf32> to vector<64x16xf32>
    %33 = arith.divf %29, %32 : vector<64x16xf32>
    %c0_23 = arith.constant 0 : index
    %c0_24 = arith.constant 0 : index
    %34 = vector.load %arg8[%c0_23, %c0_24] : memref<32x32xf32, #tpu.memory_space<vmem>>, vector<32x32xf32>
    %cst_25 = arith.constant dense<0.000000e+00> : vector<64x32xf32>
    %35 = tpu.matmul %22, %34, %cst_25 {dimension_numbers = #tpu.dot_dimension_numbers<[1], [0], [0], [1], [0, 0, 1, 1], [], []>} : vector<64x32xf32>, vector<32x32xf32>, vector<64x32xf32> -> vector<64x32xf32>
    %c0_26 = arith.constant 0 : index
    %c0_27 = arith.constant 0 : index
    %36 = vector.load %arg9[%c0_26, %c0_27] : memref<1x32xf32, #tpu.memory_space<vmem>>, vector<1x32xf32>
    %37 = vector.broadcast %36 : vector<1x32xf32> to vector<64x32xf32>
    %38 = arith.addf %35, %37 : vector<64x32xf32>
    %39 = arith.negf %38 : vector<64x32xf32>
    %40 = math.exp %39 : vector<64x32xf32>
    %cst_28 = arith.constant 1.000000e+00 : f32
    %41 = vector.broadcast %cst_28 : f32 to vector<64x32xf32>
    %42 = arith.addf %41, %40 : vector<64x32xf32>
    %43 = arith.divf %41, %42 : vector<64x32xf32>
    %c0_29 = arith.constant 0 : index
    %c0_30 = arith.constant 0 : index
    %44 = vector.load %arg10[%c0_29, %c0_30] : memref<32x32xf32, #tpu.memory_space<vmem>>, vector<32x32xf32>
    %cst_31 = arith.constant dense<0.000000e+00> : vector<64x32xf32>
    %45 = tpu.matmul %22, %44, %cst_31 {dimension_numbers = #tpu.dot_dimension_numbers<[1], [0], [0], [1], [0, 0, 1, 1], [], []>} : vector<64x32xf32>, vector<32x32xf32>, vector<64x32xf32> -> vector<64x32xf32>
    %c0_32 = arith.constant 0 : index
    %c0_33 = arith.constant 0 : index
    %46 = vector.load %arg11[%c0_32, %c0_33] : memref<1x32xf32, #tpu.memory_space<vmem>>, vector<1x32xf32>
    %47 = vector.broadcast %46 : vector<1x32xf32> to vector<64x32xf32>
    %48 = arith.addf %45, %47 : vector<64x32xf32>
    %49 = math.tanh %48 : vector<64x32xf32>
    %c0_34 = arith.constant 0 : index
    %c0_35 = arith.constant 0 : index
    %50 = vector.load %arg23[%c0_34, %c0_35] : memref<64x32xf32, #tpu.memory_space<vmem>>, vector<64x32xf32>
    tpu.vector_store %arg23[%c0_34, %c0_35], %8 {strides = array<i32>} : memref<64x32xf32, #tpu.memory_space<vmem>>, vector<64x32xf32>,
    %c0_36 = arith.constant 0 : index
    %c0_37 = arith.constant 0 : index
    %51 = vector.load %arg20[%c0_36, %c0_37] : memref<64x16xf32, #tpu.memory_space<vmem>>, vector<64x16xf32>
    tpu.vector_store %arg20[%c0_36, %c0_37], %33 {strides = array<i32>} : memref<64x16xf32, #tpu.memory_space<vmem>>, vector<64x16xf32>,
    %c0_38 = arith.constant 0 : index
    %c0_39 = arith.constant 0 : index
    %52 = vector.load %arg21[%c0_38, %c0_39] : memref<64x32xf32, #tpu.memory_space<vmem>>, vector<64x32xf32>
    tpu.vector_store %arg21[%c0_38, %c0_39], %43 {strides = array<i32>} : memref<64x32xf32, #tpu.memory_space<vmem>>, vector<64x32xf32>,
    %c0_40 = arith.constant 0 : index
    %c0_41 = arith.constant 0 : index
    %53 = vector.load %arg22[%c0_40, %c0_41] : memref<64x32xf32, #tpu.memory_space<vmem>>, vector<64x32xf32>
    tpu.vector_store %arg22[%c0_40, %c0_41], %49 {strides = array<i32>} : memref<64x32xf32, #tpu.memory_space<vmem>>, vector<64x32xf32>,
    %c0_42 = arith.constant 0 : index
    %c0_43 = arith.constant 0 : index
    %54 = vector.load %arg18[%c0_42, %c0_43] : memref<16x32xf32, #tpu.memory_space<vmem>>, vector<16x32xf32>
    %55 = vector.shape_cast %54 : vector<16x32xf32> to vector<1x16x32xf32>
    %56 = vector.broadcast %55 : vector<1x16x32xf32> to vector<8x16x32xf32>
    %c0_i32 = arith.constant 0 : i32
    %c8_i32 = arith.constant 8 : i32
    %57 = arith.muli %c0_i32, %c8_i32 : i32
    %58 = tpu.assume_multiple %57, 8 : i32
    %59 = arith.index_cast %58 : i32 to index
    %c0_44 = arith.constant 0 : index
    %60 = vector.load %arg20[%59, %c0_44] : memref<64x16xf32, #tpu.memory_space<vmem>>, vector<8x16xf32>
    %61 = arith.index_cast %58 : i32 to index
    %c0_45 = arith.constant 0 : index
    %62 = vector.load %arg21[%61, %c0_45] : memref<64x32xf32, #tpu.memory_space<vmem>>, vector<8x32xf32>
    %63 = arith.index_cast %58 : i32 to index
    %c0_46 = arith.constant 0 : index
    %64 = vector.load %arg22[%63, %c0_46] : memref<64x32xf32, #tpu.memory_space<vmem>>, vector<8x32xf32>
    %65 = vector.shape_cast %60 : vector<8x16xf32> to vector<8x16x1xf32>
    %66 = vector.broadcast %65 : vector<8x16x1xf32> to vector<8x16x32xf32>
    %67 = arith.mulf %66, %56 : vector<8x16x32xf32>
    %cst_47 = arith.constant dense<0.000000e+00> : vector<8x32xf32>
    %68 = vector.multi_reduction <add>, %67, %cst_47 [1] : vector<8x16x32xf32> to vector<8x32xf32>
    %69 = arith.index_cast %58 : i32 to index
    %c0_48 = arith.constant 0 : index
    %70 = vector.load %arg24[%69, %c0_48] : memref<64x32xf32, #tpu.memory_space<vmem>>, vector<8x32xf32>
    tpu.vector_store %arg24[%69, %c0_48], %68 {strides = array<i32>} : memref<64x32xf32, #tpu.memory_space<vmem>>, vector<8x32xf32>,
    %71 = vector.shape_cast %60 : vector<8x16xf32> to vector<8x16x1xf32>
    %72 = vector.shape_cast %62 : vector<8x32xf32> to vector<8x1x32xf32>
    %73 = vector.broadcast %71 : vector<8x16x1xf32> to vector<8x16x32xf32>
    %74 = vector.broadcast %72 : vector<8x1x32xf32> to vector<8x16x32xf32>
    %75 = arith.mulf %73, %74 : vector<8x16x32xf32>
    %cst_49 = arith.constant 1.000000e+00 : f32
    %76 = vector.broadcast %cst_49 : f32 to vector<8x16x32xf32>
    %77 = arith.subf %76, %75 : vector<8x16x32xf32>
    %78 = arith.mulf %56, %77 : vector<8x16x32xf32>
    %79 = vector.shape_cast %64 : vector<8x32xf32> to vector<8x1x32xf32>
    %80 = vector.broadcast %71 : vector<8x16x1xf32> to vector<8x16x32xf32>
    %81 = vector.broadcast %79 : vector<8x1x32xf32> to vector<8x16x32xf32>
    %82 = arith.mulf %80, %81 : vector<8x16x32xf32>
    %83 = arith.addf %78, %82 : vector<8x16x32xf32>
    %c1_i32 = arith.constant 1 : i32
    %c8_i32_50 = arith.constant 8 : i32
    %84 = arith.muli %c1_i32, %c8_i32_50 : i32
    %85 = tpu.assume_multiple %84, 8 : i32
    %86 = arith.index_cast %85 : i32 to index
    %c0_51 = arith.constant 0 : index
    %87 = vector.load %arg20[%86, %c0_51] : memref<64x16xf32, #tpu.memory_space<vmem>>, vector<8x16xf32>
    %88 = arith.index_cast %85 : i32 to index
    %c0_52 = arith.constant 0 : index
    %89 = vector.load %arg21[%88, %c0_52] : memref<64x32xf32, #tpu.memory_space<vmem>>, vector<8x32xf32>
    %90 = arith.index_cast %85 : i32 to index
    %c0_53 = arith.constant 0 : index
    %91 = vector.load %arg22[%90, %c0_53] : memref<64x32xf32, #tpu.memory_space<vmem>>, vector<8x32xf32>
    %92 = vector.shape_cast %87 : vector<8x16xf32> to vector<8x16x1xf32>
    %93 = vector.broadcast %92 : vector<8x16x1xf32> to vector<8x16x32xf32>
    %94 = arith.mulf %93, %83 : vector<8x16x32xf32>
    %cst_54 = arith.constant dense<0.000000e+00> : vector<8x32xf32>
    %95 = vector.multi_reduction <add>, %94, %cst_54 [1] : vector<8x16x32xf32> to vector<8x32xf32>
    %96 = arith.index_cast %85 : i32 to index
    %c0_55 = arith.constant 0 : index
    %97 = vector.load %arg24[%96, %c0_55] : memref<64x32xf32, #tpu.memory_space<vmem>>, vector<8x32xf32>
    tpu.vector_store %arg24[%96, %c0_55], %95 {strides = array<i32>} : memref<64x32xf32, #tpu.memory_space<vmem>>, vector<8x32xf32>,
    %98 = vector.shape_cast %87 : vector<8x16xf32> to vector<8x16x1xf32>
    %99 = vector.shape_cast %89 : vector<8x32xf32> to vector<8x1x32xf32>
    %100 = vector.broadcast %98 : vector<8x16x1xf32> to vector<8x16x32xf32>
    %101 = vector.broadcast %99 : vector<8x1x32xf32> to vector<8x16x32xf32>
    %102 = arith.mulf %100, %101 : vector<8x16x32xf32>
    %cst_56 = arith.constant 1.000000e+00 : f32
    %103 = vector.broadcast %cst_56 : f32 to vector<8x16x32xf32>
    %104 = arith.subf %103, %102 : vector<8x16x32xf32>
    %105 = arith.mulf %83, %104 : vector<8x16x32xf32>
    %106 = vector.shape_cast %91 : vector<8x32xf32> to vector<8x1x32xf32>
    %107 = vector.broadcast %98 : vector<8x16x1xf32> to vector<8x16x32xf32>
    %108 = vector.broadcast %106 : vector<8x1x32xf32> to vector<8x16x32xf32>
    %109 = arith.mulf %107, %108 : vector<8x16x32xf32>
    %110 = arith.addf %105, %109 : vector<8x16x32xf32>
    %c2_i32 = arith.constant 2 : i32
    %c8_i32_57 = arith.constant 8 : i32
    %111 = arith.muli %c2_i32, %c8_i32_57 : i32
    %112 = tpu.assume_multiple %111, 8 : i32
    %113 = arith.index_cast %112 : i32 to index
    %c0_58 = arith.constant 0 : index
    %114 = vector.load %arg20[%113, %c0_58] : memref<64x16xf32, #tpu.memory_space<vmem>>, vector<8x16xf32>
    %115 = arith.index_cast %112 : i32 to index
    %c0_59 = arith.constant 0 : index
    %116 = vector.load %arg21[%115, %c0_59] : memref<64x32xf32, #tpu.memory_space<vmem>>, vector<8x32xf32>
    %117 = arith.index_cast %112 : i32 to index
    %c0_60 = arith.constant 0 : index
    %118 = vector.load %arg22[%117, %c0_60] : memref<64x32xf32, #tpu.memory_space<vmem>>, vector<8x32xf32>
    %119 = vector.shape_cast %114 : vector<8x16xf32> to vector<8x16x1xf32>
    %120 = vector.broadcast %119 : vector<8x16x1xf32> to vector<8x16x32xf32>
    %121 = arith.mulf %120, %110 : vector<8x16x32xf32>
    %cst_61 = arith.constant dense<0.000000e+00> : vector<8x32xf32>
    %122 = vector.multi_reduction <add>, %121, %cst_61 [1] : vector<8x16x32xf32> to vector<8x32xf32>
    %123 = arith.index_cast %112 : i32 to index
    %c0_62 = arith.constant 0 : index
    %124 = vector.load %arg24[%123, %c0_62] : memref<64x32xf32, #tpu.memory_space<vmem>>, vector<8x32xf32>
    tpu.vector_store %arg24[%123, %c0_62], %122 {strides = array<i32>} : memref<64x32xf32, #tpu.memory_space<vmem>>, vector<8x32xf32>,
    %125 = vector.shape_cast %114 : vector<8x16xf32> to vector<8x16x1xf32>
    %126 = vector.shape_cast %116 : vector<8x32xf32> to vector<8x1x32xf32>
    %127 = vector.broadcast %125 : vector<8x16x1xf32> to vector<8x16x32xf32>
    %128 = vector.broadcast %126 : vector<8x1x32xf32> to vector<8x16x32xf32>
    %129 = arith.mulf %127, %128 : vector<8x16x32xf32>
    %cst_63 = arith.constant 1.000000e+00 : f32
    %130 = vector.broadcast %cst_63 : f32 to vector<8x16x32xf32>
    %131 = arith.subf %130, %129 : vector<8x16x32xf32>
    %132 = arith.mulf %110, %131 : vector<8x16x32xf32>
    %133 = vector.shape_cast %118 : vector<8x32xf32> to vector<8x1x32xf32>
    %134 = vector.broadcast %125 : vector<8x16x1xf32> to vector<8x16x32xf32>
    %135 = vector.broadcast %133 : vector<8x1x32xf32> to vector<8x16x32xf32>
    %136 = arith.mulf %134, %135 : vector<8x16x32xf32>
    %137 = arith.addf %132, %136 : vector<8x16x32xf32>
    %c3_i32 = arith.constant 3 : i32
    %c8_i32_64 = arith.constant 8 : i32
    %138 = arith.muli %c3_i32, %c8_i32_64 : i32
    %139 = tpu.assume_multiple %138, 8 : i32
    %140 = arith.index_cast %139 : i32 to index
    %c0_65 = arith.constant 0 : index
    %141 = vector.load %arg20[%140, %c0_65] : memref<64x16xf32, #tpu.memory_space<vmem>>, vector<8x16xf32>
    %142 = arith.index_cast %139 : i32 to index
    %c0_66 = arith.constant 0 : index
    %143 = vector.load %arg21[%142, %c0_66] : memref<64x32xf32, #tpu.memory_space<vmem>>, vector<8x32xf32>
    %144 = arith.index_cast %139 : i32 to index
    %c0_67 = arith.constant 0 : index
    %145 = vector.load %arg22[%144, %c0_67] : memref<64x32xf32, #tpu.memory_space<vmem>>, vector<8x32xf32>
    %146 = vector.shape_cast %141 : vector<8x16xf32> to vector<8x16x1xf32>
    %147 = vector.broadcast %146 : vector<8x16x1xf32> to vector<8x16x32xf32>
    %148 = arith.mulf %147, %137 : vector<8x16x32xf32>
    %cst_68 = arith.constant dense<0.000000e+00> : vector<8x32xf32>
    %149 = vector.multi_reduction <add>, %148, %cst_68 [1] : vector<8x16x32xf32> to vector<8x32xf32>
    %150 = arith.index_cast %139 : i32 to index
    %c0_69 = arith.constant 0 : index
    %151 = vector.load %arg24[%150, %c0_69] : memref<64x32xf32, #tpu.memory_space<vmem>>, vector<8x32xf32>
    tpu.vector_store %arg24[%150, %c0_69], %149 {strides = array<i32>} : memref<64x32xf32, #tpu.memory_space<vmem>>, vector<8x32xf32>,
    %152 = vector.shape_cast %141 : vector<8x16xf32> to vector<8x16x1xf32>
    %153 = vector.shape_cast %143 : vector<8x32xf32> to vector<8x1x32xf32>
    %154 = vector.broadcast %152 : vector<8x16x1xf32> to vector<8x16x32xf32>
    %155 = vector.broadcast %153 : vector<8x1x32xf32> to vector<8x16x32xf32>
    %156 = arith.mulf %154, %155 : vector<8x16x32xf32>
    %cst_70 = arith.constant 1.000000e+00 : f32
    %157 = vector.broadcast %cst_70 : f32 to vector<8x16x32xf32>
    %158 = arith.subf %157, %156 : vector<8x16x32xf32>
    %159 = arith.mulf %137, %158 : vector<8x16x32xf32>
    %160 = vector.shape_cast %145 : vector<8x32xf32> to vector<8x1x32xf32>
    %161 = vector.broadcast %152 : vector<8x16x1xf32> to vector<8x16x32xf32>
    %162 = vector.broadcast %160 : vector<8x1x32xf32> to vector<8x16x32xf32>
    %163 = arith.mulf %161, %162 : vector<8x16x32xf32>
    %164 = arith.addf %159, %163 : vector<8x16x32xf32>
    %c4_i32 = arith.constant 4 : i32
    %c8_i32_71 = arith.constant 8 : i32
    %165 = arith.muli %c4_i32, %c8_i32_71 : i32
    %166 = tpu.assume_multiple %165, 8 : i32
    %167 = arith.index_cast %166 : i32 to index
    %c0_72 = arith.constant 0 : index
    %168 = vector.load %arg20[%167, %c0_72] : memref<64x16xf32, #tpu.memory_space<vmem>>, vector<8x16xf32>
    %169 = arith.index_cast %166 : i32 to index
    %c0_73 = arith.constant 0 : index
    %170 = vector.load %arg21[%169, %c0_73] : memref<64x32xf32, #tpu.memory_space<vmem>>, vector<8x32xf32>
    %171 = arith.index_cast %166 : i32 to index
    %c0_74 = arith.constant 0 : index
    %172 = vector.load %arg22[%171, %c0_74] : memref<64x32xf32, #tpu.memory_space<vmem>>, vector<8x32xf32>
    %173 = vector.shape_cast %168 : vector<8x16xf32> to vector<8x16x1xf32>
    %174 = vector.broadcast %173 : vector<8x16x1xf32> to vector<8x16x32xf32>
    %175 = arith.mulf %174, %164 : vector<8x16x32xf32>
    %cst_75 = arith.constant dense<0.000000e+00> : vector<8x32xf32>
    %176 = vector.multi_reduction <add>, %175, %cst_75 [1] : vector<8x16x32xf32> to vector<8x32xf32>
    %177 = arith.index_cast %166 : i32 to index
    %c0_76 = arith.constant 0 : index
    %178 = vector.load %arg24[%177, %c0_76] : memref<64x32xf32, #tpu.memory_space<vmem>>, vector<8x32xf32>
    tpu.vector_store %arg24[%177, %c0_76], %176 {strides = array<i32>} : memref<64x32xf32, #tpu.memory_space<vmem>>, vector<8x32xf32>,
    %179 = vector.shape_cast %168 : vector<8x16xf32> to vector<8x16x1xf32>
    %180 = vector.shape_cast %170 : vector<8x32xf32> to vector<8x1x32xf32>
    %181 = vector.broadcast %179 : vector<8x16x1xf32> to vector<8x16x32xf32>
    %182 = vector.broadcast %180 : vector<8x1x32xf32> to vector<8x16x32xf32>
    %183 = arith.mulf %181, %182 : vector<8x16x32xf32>
    %cst_77 = arith.constant 1.000000e+00 : f32
    %184 = vector.broadcast %cst_77 : f32 to vector<8x16x32xf32>
    %185 = arith.subf %184, %183 : vector<8x16x32xf32>
    %186 = arith.mulf %164, %185 : vector<8x16x32xf32>
    %187 = vector.shape_cast %172 : vector<8x32xf32> to vector<8x1x32xf32>
    %188 = vector.broadcast %179 : vector<8x16x1xf32> to vector<8x16x32xf32>
    %189 = vector.broadcast %187 : vector<8x1x32xf32> to vector<8x16x32xf32>
    %190 = arith.mulf %188, %189 : vector<8x16x32xf32>
    %191 = arith.addf %186, %190 : vector<8x16x32xf32>
    %c5_i32 = arith.constant 5 : i32
    %c8_i32_78 = arith.constant 8 : i32
    %192 = arith.muli %c5_i32, %c8_i32_78 : i32
    %193 = tpu.assume_multiple %192, 8 : i32
    %194 = arith.index_cast %193 : i32 to index
    %c0_79 = arith.constant 0 : index
    %195 = vector.load %arg20[%194, %c0_79] : memref<64x16xf32, #tpu.memory_space<vmem>>, vector<8x16xf32>
    %196 = arith.index_cast %193 : i32 to index
    %c0_80 = arith.constant 0 : index
    %197 = vector.load %arg21[%196, %c0_80] : memref<64x32xf32, #tpu.memory_space<vmem>>, vector<8x32xf32>
    %198 = arith.index_cast %193 : i32 to index
    %c0_81 = arith.constant 0 : index
    %199 = vector.load %arg22[%198, %c0_81] : memref<64x32xf32, #tpu.memory_space<vmem>>, vector<8x32xf32>
    %200 = vector.shape_cast %195 : vector<8x16xf32> to vector<8x16x1xf32>
    %201 = vector.broadcast %200 : vector<8x16x1xf32> to vector<8x16x32xf32>
    %202 = arith.mulf %201, %191 : vector<8x16x32xf32>
    %cst_82 = arith.constant dense<0.000000e+00> : vector<8x32xf32>
    %203 = vector.multi_reduction <add>, %202, %cst_82 [1] : vector<8x16x32xf32> to vector<8x32xf32>
    %204 = arith.index_cast %193 : i32 to index
    %c0_83 = arith.constant 0 : index
    %205 = vector.load %arg24[%204, %c0_83] : memref<64x32xf32, #tpu.memory_space<vmem>>, vector<8x32xf32>
    tpu.vector_store %arg24[%204, %c0_83], %203 {strides = array<i32>} : memref<64x32xf32, #tpu.memory_space<vmem>>, vector<8x32xf32>,
    %206 = vector.shape_cast %195 : vector<8x16xf32> to vector<8x16x1xf32>
    %207 = vector.shape_cast %197 : vector<8x32xf32> to vector<8x1x32xf32>
    %208 = vector.broadcast %206 : vector<8x16x1xf32> to vector<8x16x32xf32>
    %209 = vector.broadcast %207 : vector<8x1x32xf32> to vector<8x16x32xf32>
    %210 = arith.mulf %208, %209 : vector<8x16x32xf32>
    %cst_84 = arith.constant 1.000000e+00 : f32
    %211 = vector.broadcast %cst_84 : f32 to vector<8x16x32xf32>
    %212 = arith.subf %211, %210 : vector<8x16x32xf32>
    %213 = arith.mulf %191, %212 : vector<8x16x32xf32>
    %214 = vector.shape_cast %199 : vector<8x32xf32> to vector<8x1x32xf32>
    %215 = vector.broadcast %206 : vector<8x16x1xf32> to vector<8x16x32xf32>
    %216 = vector.broadcast %214 : vector<8x1x32xf32> to vector<8x16x32xf32>
    %217 = arith.mulf %215, %216 : vector<8x16x32xf32>
    %218 = arith.addf %213, %217 : vector<8x16x32xf32>
    %c6_i32 = arith.constant 6 : i32
    %c8_i32_85 = arith.constant 8 : i32
    %219 = arith.muli %c6_i32, %c8_i32_85 : i32
    %220 = tpu.assume_multiple %219, 8 : i32
    %221 = arith.index_cast %220 : i32 to index
    %c0_86 = arith.constant 0 : index
    %222 = vector.load %arg20[%221, %c0_86] : memref<64x16xf32, #tpu.memory_space<vmem>>, vector<8x16xf32>
    %223 = arith.index_cast %220 : i32 to index
    %c0_87 = arith.constant 0 : index
    %224 = vector.load %arg21[%223, %c0_87] : memref<64x32xf32, #tpu.memory_space<vmem>>, vector<8x32xf32>
    %225 = arith.index_cast %220 : i32 to index
    %c0_88 = arith.constant 0 : index
    %226 = vector.load %arg22[%225, %c0_88] : memref<64x32xf32, #tpu.memory_space<vmem>>, vector<8x32xf32>
    %227 = vector.shape_cast %222 : vector<8x16xf32> to vector<8x16x1xf32>
    %228 = vector.broadcast %227 : vector<8x16x1xf32> to vector<8x16x32xf32>
    %229 = arith.mulf %228, %218 : vector<8x16x32xf32>
    %cst_89 = arith.constant dense<0.000000e+00> : vector<8x32xf32>
    %230 = vector.multi_reduction <add>, %229, %cst_89 [1] : vector<8x16x32xf32> to vector<8x32xf32>
    %231 = arith.index_cast %220 : i32 to index
    %c0_90 = arith.constant 0 : index
    %232 = vector.load %arg24[%231, %c0_90] : memref<64x32xf32, #tpu.memory_space<vmem>>, vector<8x32xf32>
    tpu.vector_store %arg24[%231, %c0_90], %230 {strides = array<i32>} : memref<64x32xf32, #tpu.memory_space<vmem>>, vector<8x32xf32>,
    %233 = vector.shape_cast %222 : vector<8x16xf32> to vector<8x16x1xf32>
    %234 = vector.shape_cast %224 : vector<8x32xf32> to vector<8x1x32xf32>
    %235 = vector.broadcast %233 : vector<8x16x1xf32> to vector<8x16x32xf32>
    %236 = vector.broadcast %234 : vector<8x1x32xf32> to vector<8x16x32xf32>
    %237 = arith.mulf %235, %236 : vector<8x16x32xf32>
    %cst_91 = arith.constant 1.000000e+00 : f32
    %238 = vector.broadcast %cst_91 : f32 to vector<8x16x32xf32>
    %239 = arith.subf %238, %237 : vector<8x16x32xf32>
    %240 = arith.mulf %218, %239 : vector<8x16x32xf32>
    %241 = vector.shape_cast %226 : vector<8x32xf32> to vector<8x1x32xf32>
    %242 = vector.broadcast %233 : vector<8x16x1xf32> to vector<8x16x32xf32>
    %243 = vector.broadcast %241 : vector<8x1x32xf32> to vector<8x16x32xf32>
    %244 = arith.mulf %242, %243 : vector<8x16x32xf32>
    %245 = arith.addf %240, %244 : vector<8x16x32xf32>
    %c7_i32 = arith.constant 7 : i32
    %c8_i32_92 = arith.constant 8 : i32
    %246 = arith.muli %c7_i32, %c8_i32_92 : i32
    %247 = tpu.assume_multiple %246, 8 : i32
    %248 = arith.index_cast %247 : i32 to index
    %c0_93 = arith.constant 0 : index
    %249 = vector.load %arg20[%248, %c0_93] : memref<64x16xf32, #tpu.memory_space<vmem>>, vector<8x16xf32>
    %250 = arith.index_cast %247 : i32 to index
    %c0_94 = arith.constant 0 : index
    %251 = vector.load %arg21[%250, %c0_94] : memref<64x32xf32, #tpu.memory_space<vmem>>, vector<8x32xf32>
    %252 = arith.index_cast %247 : i32 to index
    %c0_95 = arith.constant 0 : index
    %253 = vector.load %arg22[%252, %c0_95] : memref<64x32xf32, #tpu.memory_space<vmem>>, vector<8x32xf32>
    %254 = vector.shape_cast %249 : vector<8x16xf32> to vector<8x16x1xf32>
    %255 = vector.broadcast %254 : vector<8x16x1xf32> to vector<8x16x32xf32>
    %256 = arith.mulf %255, %245 : vector<8x16x32xf32>
    %cst_96 = arith.constant dense<0.000000e+00> : vector<8x32xf32>
    %257 = vector.multi_reduction <add>, %256, %cst_96 [1] : vector<8x16x32xf32> to vector<8x32xf32>
    %258 = arith.index_cast %247 : i32 to index
    %c0_97 = arith.constant 0 : index
    %259 = vector.load %arg24[%258, %c0_97] : memref<64x32xf32, #tpu.memory_space<vmem>>, vector<8x32xf32>
    tpu.vector_store %arg24[%258, %c0_97], %257 {strides = array<i32>} : memref<64x32xf32, #tpu.memory_space<vmem>>, vector<8x32xf32>,
    %260 = vector.shape_cast %249 : vector<8x16xf32> to vector<8x16x1xf32>
    %261 = vector.shape_cast %251 : vector<8x32xf32> to vector<8x1x32xf32>
    %262 = vector.broadcast %260 : vector<8x16x1xf32> to vector<8x16x32xf32>
    %263 = vector.broadcast %261 : vector<8x1x32xf32> to vector<8x16x32xf32>
    %264 = arith.mulf %262, %263 : vector<8x16x32xf32>
    %cst_98 = arith.constant 1.000000e+00 : f32
    %265 = vector.broadcast %cst_98 : f32 to vector<8x16x32xf32>
    %266 = arith.subf %265, %264 : vector<8x16x32xf32>
    %267 = arith.mulf %245, %266 : vector<8x16x32xf32>
    %268 = vector.shape_cast %253 : vector<8x32xf32> to vector<8x1x32xf32>
    %269 = vector.broadcast %260 : vector<8x16x1xf32> to vector<8x16x32xf32>
    %270 = vector.broadcast %268 : vector<8x1x32xf32> to vector<8x16x32xf32>
    %271 = arith.mulf %269, %270 : vector<8x16x32xf32>
    %272 = arith.addf %267, %271 : vector<8x16x32xf32>
    %c8_i32_99 = arith.constant 8 : i32
    %c0_100 = arith.constant 0 : index
    %c0_101 = arith.constant 0 : index
    %273 = vector.load %arg24[%c0_100, %c0_101] : memref<64x32xf32, #tpu.memory_space<vmem>>, vector<64x32xf32>
    %c0_102 = arith.constant 0 : index
    %c0_103 = arith.constant 0 : index
    %274 = vector.load %arg12[%c0_102, %c0_103] : memref<32x32xf32, #tpu.memory_space<vmem>>, vector<32x32xf32>
    %cst_104 = arith.constant dense<0.000000e+00> : vector<64x32xf32>
    %275 = tpu.matmul %273, %274, %cst_104 {dimension_numbers = #tpu.dot_dimension_numbers<[1], [0], [0], [1], [0, 0, 1, 1], [], []>} : vector<64x32xf32>, vector<32x32xf32>, vector<64x32xf32> -> vector<64x32xf32>
    %c0_105 = arith.constant 0 : index
    %c0_106 = arith.constant 0 : index
    %276 = vector.load %arg23[%c0_105, %c0_106] : memref<64x32xf32, #tpu.memory_space<vmem>>, vector<64x32xf32>
    %c0_107 = arith.constant 0 : index
    %c0_108 = arith.constant 0 : index
    %277 = vector.load %arg13[%c0_107, %c0_108] : memref<32x32xf32, #tpu.memory_space<vmem>>, vector<32x32xf32>
    %cst_109 = arith.constant dense<0.000000e+00> : vector<64x32xf32>
    %278 = tpu.matmul %276, %277, %cst_109 {dimension_numbers = #tpu.dot_dimension_numbers<[1], [0], [0], [1], [0, 0, 1, 1], [], []>} : vector<64x32xf32>, vector<32x32xf32>, vector<64x32xf32> -> vector<64x32xf32>
    %279 = arith.addf %275, %278 : vector<64x32xf32>
    %c0_110 = arith.constant 0 : index
    %c0_111 = arith.constant 0 : index
    %280 = vector.load %arg14[%c0_110, %c0_111] : memref<1x32xf32, #tpu.memory_space<vmem>>, vector<1x32xf32>
    %281 = vector.broadcast %280 : vector<1x32xf32> to vector<64x32xf32>
    %282 = arith.addf %279, %281 : vector<64x32xf32>
    %283 = math.tanh %282 : vector<64x32xf32>
    %c0_112 = arith.constant 0 : index
    %c0_113 = arith.constant 0 : index
    %284 = vector.load %arg15[%c0_112, %c0_113] : memref<1x32xf32, #tpu.memory_space<vmem>>, vector<1x32xf32>
    %285 = vector.broadcast %284 : vector<1x32xf32> to vector<64x32xf32>
    %286 = arith.mulf %283, %285 : vector<64x32xf32>
    %cst_114 = arith.constant dense<0.000000e+00> : vector<64xf32>
    %287 = vector.multi_reduction <add>, %286, %cst_114 [1] : vector<64x32xf32> to vector<64xf32>
    %288 = vector.shape_cast %287 : vector<64xf32> to vector<64x1xf32>
    %c0_115 = arith.constant 0 : index
    %c0_116 = arith.constant 0 : index
    %289 = vector.load %arg16[%c0_115, %c0_116] : memref<1x1xf32, #tpu.memory_space<vmem>>, vector<1x1xf32>
    %290 = vector.broadcast %289 : vector<1x1xf32> to vector<64x1xf32>
    %291 = arith.addf %288, %290 : vector<64x1xf32>
    %292 = arith.negf %291 : vector<64x1xf32>
    %293 = math.exp %292 : vector<64x1xf32>
    %cst_117 = arith.constant 1.000000e+00 : f32
    %294 = vector.broadcast %cst_117 : f32 to vector<64x1xf32>
    %295 = arith.addf %294, %293 : vector<64x1xf32>
    %296 = arith.divf %294, %295 : vector<64x1xf32>
    %c0_118 = arith.constant 0 : index
    %c0_119 = arith.constant 0 : index
    %c0_120 = arith.constant 0 : index
    %297 = vector.load %arg19[%c0_118, %c0_119, %c0_120] : memref<1x64x1xf32, #tpu.memory_space<vmem>>, vector<1x64x1xf32>
    %298 = vector.shape_cast %297 : vector<1x64x1xf32> to vector<64x1xf32>
    %299 = vector.shape_cast %296 : vector<64x1xf32> to vector<1x64x1xf32>
    tpu.vector_store %arg19[%c0_118, %c0_119, %c0_120], %299 {strides = array<i32>} : memref<1x64x1xf32, #tpu.memory_space<vmem>>, vector<1x64x1xf32>,
    return
  }
  func.func @transform_0(%arg0: i32) -> (i32, i32, i32) {
    %c0_i32 = arith.constant 0 : i32
    %c0_i32_0 = arith.constant 0 : i32
    %c0_i32_1 = arith.constant 0 : i32
    return %arg0, %c0_i32, %c0_i32_0 : i32, i32, i32
  }
  func.func @transform_1(%arg0: i32) -> (i32, i32, i32) {
    %c0_i32 = arith.constant 0 : i32
    %c0_i32_0 = arith.constant 0 : i32
    %c0_i32_1 = arith.constant 0 : i32
    return %arg0, %c0_i32, %c0_i32_0 : i32, i32, i32
  }
  func.func @transform_2(%arg0: i32) -> (i32, i32) {
    %c0_i32 = arith.constant 0 : i32
    %c0_i32_0 = arith.constant 0 : i32
    %c0_i32_1 = arith.constant 0 : i32
    return %c0_i32, %c0_i32_0 : i32, i32
  }
  func.func @transform_3(%arg0: i32) -> (i32, i32) {
    %c0_i32 = arith.constant 0 : i32
    %c0_i32_0 = arith.constant 0 : i32
    %c0_i32_1 = arith.constant 0 : i32
    return %c0_i32, %c0_i32_0 : i32, i32
  }
  func.func @transform_4(%arg0: i32) -> (i32, i32) {
    %c0_i32 = arith.constant 0 : i32
    %c0_i32_0 = arith.constant 0 : i32
    %c0_i32_1 = arith.constant 0 : i32
    return %c0_i32, %c0_i32_0 : i32, i32
  }
  func.func @transform_5(%arg0: i32) -> (i32, i32) {
    %c0_i32 = arith.constant 0 : i32
    %c0_i32_0 = arith.constant 0 : i32
    %c0_i32_1 = arith.constant 0 : i32
    return %c0_i32, %c0_i32_0 : i32, i32
  }
  func.func @transform_6(%arg0: i32) -> (i32, i32) {
    %c0_i32 = arith.constant 0 : i32
    %c0_i32_0 = arith.constant 0 : i32
    %c0_i32_1 = arith.constant 0 : i32
    return %c0_i32, %c0_i32_0 : i32, i32
  }
  func.func @transform_7(%arg0: i32) -> (i32, i32) {
    %c0_i32 = arith.constant 0 : i32
    %c0_i32_0 = arith.constant 0 : i32
    %c0_i32_1 = arith.constant 0 : i32
    return %c0_i32, %c0_i32_0 : i32, i32
  }
  func.func @transform_8(%arg0: i32) -> (i32, i32) {
    %c0_i32 = arith.constant 0 : i32
    %c0_i32_0 = arith.constant 0 : i32
    %c0_i32_1 = arith.constant 0 : i32
    return %c0_i32, %c0_i32_0 : i32, i32
  }
  func.func @transform_9(%arg0: i32) -> (i32, i32) {
    %c0_i32 = arith.constant 0 : i32
    %c0_i32_0 = arith.constant 0 : i32
    %c0_i32_1 = arith.constant 0 : i32
    return %c0_i32, %c0_i32_0 : i32, i32
  }
  func.func @transform_10(%arg0: i32) -> (i32, i32) {
    %c0_i32 = arith.constant 0 : i32
    %c0_i32_0 = arith.constant 0 : i32
    %c0_i32_1 = arith.constant 0 : i32
    return %c0_i32, %c0_i32_0 : i32, i32
  }
  func.func @transform_11(%arg0: i32) -> (i32, i32) {
    %c0_i32 = arith.constant 0 : i32
    %c0_i32_0 = arith.constant 0 : i32
    %c0_i32_1 = arith.constant 0 : i32
    return %c0_i32, %c0_i32_0 : i32, i32
  }
  func.func @transform_12(%arg0: i32) -> (i32, i32) {
    %c0_i32 = arith.constant 0 : i32
    %c0_i32_0 = arith.constant 0 : i32
    %c0_i32_1 = arith.constant 0 : i32
    return %c0_i32, %c0_i32_0 : i32, i32
  }
  func.func @transform_13(%arg0: i32) -> (i32, i32) {
    %c0_i32 = arith.constant 0 : i32
    %c0_i32_0 = arith.constant 0 : i32
    %c0_i32_1 = arith.constant 0 : i32
    return %c0_i32, %c0_i32_0 : i32, i32
  }
  func.func @transform_14(%arg0: i32) -> (i32, i32) {
    %c0_i32 = arith.constant 0 : i32
    %c0_i32_0 = arith.constant 0 : i32
    %c0_i32_1 = arith.constant 0 : i32
    return %c0_i32, %c0_i32_0 : i32, i32
  }
  func.func @transform_15(%arg0: i32) -> (i32, i32) {
    %c0_i32 = arith.constant 0 : i32
    %c0_i32_0 = arith.constant 0 : i32
    %c0_i32_1 = arith.constant 0 : i32
    return %c0_i32, %c0_i32_0 : i32, i32
  }
  func.func @transform_16(%arg0: i32) -> (i32, i32) {
    %c0_i32 = arith.constant 0 : i32
    %c0_i32_0 = arith.constant 0 : i32
    %c0_i32_1 = arith.constant 0 : i32
    return %c0_i32, %c0_i32_0 : i32, i32
  }
  func.func @transform_17(%arg0: i32) -> (i32, i32) {
    %c0_i32 = arith.constant 0 : i32
    %c0_i32_0 = arith.constant 0 : i32
    %c0_i32_1 = arith.constant 0 : i32
    return %c0_i32, %c0_i32_0 : i32, i32
  }
  func.func @transform_18(%arg0: i32) -> (i32, i32, i32) {
    %c0_i32 = arith.constant 0 : i32
    %c0_i32_0 = arith.constant 0 : i32
    %c0_i32_1 = arith.constant 0 : i32
    return %arg0, %c0_i32, %c0_i32_0 : i32, i32, i32
  }
}

</mosaic_0001>

<llo_original>
// kernel: tpu_custom_call.1
$region0: #{tpu_custom_call.1}
  #allocation0 [shape = 'u32[]', space=smem, size = 0x4, offset = 0x4, fixed_abs, tag = 'smem constant byte address 0x4 - core index']
  #allocation1 [shape = 'u32[144,128]{1,0:T(1,128)}', space=vmem, size = 0x12000, scoped, tag = 'internal scratch']
  #allocation2 [shape = 'f32[64,16]{1,0:T(8,128)}', space=vmem, size = 0x8000, scoped, tag = 'scratch operand']
  #allocation3 [shape = 'f32[64,32]{1,0:T(8,128)}', space=vmem, size = 0x8000, scoped, tag = 'scratch operand']
  #allocation4 [shape = 'f32[64,32]{1,0:T(8,128)}', space=vmem, size = 0x8000, scoped, tag = 'scratch operand']
  #allocation5 [shape = 'f32[64,32]{1,0:T(8,128)}', space=vmem, size = 0x8000, scoped, tag = 'scratch operand']
  #allocation6 [shape = 'f32[64,32]{1,0:T(8,128)}', space=vmem, size = 0x8000, scoped, tag = 'scratch operand']
  #allocation7 [shape = 'f32[1,1]{1,0:T(1,128)S(1)}', space=vmem, size = 0x200, scoped, tag = 'scoped memory for tpu_custom_call.1']
  %s0 = inlined_call_operand.vmem [shape: f32[1,64,64], index: 0, kind: input, shape index: {}]
  %s1 = inlined_call_operand.vmem [shape: f32[1,64,1], index: 1, kind: input, shape index: {}]
  %s2 = inlined_call_operand.vmem [shape: f32[64,32], index: 2, kind: input, shape index: {}]
  %s3 = inlined_call_operand.vmem [shape: f32[1,32], index: 3, kind: input, shape index: {}]
  %s4 = inlined_call_operand.vmem [shape: f32[64,32], index: 4, kind: input, shape index: {}]
  %s5 = inlined_call_operand.vmem [shape: f32[64,32], index: 5, kind: input, shape index: {}]
  %s6 = inlined_call_operand.vmem [shape: f32[1,32], index: 6, kind: input, shape index: {}]
  %s7 = inlined_call_operand.vmem [shape: f32[32,32], index: 7, kind: input, shape index: {}]
  %s8 = inlined_call_operand.vmem [shape: f32[1,32], index: 8, kind: input, shape index: {}]
  %s9 = inlined_call_operand.vmem [shape: f32[32,32], index: 9, kind: input, shape index: {}]
  %s10 = inlined_call_operand.vmem [shape: f32[1,32], index: 10, kind: input, shape index: {}]
  %s11 = inlined_call_operand.vmem [shape: f32[32,32], index: 11, kind: input, shape index: {}]
  %s12 = inlined_call_operand.vmem [shape: f32[32,32], index: 12, kind: input, shape index: {}]
  %s13 = inlined_call_operand.vmem [shape: f32[1,32], index: 13, kind: input, shape index: {}]
  %s14 = inlined_call_operand.vmem [shape: f32[1,32], index: 14, kind: input, shape index: {}]
  %s15 = inlined_call_operand.<no memory space> [shape: f32[1,1], index: 15, kind: input, shape index: {}]
  %s16 = inlined_call_operand.vmem [shape: f32[32,16], index: 16, kind: input, shape index: {}]
  %s17 = inlined_call_operand.vmem [shape: f32[16,32], index: 17, kind: input, shape index: {}]
  %s18 = inlined_call_operand.vmem [shape: f32[1,64,1], index: 18, kind: output, shape index: {}]
  %s19 = sld [smem:[#allocation0]]
  $region82: #{tpu_custom_call.1} parent=0
    _
  %s21 = ssub.s32 1, %s19
  %s22 = scalar_select 0, %s21, %s19
  %v23 = vstv %s15
  %24 = vst [vmem:[#allocation7] sm:$0x1] %v23
  // Predicated region
  $region2: #{tpu_custom_call.1} parent=0 // pred_check
    _
  $region3: #{tpu_custom_call.1} parent=0 // pred_check_branch
    %26 = sbr.rel (0) target = $region5
  $region4: #{tpu_custom_call.1} parent=0 // pred_region
    _
  $region5: #{tpu_custom_call.1} parent=0 // pred_fallthru
    _
  // Predicated region
  $region6: #{tpu_custom_call.1} parent=0 // pred_check
    _
  $region7: #{tpu_custom_call.1} parent=0 // pred_check_branch
    %28 = sbr.rel (0) target = $region9
  $region8: #{tpu_custom_call.1} parent=0 // pred_region
    _
  $region9: #{tpu_custom_call.1} parent=0 // pred_fallthru
    _
  // Predicated region
  $region10: #{tpu_custom_call.1} parent=0 // pred_check
    _
  $region11: #{tpu_custom_call.1} parent=0 // pred_check_branch
    %30 = sbr.rel (0) target = $region13
  $region12: #{tpu_custom_call.1} parent=0 // pred_region
    _
  $region13: #{tpu_custom_call.1} parent=0 // pred_fallthru
    _
  // Predicated region
  $region14: #{tpu_custom_call.1} parent=0 // pred_check
    _
  $region15: #{tpu_custom_call.1} parent=0 // pred_check_branch
    %32 = sbr.rel (0) target = $region17
  $region16: #{tpu_custom_call.1} parent=0 // pred_region
    _
  $region17: #{tpu_custom_call.1} parent=0 // pred_fallthru
    _
  // Predicated region
  $region18: #{tpu_custom_call.1} parent=0 // pred_check
    _
  $region19: #{tpu_custom_call.1} parent=0 // pred_check_branch
    %34 = sbr.rel (0) target = $region21
  $region20: #{tpu_custom_call.1} parent=0 // pred_region
    _
  $region21: #{tpu_custom_call.1} parent=0 // pred_fallthru
    _
  // Predicated region
  $region22: #{tpu_custom_call.1} parent=0 // pred_check
    _
  $region23: #{tpu_custom_call.1} parent=0 // pred_check_branch
    %36 = sbr.rel (0) target = $region25
  $region24: #{tpu_custom_call.1} parent=0 // pred_region
    _
  $region25: #{tpu_custom_call.1} parent=0 // pred_fallthru
    _
  // Predicated region
  $region26: #{tpu_custom_call.1} parent=0 // pred_check
    _
  $region27: #{tpu_custom_call.1} parent=0 // pred_check_branch
    %38 = sbr.rel (0) target = $region29
  $region28: #{tpu_custom_call.1} parent=0 // pred_region
    _
  $region29: #{tpu_custom_call.1} parent=0 // pred_fallthru
    _
  // Predicated region
  $region30: #{tpu_custom_call.1} parent=0 // pred_check
    _
  $region31: #{tpu_custom_call.1} parent=0 // pred_check_branch
    %40 = sbr.rel (0) target = $region33
  $region32: #{tpu_custom_call.1} parent=0 // pred_region
    _
  $region33: #{tpu_custom_call.1} parent=0 // pred_fallthru
    _
  // Predicated region
  $region34: #{tpu_custom_call.1} parent=0 // pred_check
    _
  $region35: #{tpu_custom_call.1} parent=0 // pred_check_branch
    %42 = sbr.rel (0) target = $region37
  $region36: #{tpu_custom_call.1} parent=0 // pred_region
    _
  $region37: #{tpu_custom_call.1} parent=0 // pred_fallthru
    _
  // Predicated region
  $region38: #{tpu_custom_call.1} parent=0 // pred_check
    _
  $region39: #{tpu_custom_call.1} parent=0 // pred_check_branch
    %44 = sbr.rel (0) target = $region41
  $region40: #{tpu_custom_call.1} parent=0 // pred_region
    _
  $region41: #{tpu_custom_call.1} parent=0 // pred_fallthru
    _
  // Predicated region
  $region42: #{tpu_custom_call.1} parent=0 // pred_check
    _
  $region43: #{tpu_custom_call.1} parent=0 // pred_check_branch
    %46 = sbr.rel (0) target = $region45
  $region44: #{tpu_custom_call.1} parent=0 // pred_region
    _
  $region45: #{tpu_custom_call.1} parent=0 // pred_fallthru
    _
  // Predicated region
  $region46: #{tpu_custom_call.1} parent=0 // pred_check
    _
  $region47: #{tpu_custom_call.1} parent=0 // pred_check_branch
    %48 = sbr.rel (0) target = $region49
  $region48: #{tpu_custom_call.1} parent=0 // pred_region
    _
  $region49: #{tpu_custom_call.1} parent=0 // pred_fallthru
    _
  // Predicated region
  $region50: #{tpu_custom_call.1} parent=0 // pred_check
    _
  $region51: #{tpu_custom_call.1} parent=0 // pred_check_branch
    %50 = sbr.rel (0) target = $region53
  $region52: #{tpu_custom_call.1} parent=0 // pred_region
    _
  $region53: #{tpu_custom_call.1} parent=0 // pred_fallthru
    _
  // Predicated region
  $region54: #{tpu_custom_call.1} parent=0 // pred_check
    _
  $region55: #{tpu_custom_call.1} parent=0 // pred_check_branch
    %52 = sbr.rel (0) target = $region57
  $region56: #{tpu_custom_call.1} parent=0 // pred_region
    _
  $region57: #{tpu_custom_call.1} parent=0 // pred_fallthru
    _
  // Predicated region
  $region58: #{tpu_custom_call.1} parent=0 // pred_check
    _
  $region59: #{tpu_custom_call.1} parent=0 // pred_check_branch
    %54 = sbr.rel (0) target = $region61
  $region60: #{tpu_custom_call.1} parent=0 // pred_region
    _
  $region61: #{tpu_custom_call.1} parent=0 // pred_fallthru
    _
  // Predicated region
  $region62: #{tpu_custom_call.1} parent=0 // pred_check
    _
  $region63: #{tpu_custom_call.1} parent=0 // pred_check_branch
    %56 = sbr.rel (0) target = $region65
  $region64: #{tpu_custom_call.1} parent=0 // pred_region
    _
  $region65: #{tpu_custom_call.1} parent=0 // pred_fallthru
    _
  // Predicated region
  $region66: #{tpu_custom_call.1} parent=0 // pred_check
    _
  $region67: #{tpu_custom_call.1} parent=0 // pred_check_branch
    %58 = sbr.rel (0) target = $region69
  $region68: #{tpu_custom_call.1} parent=0 // pred_region
    _
  $region69: #{tpu_custom_call.1} parent=0 // pred_fallthru
    _
  // Predicated region
  $region70: #{tpu_custom_call.1} parent=0 // pred_check
    _
  $region71: #{tpu_custom_call.1} parent=0 // pred_check_branch
    %60 = sbr.rel (0) target = $region73
  $region72: #{tpu_custom_call.1} parent=0 // pred_region
    _
  $region73: #{tpu_custom_call.1} parent=0 // pred_fallthru
    _
  %v61 = vld [vmem:[%s0] sm:$0xff]
  %v62 = vld [vmem:[%s0 + $0x8] sm:$0xff]
  %v63 = vld [vmem:[%s0 + $0x10] sm:$0xff]
  %v64 = vld [vmem:[%s0 + $0x18] sm:$0xff]
  %v65 = vld [vmem:[%s0 + $0x20] sm:$0xff]
  %v66 = vld [vmem:[%s0 + $0x28] sm:$0xff]
  %v67 = vld [vmem:[%s0 + $0x30] sm:$0xff]
  %v68 = vld [vmem:[%s0 + $0x38] sm:$0xff]
  %v69 = vld [vmem:[%s1] sm:$0xff]
  %v70 = vld [vmem:[%s1 + $0x8] sm:$0xff]
  %v71 = vld [vmem:[%s1 + $0x10] sm:$0xff]
  %v72 = vld [vmem:[%s1 + $0x18] sm:$0xff]
  %v73 = vld [vmem:[%s1 + $0x20] sm:$0xff]
  %v74 = vld [vmem:[%s1 + $0x28] sm:$0xff]
  %v75 = vld [vmem:[%s1 + $0x30] sm:$0xff]
  %v76 = vld [vmem:[%s1 + $0x38] sm:$0xff]
  %v77 = vld [vmem:[%s2] sm:$0xff]
  %v78 = vld [vmem:[%s2 + $0x8] sm:$0xff]
  %v79 = vld [vmem:[%s2 + $0x10] sm:$0xff]
  %v80 = vld [vmem:[%s2 + $0x18] sm:$0xff]
  %v81 = vld [vmem:[%s2 + $0x20] sm:$0xff]
  %v82 = vld [vmem:[%s2 + $0x28] sm:$0xff]
  %v83 = vld [vmem:[%s2 + $0x30] sm:$0xff]
  %v84 = vld [vmem:[%s2 + $0x38] sm:$0xff]
  %v85 = vld [vmem:[%s3] sm:$0x1]
  %v87 = vlaneseq
  %v88 = vshrl.u32 %v87, 7
  %v89 = vsub.s32 0, %v88
  %v90 = vrot.slane %v85, %v89
  %vm92 = vcmask 523264
  %v94 = vsel %vm92, %v61, 0
  %v97 = vsel %vm92, %v62, 0
  %v100 = vsel %vm92, %v63, 0
  %v103 = vsel %vm92, %v64, 0
  %v106 = vsel %vm92, %v65, 0
  %v109 = vsel %vm92, %v66, 0
  %v112 = vsel %vm92, %v67, 0
  %v115 = vsel %vm92, %v68, 0
  %117 = vmatprep.subr.mxu0 0.0
  %118 = vmatpush1.msra.mxu0 %v77
  %119 = vmatprep.subr.mxu0 0.0
  %120 = vmatpush1.msra.mxu0 %v78
  %121 = vmatprep.subr.mxu0 0.0
  %122 = vmatpush1.msra.mxu0 %v79
  %123 = vmatprep.subr.mxu0 0.0
  %124 = vmatpush1.msra.mxu0 %v80
  %125 = vmatprep.subr.mxu0 0.0
  %126 = vmatpush1.msra.mxu0 %v81
  %127 = vmatprep.subr.mxu0 0.0
  %128 = vmatpush1.msra.mxu0 %v82
  %129 = vmatprep.subr.mxu0 0.0
  %130 = vmatpush1.msra.mxu0 %v83
  %131 = vmatprep.subr.mxu0 0.0
  %132 = vmatpush1.msra.mxu0 %v84
  %133 = vmatprep.subr.mxu0 0.0
  %134 = vmatpush1.msra.mxu0 0.0
  %135 = vmatprep.subr.mxu0 0.0
  %136 = vmatpush1.msra.mxu0 0.0
  %137 = vmatprep.subr.mxu0 0.0
  %138 = vmatpush1.msra.mxu0 0.0
  %139 = vmatprep.subr.mxu0 0.0
  %140 = vmatpush1.msra.mxu0 0.0
  %141 = vmatprep.subr.mxu0 0.0
  %142 = vmatpush1.msra.mxu0 0.0
  %143 = vmatprep.subr.mxu0 0.0
  %144 = vmatpush1.msra.mxu0 0.0
  %145 = vmatprep.subr.mxu0 0.0
  %146 = vmatpush1.msra.mxu0 0.0
  %147 = vmatprep.subr.mxu0 0.0
  %148 = vmatpush1.msra.mxu0 0.0
  %149 = vmatprep.subr.mxu0 0.0
  %150 = vmatpush1.msra.mxu0 0.0
  %151 = vmatprep.subr.mxu0 0.0
  %152 = vmatpush1.msra.mxu0 0.0
  %153 = vmatprep.subr.mxu0 0.0
  %154 = vmatpush1.msra.mxu0 0.0
  %155 = vmatprep.subr.mxu0 0.0
  %156 = vmatpush1.msra.mxu0 0.0
  %157 = vmatprep.subr.mxu0 0.0
  %158 = vmatpush1.msra.mxu0 0.0
  %159 = vmatprep.subr.mxu0 0.0
  %160 = vmatpush1.msra.mxu0 0.0
  %161 = vmatprep.subr.mxu0 0.0
  %162 = vmatpush1.msra.mxu0 0.0
  %163 = vmatprep.subr.mxu0 0.0
  %164 = vmatpush1.msra.mxu0 0.0
  %165 = vmatprep.subr.mxu0 0.0
  %166 = vmatpush1.msra.mxu0 0.0
  %167 = vmatprep.subr.mxu0 0.0
  %168 = vmatpush1.msra.mxu0 0.0
  %169 = vmatprep.subr.mxu0 0.0
  %170 = vmatpush1.msra.mxu0 0.0
  %171 = vmatprep.subr.mxu0 0.0
  %172 = vmatpush1.msra.mxu0 0.0
  %173 = vmatprep.subr.mxu0 0.0
  %174 = vmatpush1.msra.mxu0 0.0
  %175 = vmatprep.subr.mxu0 0.0
  %176 = vmatpush1.msra.mxu0 0.0
  %177 = vmatprep.subr.mxu0 0.0
  %178 = vmatpush1.msra.mxu0 0.0
  %179 = vmatprep.subr.mxu0 0.0
  %180 = vmatpush1.msra.mxu0 0.0
  %181 = vmatprep.mubr.f32.mxu0 0.0
  %182 = vmatmul.mubr.f32.gmra.mrb[0].mxu0 %v94
  %v183 = vpop.f32.mrb[0].mxu0
  %v184 = vadd.f32 %v90, %v183
  %v185 = vpop.f32.mrb[0].mxu0
  %186 = vmatprep.mubr.f32.mxu0 0.0
  %187 = vmatmul.mubr.f32.gmra.mrb[0].mxu0 %v97
  %v188 = vpop.f32.mrb[0].mxu0
  %v189 = vadd.f32 %v90, %v188
  %v190 = vpop.f32.mrb[0].mxu0
  %191 = vmatprep.mubr.f32.mxu0 0.0
  %192 = vmatmul.mubr.f32.gmra.mrb[0].mxu0 %v100
  %v193 = vpop.f32.mrb[0].mxu0
  %v194 = vadd.f32 %v90, %v193
  %v195 = vpop.f32.mrb[0].mxu0
  %196 = vmatprep.mubr.f32.mxu0 0.0
  %197 = vmatmul.mubr.f32.gmra.mrb[0].mxu0 %v103
  %v198 = vpop.f32.mrb[0].mxu0
  %v199 = vadd.f32 %v90, %v198
  %v200 = vpop.f32.mrb[0].mxu0
  %201 = vmatprep.mubr.f32.mxu0 0.0
  %202 = vmatmul.mubr.f32.gmra.mrb[0].mxu0 %v106
  %v203 = vpop.f32.mrb[0].mxu0
  %v204 = vadd.f32 %v90, %v203
  %v205 = vpop.f32.mrb[0].mxu0
  %206 = vmatprep.mubr.f32.mxu0 0.0
  %207 = vmatmul.mubr.f32.gmra.mrb[0].mxu0 %v109
  %v208 = vpop.f32.mrb[0].mxu0
  %v209 = vadd.f32 %v90, %v208
  %v210 = vpop.f32.mrb[0].mxu0
  %211 = vmatprep.mubr.f32.mxu0 0.0
  %212 = vmatmul.mubr.f32.gmra.mrb[0].mxu0 %v112
  %v213 = vpop.f32.mrb[0].mxu0
  %v214 = vadd.f32 %v90, %v213
  %v215 = vpop.f32.mrb[0].mxu0
  %216 = vmatprep.mubr.f32.mxu0 0.0
  %217 = vmatmul.mubr.f32.gmra.mrb[0].mxu0 %v115
  %v218 = vpop.f32.mrb[0].mxu0
  %v219 = vadd.f32 %v90, %v218
  %v220 = vpop.f32.mrb[0].mxu0
  %221 = vdwg.mxu0
  %v222 = vld [vmem:[%s4] sm:$0xff]
  %v223 = vld [vmem:[%s4 + $0x8] sm:$0xff]
  %v224 = vld [vmem:[%s4 + $0x10] sm:$0xff]
  %v225 = vld [vmem:[%s4 + $0x18] sm:$0xff]
  %v226 = vld [vmem:[%s4 + $0x20] sm:$0xff]
  %v227 = vld [vmem:[%s4 + $0x28] sm:$0xff]
  %v228 = vld [vmem:[%s4 + $0x30] sm:$0xff]
  %v229 = vld [vmem:[%s4 + $0x38] sm:$0xff]
  %230 = vmatprep.subr.mxu0 0.0
  %231 = vmatpush1.msra.mxu0 %v222
  %232 = vmatprep.subr.mxu0 0.0
  %233 = vmatpush1.msra.mxu0 %v223
  %234 = vmatprep.subr.mxu0 0.0
  %235 = vmatpush1.msra.mxu0 %v224
  %236 = vmatprep.subr.mxu0 0.0
  %237 = vmatpush1.msra.mxu0 %v225
  %238 = vmatprep.subr.mxu0 0.0
  %239 = vmatpush1.msra.mxu0 %v226
  %240 = vmatprep.subr.mxu0 0.0
  %241 = vmatpush1.msra.mxu0 %v227
  %242 = vmatprep.subr.mxu0 0.0
  %243 = vmatpush1.msra.mxu0 %v228
  %244 = vmatprep.subr.mxu0 0.0
  %245 = vmatpush1.msra.mxu0 %v229
  %246 = vmatprep.subr.mxu0 0.0
  %247 = vmatpush1.msra.mxu0 0.0
  %248 = vmatprep.subr.mxu0 0.0
  %249 = vmatpush1.msra.mxu0 0.0
  %250 = vmatprep.subr.mxu0 0.0
  %251 = vmatpush1.msra.mxu0 0.0
  %252 = vmatprep.subr.mxu0 0.0
  %253 = vmatpush1.msra.mxu0 0.0
  %254 = vmatprep.subr.mxu0 0.0
  %255 = vmatpush1.msra.mxu0 0.0
  %256 = vmatprep.subr.mxu0 0.0
  %257 = vmatpush1.msra.mxu0 0.0
  %258 = vmatprep.subr.mxu0 0.0
  %259 = vmatpush1.msra.mxu0 0.0
  %260 = vmatprep.subr.mxu0 0.0
  %261 = vmatpush1.msra.mxu0 0.0
  %262 = vmatprep.subr.mxu0 0.0
  %263 = vmatpush1.msra.mxu0 0.0
  %264 = vmatprep.subr.mxu0 0.0
  %265 = vmatpush1.msra.mxu0 0.0
  %266 = vmatprep.subr.mxu0 0.0
  %267 = vmatpush1.msra.mxu0 0.0
  %268 = vmatprep.subr.mxu0 0.0
  %269 = vmatpush1.msra.mxu0 0.0
  %270 = vmatprep.subr.mxu0 0.0
  %271 = vmatpush1.msra.mxu0 0.0
  %272 = vmatprep.subr.mxu0 0.0
  %273 = vmatpush1.msra.mxu0 0.0
  %274 = vmatprep.subr.mxu0 0.0
  %275 = vmatpush1.msra.mxu0 0.0
  %276 = vmatprep.subr.mxu0 0.0
  %277 = vmatpush1.msra.mxu0 0.0
  %278 = vmatprep.subr.mxu0 0.0
  %279 = vmatpush1.msra.mxu0 0.0
  %280 = vmatprep.subr.mxu0 0.0
  %281 = vmatpush1.msra.mxu0 0.0
  %282 = vmatprep.subr.mxu0 0.0
  %283 = vmatpush1.msra.mxu0 0.0
  %284 = vmatprep.subr.mxu0 0.0
  %285 = vmatpush1.msra.mxu0 0.0
  %286 = vmatprep.subr.mxu0 0.0
  %287 = vmatpush1.msra.mxu0 0.0
  %288 = vmatprep.subr.mxu0 0.0
  %289 = vmatpush1.msra.mxu0 0.0
  %290 = vmatprep.subr.mxu0 0.0
  %291 = vmatpush1.msra.mxu0 0.0
  %292 = vmatprep.subr.mxu0 0.0
  %293 = vmatpush1.msra.mxu0 0.0
  %294 = vmatprep.mubr.f32.mxu0 0.0
  %295 = vmatmul.mubr.f32.gmra.mrb[0].mxu0 %v94
  %v296 = vpop.f32.mrb[0].mxu0
  %v297 = vadd.f32 0.0, %v296
  %v298 = vpop.f32.mrb[0].mxu0
  %299 = vmatprep.mubr.f32.mxu0 0.0
  %300 = vmatmul.mubr.f32.gmra.mrb[0].mxu0 %v97
  %v301 = vpop.f32.mrb[0].mxu0
  %v302 = vadd.f32 0.0, %v301
  %v303 = vpop.f32.mrb[0].mxu0
  %304 = vmatprep.mubr.f32.mxu0 0.0
  %305 = vmatmul.mubr.f32.gmra.mrb[0].mxu0 %v100
  %v306 = vpop.f32.mrb[0].mxu0
  %v307 = vadd.f32 0.0, %v306
  %v308 = vpop.f32.mrb[0].mxu0
  %309 = vmatprep.mubr.f32.mxu0 0.0
  %310 = vmatmul.mubr.f32.gmra.mrb[0].mxu0 %v103
  %v311 = vpop.f32.mrb[0].mxu0
  %v312 = vadd.f32 0.0, %v311
  %v313 = vpop.f32.mrb[0].mxu0
  %314 = vmatprep.mubr.f32.mxu0 0.0
  %315 = vmatmul.mubr.f32.gmra.mrb[0].mxu0 %v106
  %v316 = vpop.f32.mrb[0].mxu0
  %v317 = vadd.f32 0.0, %v316
  %v318 = vpop.f32.mrb[0].mxu0
  %319 = vmatprep.mubr.f32.mxu0 0.0
  %320 = vmatmul.mubr.f32.gmra.mrb[0].mxu0 %v109
  %v321 = vpop.f32.mrb[0].mxu0
  %v322 = vadd.f32 0.0, %v321
  %v323 = vpop.f32.mrb[0].mxu0
  %324 = vmatprep.mubr.f32.mxu0 0.0
  %325 = vmatmul.mubr.f32.gmra.mrb[0].mxu0 %v112
  %v326 = vpop.f32.mrb[0].mxu0
  %v327 = vadd.f32 0.0, %v326
  %v328 = vpop.f32.mrb[0].mxu0
  %329 = vmatprep.mubr.f32.mxu0 0.0
  %330 = vmatmul.mubr.f32.gmra.mrb[0].mxu0 %v115
  %v331 = vpop.f32.mrb[0].mxu0
  %v332 = vadd.f32 0.0, %v331
  %v333 = vpop.f32.mrb[0].mxu0
  %334 = vdwg.mxu0
  %336 = vset.pattern.permute.xlu0 0
  %337 = vperm.xlu0 %336, %v69
  %v338 = vpop.permute.xlu0 %337
  %341 = vset.pattern.permute.xlu0 0
  %342 = vperm.xlu0 %341, %v70
  %v343 = vpop.permute.xlu0 %342
  %346 = vset.pattern.permute.xlu0 0
  %347 = vperm.xlu0 %346, %v71
  %v348 = vpop.permute.xlu0 %347
  %351 = vset.pattern.permute.xlu0 0
  %352 = vperm.xlu0 %351, %v72
  %v353 = vpop.permute.xlu0 %352
  %356 = vset.pattern.permute.xlu0 0
  %357 = vperm.xlu0 %356, %v73
  %v358 = vpop.permute.xlu0 %357
  %361 = vset.pattern.permute.xlu0 0
  %362 = vperm.xlu0 %361, %v74
  %v363 = vpop.permute.xlu0 %362
  %366 = vset.pattern.permute.xlu0 0
  %367 = vperm.xlu0 %366, %v75
  %v368 = vpop.permute.xlu0 %367
  %371 = vset.pattern.permute.xlu0 0
  %372 = vperm.xlu0 %371, %v76
  %v373 = vpop.permute.xlu0 %372
  %v375 = vmul.f32 %v338, %v297
  %v376 = vmul.f32 %v343, %v302
  %v377 = vmul.f32 %v348, %v307
  %v378 = vmul.f32 %v353, %v312
  %v379 = vmul.f32 %v358, %v317
  %v380 = vmul.f32 %v363, %v322
  %v381 = vmul.f32 %v368, %v327
  %v382 = vmul.f32 %v373, %v332
  %v383 = vsub.f32 1.0, %v69
  %v384 = vsub.f32 1.0, %v70
  %v385 = vsub.f32 1.0, %v71
  %v386 = vsub.f32 1.0, %v72
  %v387 = vsub.f32 1.0, %v73
  %v388 = vsub.f32 1.0, %v74
  %v389 = vsub.f32 1.0, %v75
  %v390 = vsub.f32 1.0, %v76
  %v391 = vld [vmem:[%s5] sm:$0xff]
  %v392 = vld [vmem:[%s5 + $0x8] sm:$0xff]
  %v393 = vld [vmem:[%s5 + $0x10] sm:$0xff]
  %v394 = vld [vmem:[%s5 + $0x18] sm:$0xff]
  %v395 = vld [vmem:[%s5 + $0x20] sm:$0xff]
  %v396 = vld [vmem:[%s5 + $0x28] sm:$0xff]
  %v397 = vld [vmem:[%s5 + $0x30] sm:$0xff]
  %v398 = vld [vmem:[%s5 + $0x38] sm:$0xff]
  %399 = vmatprep.subr.mxu0 0.0
  %400 = vmatpush1.msra.mxu0 %v391
  %401 = vmatprep.subr.mxu0 0.0
  %402 = vmatpush1.msra.mxu0 %v392
  %403 = vmatprep.subr.mxu0 0.0
  %404 = vmatpush1.msra.mxu0 %v393
  %405 = vmatprep.subr.mxu0 0.0
  %406 = vmatpush1.msra.mxu0 %v394
  %407 = vmatprep.subr.mxu0 0.0
  %408 = vmatpush1.msra.mxu0 %v395
  %409 = vmatprep.subr.mxu0 0.0
  %410 = vmatpush1.msra.mxu0 %v396
  %411 = vmatprep.subr.mxu0 0.0
  %412 = vmatpush1.msra.mxu0 %v397
  %413 = vmatprep.subr.mxu0 0.0
  %414 = vmatpush1.msra.mxu0 %v398
  %415 = vmatprep.subr.mxu0 0.0
  %416 = vmatpush1.msra.mxu0 0.0
  %417 = vmatprep.subr.mxu0 0.0
  %418 = vmatpush1.msra.mxu0 0.0
  %419 = vmatprep.subr.mxu0 0.0
  %420 = vmatpush1.msra.mxu0 0.0
  %421 = vmatprep.subr.mxu0 0.0
  %422 = vmatpush1.msra.mxu0 0.0
  %423 = vmatprep.subr.mxu0 0.0
  %424 = vmatpush1.msra.mxu0 0.0
  %425 = vmatprep.subr.mxu0 0.0
  %426 = vmatpush1.msra.mxu0 0.0
  %427 = vmatprep.subr.mxu0 0.0
  %428 = vmatpush1.msra.mxu0 0.0
  %429 = vmatprep.subr.mxu0 0.0
  %430 = vmatpush1.msra.mxu0 0.0
  %431 = vmatprep.subr.mxu0 0.0
  %432 = vmatpush1.msra.mxu0 0.0
  %433 = vmatprep.subr.mxu0 0.0
  %434 = vmatpush1.msra.mxu0 0.0
  %435 = vmatprep.subr.mxu0 0.0
  %436 = vmatpush1.msra.mxu0 0.0
  %437 = vmatprep.subr.mxu0 0.0
  %438 = vmatpush1.msra.mxu0 0.0
  %439 = vmatprep.subr.mxu0 0.0
  %440 = vmatpush1.msra.mxu0 0.0
  %441 = vmatprep.subr.mxu0 0.0
  %442 = vmatpush1.msra.mxu0 0.0
  %443 = vmatprep.subr.mxu0 0.0
  %444 = vmatpush1.msra.mxu0 0.0
  %445 = vmatprep.subr.mxu0 0.0
  %446 = vmatpush1.msra.mxu0 0.0
  %447 = vmatprep.subr.mxu0 0.0
  %448 = vmatpush1.msra.mxu0 0.0
  %449 = vmatprep.subr.mxu0 0.0
  %450 = vmatpush1.msra.mxu0 0.0
  %451 = vmatprep.subr.mxu0 0.0
  %452 = vmatpush1.msra.mxu0 0.0
  %453 = vmatprep.subr.mxu0 0.0
  %454 = vmatpush1.msra.mxu0 0.0
  %455 = vmatprep.subr.mxu0 0.0
  %456 = vmatpush1.msra.mxu0 0.0
  %457 = vmatprep.subr.mxu0 0.0
  %458 = vmatpush1.msra.mxu0 0.0
  %459 = vmatprep.subr.mxu0 0.0
  %460 = vmatpush1.msra.mxu0 0.0
  %461 = vmatprep.subr.mxu0 0.0
  %462 = vmatpush1.msra.mxu0 0.0
  %463 = vmatprep.mubr.f32.mxu0 0.0
  %464 = vmatmul.mubr.f32.gmra.mrb[0].mxu0 %v94
  %v465 = vpop.f32.mrb[0].mxu0
  %v466 = vadd.f32 0.0, %v465
  %v467 = vpop.f32.mrb[0].mxu0
  %468 = vmatprep.mubr.f32.mxu0 0.0
  %469 = vmatmul.mubr.f32.gmra.mrb[0].mxu0 %v97
  %v470 = vpop.f32.mrb[0].mxu0
  %v471 = vadd.f32 0.0, %v470
  %v472 = vpop.f32.mrb[0].mxu0
  %473 = vmatprep.mubr.f32.mxu0 0.0
  %474 = vmatmul.mubr.f32.gmra.mrb[0].mxu0 %v100
  %v475 = vpop.f32.mrb[0].mxu0
  %v476 = vadd.f32 0.0, %v475
  %v477 = vpop.f32.mrb[0].mxu0
  %478 = vmatprep.mubr.f32.mxu0 0.0
  %479 = vmatmul.mubr.f32.gmra.mrb[0].mxu0 %v103
  %v480 = vpop.f32.mrb[0].mxu0
  %v481 = vadd.f32 0.0, %v480
  %v482 = vpop.f32.mrb[0].mxu0
  %483 = vmatprep.mubr.f32.mxu0 0.0
  %484 = vmatmul.mubr.f32.gmra.mrb[0].mxu0 %v106
  %v485 = vpop.f32.mrb[0].mxu0
  %v486 = vadd.f32 0.0, %v485
  %v487 = vpop.f32.mrb[0].mxu0
  %488 = vmatprep.mubr.f32.mxu0 0.0
  %489 = vmatmul.mubr.f32.gmra.mrb[0].mxu0 %v109
  %v490 = vpop.f32.mrb[0].mxu0
  %v491 = vadd.f32 0.0, %v490
  %v492 = vpop.f32.mrb[0].mxu0
  %493 = vmatprep.mubr.f32.mxu0 0.0
  %494 = vmatmul.mubr.f32.gmra.mrb[0].mxu0 %v112
  %v495 = vpop.f32.mrb[0].mxu0
  %v496 = vadd.f32 0.0, %v495
  %v497 = vpop.f32.mrb[0].mxu0
  %498 = vmatprep.mubr.f32.mxu0 0.0
  %499 = vmatmul.mubr.f32.gmra.mrb[0].mxu0 %v115
  %v500 = vpop.f32.mrb[0].mxu0
  %v501 = vadd.f32 0.0, %v500
  %v502 = vpop.f32.mrb[0].mxu0
  %503 = vdwg.mxu0
  %505 = vset.pattern.permute.xlu0 0
  %506 = vperm.xlu0 %505, %v383
  %v507 = vpop.permute.xlu0 %506
  %510 = vset.pattern.permute.xlu0 0
  %511 = vperm.xlu0 %510, %v384
  %v512 = vpop.permute.xlu0 %511
  %515 = vset.pattern.permute.xlu0 0
  %516 = vperm.xlu0 %515, %v385
  %v517 = vpop.permute.xlu0 %516
  %520 = vset.pattern.permute.xlu0 0
  %521 = vperm.xlu0 %520, %v386
  %v522 = vpop.permute.xlu0 %521
  %525 = vset.pattern.permute.xlu0 0
  %526 = vperm.xlu0 %525, %v387
  %v527 = vpop.permute.xlu0 %526
  %530 = vset.pattern.permute.xlu0 0
  %531 = vperm.xlu0 %530, %v388
  %v532 = vpop.permute.xlu0 %531
  %535 = vset.pattern.permute.xlu0 0
  %536 = vperm.xlu0 %535, %v389
  %v537 = vpop.permute.xlu0 %536
  %540 = vset.pattern.permute.xlu0 0
  %541 = vperm.xlu0 %540, %v390
  %v542 = vpop.permute.xlu0 %541
  %v544 = vmul.f32 %v507, %v466
  %v545 = vmul.f32 %v512, %v471
  %v546 = vmul.f32 %v517, %v476
  %v547 = vmul.f32 %v522, %v481
  %v548 = vmul.f32 %v527, %v486
  %v549 = vmul.f32 %v532, %v491
  %v550 = vmul.f32 %v537, %v496
  %v551 = vmul.f32 %v542, %v501
  %v552 = vadd.f32 %v375, %v544
  %v553 = vadd.f32 %v376, %v545
  %v554 = vadd.f32 %v377, %v546
  %v555 = vadd.f32 %v378, %v547
  %v556 = vadd.f32 %v379, %v548
  %v557 = vadd.f32 %v380, %v549
  %v558 = vadd.f32 %v381, %v550
  %v559 = vadd.f32 %v382, %v551
  %v560 = vld [vmem:[%s6] sm:$0x1]
  %v562 = vlaneseq
  %v563 = vshrl.u32 %v562, 7
  %v564 = vsub.s32 0, %v563
  %v565 = vrot.slane %v560, %v564
  %v567 = vadd.f32 %v552, %v565
  %v568 = vadd.f32 %v553, %v565
  %v569 = vadd.f32 %v554, %v565
  %v570 = vadd.f32 %v555, %v565
  %v571 = vadd.f32 %v556, %v565
  %v572 = vadd.f32 %v557, %v565
  %v573 = vadd.f32 %v558, %v565
  %v574 = vadd.f32 %v559, %v565
  %v575 = vld [vmem:[%s16] sm:$0xff]
  %v576 = vld [vmem:[%s16 + $0x8] sm:$0xff]
  %v577 = vld [vmem:[%s16 + $0x10] sm:$0xff]
  %v578 = vld [vmem:[%s16 + $0x18] sm:$0xff]
  %vm579 = vcmask 261120
  %v581 = vsel %vm579, %v184, 0
  %v584 = vsel %vm579, %v189, 0
  %v587 = vsel %vm579, %v194, 0
  %v590 = vsel %vm579, %v199, 0
  %v593 = vsel %vm579, %v204, 0
  %v596 = vsel %vm579, %v209, 0
  %v599 = vsel %vm579, %v214, 0
  %v602 = vsel %vm579, %v219, 0
  %604 = vmatprep.subr.mxu0 0.0
  %605 = vmatpush1.msra.mxu0 %v575
  %606 = vmatprep.subr.mxu0 0.0
  %607 = vmatpush1.msra.mxu0 %v576
  %608 = vmatprep.subr.mxu0 0.0
  %609 = vmatpush1.msra.mxu0 %v577
  %610 = vmatprep.subr.mxu0 0.0
  %611 = vmatpush1.msra.mxu0 %v578
  %612 = vmatprep.subr.mxu0 0.0
  %613 = vmatpush1.msra.mxu0 0.0
  %614 = vmatprep.subr.mxu0 0.0
  %615 = vmatpush1.msra.mxu0 0.0
  %616 = vmatprep.subr.mxu0 0.0
  %617 = vmatpush1.msra.mxu0 0.0
  %618 = vmatprep.subr.mxu0 0.0
  %619 = vmatpush1.msra.mxu0 0.0
  %620 = vmatprep.subr.mxu0 0.0
  %621 = vmatpush1.msra.mxu0 0.0
  %622 = vmatprep.subr.mxu0 0.0
  %623 = vmatpush1.msra.mxu0 0.0
  %624 = vmatprep.subr.mxu0 0.0
  %625 = vmatpush1.msra.mxu0 0.0
  %626 = vmatprep.subr.mxu0 0.0
  %627 = vmatpush1.msra.mxu0 0.0
  %628 = vmatprep.subr.mxu0 0.0
  %629 = vmatpush1.msra.mxu0 0.0
  %630 = vmatprep.subr.mxu0 0.0
  %631 = vmatpush1.msra.mxu0 0.0
  %632 = vmatprep.subr.mxu0 0.0
  %633 = vmatpush1.msra.mxu0 0.0
  %634 = vmatprep.subr.mxu0 0.0
  %635 = vmatpush1.msra.mxu0 0.0
  %636 = vmatprep.subr.mxu0 0.0
  %637 = vmatpush1.msra.mxu0 0.0
  %638 = vmatprep.subr.mxu0 0.0
  %639 = vmatpush1.msra.mxu0 0.0
  %640 = vmatprep.subr.mxu0 0.0
  %641 = vmatpush1.msra.mxu0 0.0
  %642 = vmatprep.subr.mxu0 0.0
  %643 = vmatpush1.msra.mxu0 0.0
  %644 = vmatprep.subr.mxu0 0.0
  %645 = vmatpush1.msra.mxu0 0.0
  %646 = vmatprep.subr.mxu0 0.0
  %647 = vmatpush1.msra.mxu0 0.0
  %648 = vmatprep.subr.mxu0 0.0
  %649 = vmatpush1.msra.mxu0 0.0
  %650 = vmatprep.subr.mxu0 0.0
  %651 = vmatpush1.msra.mxu0 0.0
  %652 = vmatprep.subr.mxu0 0.0
  %653 = vmatpush1.msra.mxu0 0.0
  %654 = vmatprep.subr.mxu0 0.0
  %655 = vmatpush1.msra.mxu0 0.0
  %656 = vmatprep.subr.mxu0 0.0
  %657 = vmatpush1.msra.mxu0 0.0
  %658 = vmatprep.subr.mxu0 0.0
  %659 = vmatpush1.msra.mxu0 0.0
  %660 = vmatprep.subr.mxu0 0.0
  %661 = vmatpush1.msra.mxu0 0.0
  %662 = vmatprep.subr.mxu0 0.0
  %663 = vmatpush1.msra.mxu0 0.0
  %664 = vmatprep.subr.mxu0 0.0
  %665 = vmatpush1.msra.mxu0 0.0
  %666 = vmatprep.subr.mxu0 0.0
  %667 = vmatpush1.msra.mxu0 0.0
  %668 = vmatprep.mubr.f32.mxu0 0.0
  %669 = vmatmul.mubr.f32.gmra.mrb[0].mxu0 %v581
  %v670 = vpop.f32.mrb[0].mxu0
  %v671 = vadd.f32 0.0, %v670
  %v672 = vpop.f32.mrb[0].mxu0
  %673 = vmatprep.mubr.f32.mxu0 0.0
  %674 = vmatmul.mubr.f32.gmra.mrb[0].mxu0 %v584
  %v675 = vpop.f32.mrb[0].mxu0
  %v676 = vadd.f32 0.0, %v675
  %v677 = vpop.f32.mrb[0].mxu0
  %678 = vmatprep.mubr.f32.mxu0 0.0
  %679 = vmatmul.mubr.f32.gmra.mrb[0].mxu0 %v587
  %v680 = vpop.f32.mrb[0].mxu0
  %v681 = vadd.f32 0.0, %v680
  %v682 = vpop.f32.mrb[0].mxu0
  %683 = vmatprep.mubr.f32.mxu0 0.0
  %684 = vmatmul.mubr.f32.gmra.mrb[0].mxu0 %v590
  %v685 = vpop.f32.mrb[0].mxu0
  %v686 = vadd.f32 0.0, %v685
  %v687 = vpop.f32.mrb[0].mxu0
  %688 = vmatprep.mubr.f32.mxu0 0.0
  %689 = vmatmul.mubr.f32.gmra.mrb[0].mxu0 %v593
  %v690 = vpop.f32.mrb[0].mxu0
  %v691 = vadd.f32 0.0, %v690
  %v692 = vpop.f32.mrb[0].mxu0
  %693 = vmatprep.mubr.f32.mxu0 0.0
  %694 = vmatmul.mubr.f32.gmra.mrb[0].mxu0 %v596
  %v695 = vpop.f32.mrb[0].mxu0
  %v696 = vadd.f32 0.0, %v695
  %v697 = vpop.f32.mrb[0].mxu0
  %698 = vmatprep.mubr.f32.mxu0 0.0
  %699 = vmatmul.mubr.f32.gmra.mrb[0].mxu0 %v599
  %v700 = vpop.f32.mrb[0].mxu0
  %v701 = vadd.f32 0.0, %v700
  %v702 = vpop.f32.mrb[0].mxu0
  %703 = vmatprep.mubr.f32.mxu0 0.0
  %704 = vmatmul.mubr.f32.gmra.mrb[0].mxu0 %v602
  %v705 = vpop.f32.mrb[0].mxu0
  %v706 = vadd.f32 0.0, %v705
  %v707 = vpop.f32.mrb[0].mxu0
  %708 = vdwg.mxu0
  %vm709 = vcmask 130048
  %v710 = vsel %vm709, %v671, -inf
  %711 = vmax.xlane.f32.xlu0 %v710
  %v712 = vpop.xlane.xlu0 %711
  %v713 = vsel %vm709, %v676, -inf
  %714 = vmax.xlane.f32.xlu0 %v713
  %v715 = vpop.xlane.xlu0 %714
  %v716 = vsel %vm709, %v681, -inf
  %717 = vmax.xlane.f32.xlu0 %v716
  %v718 = vpop.xlane.xlu0 %717
  %v719 = vsel %vm709, %v686, -inf
  %720 = vmax.xlane.f32.xlu0 %v719
  %v721 = vpop.xlane.xlu0 %720
  %v722 = vsel %vm709, %v691, -inf
  %723 = vmax.xlane.f32.xlu0 %v722
  %v724 = vpop.xlane.xlu0 %723
  %v725 = vsel %vm709, %v696, -inf
  %726 = vmax.xlane.f32.xlu0 %v725
  %v727 = vpop.xlane.xlu0 %726
  %v728 = vsel %vm709, %v701, -inf
  %729 = vmax.xlane.f32.xlu0 %v728
  %v730 = vpop.xlane.xlu0 %729
  %v731 = vsel %vm709, %v706, -inf
  %732 = vmax.xlane.f32.xlu0 %v731
  %v733 = vpop.xlane.xlu0 %732
  %v734 = vsub.f32 %v671, %v712
  %v735 = vsub.f32 %v676, %v715
  %v736 = vsub.f32 %v681, %v718
  %v737 = vsub.f32 %v686, %v721
  %v738 = vsub.f32 %v691, %v724
  %v739 = vsub.f32 %v696, %v727
  %v740 = vsub.f32 %v701, %v730
  %v741 = vsub.f32 %v706, %v733
  %v742 = vmul.f32 %v734, 1.442695
  %v743 = vpow.pop %v742
  %v744 = vmul.f32 %v735, 1.442695
  %v745 = vpow.pop %v744
  %v746 = vmul.f32 %v736, 1.442695
  %v747 = vpow.pop %v746
  %v748 = vmul.f32 %v737, 1.442695
  %v749 = vpow.pop %v748
  %v750 = vmul.f32 %v738, 1.442695
  %v751 = vpow.pop %v750
  %v752 = vmul.f32 %v739, 1.442695
  %v753 = vpow.pop %v752
  %v754 = vmul.f32 %v740, 1.442695
  %v755 = vpow.pop %v754
  %v756 = vmul.f32 %v741, 1.442695
  %v757 = vpow.pop %v756
  %v758 = vsel %vm709, %v743, 0.0
  %759 = vadd.xlane.f32.xlu0 %v758
  %v760 = vpop.xlane.xlu0 %759
  %v761 = vsel %vm709, %v745, 0.0
  %762 = vadd.xlane.f32.xlu0 %v761
  %v763 = vpop.xlane.xlu0 %762
  %v764 = vsel %vm709, %v747, 0.0
  %765 = vadd.xlane.f32.xlu0 %v764
  %v766 = vpop.xlane.xlu0 %765
  %v767 = vsel %vm709, %v749, 0.0
  %768 = vadd.xlane.f32.xlu0 %v767
  %v769 = vpop.xlane.xlu0 %768
  %v770 = vsel %vm709, %v751, 0.0
  %771 = vadd.xlane.f32.xlu0 %v770
  %v772 = vpop.xlane.xlu0 %771
  %v773 = vsel %vm709, %v753, 0.0
  %774 = vadd.xlane.f32.xlu0 %v773
  %v775 = vpop.xlane.xlu0 %774
  %v776 = vsel %vm709, %v755, 0.0
  %777 = vadd.xlane.f32.xlu0 %v776
  %v778 = vpop.xlane.xlu0 %777
  %v779 = vsel %vm709, %v757, 0.0
  %780 = vadd.xlane.f32.xlu0 %v779
  %v781 = vpop.xlane.xlu0 %780
  %v782 = vrcp.pop %v760
  %v783 = vmul.f32 %v743, %v782
  %v784 = vrcp.pop %v763
  %v785 = vmul.f32 %v745, %v784
  %v786 = vrcp.pop %v766
  %v787 = vmul.f32 %v747, %v786
  %v788 = vrcp.pop %v769
  %v789 = vmul.f32 %v749, %v788
  %v790 = vrcp.pop %v772
  %v791 = vmul.f32 %v751, %v790
  %v792 = vrcp.pop %v775
  %v793 = vmul.f32 %v753, %v792
  %v794 = vrcp.pop %v778
  %v795 = vmul.f32 %v755, %v794
  %v796 = vrcp.pop %v781
  %v797 = vmul.f32 %v757, %v796
  %v798 = vld [vmem:[%s7] sm:$0xff]
  %v799 = vld [vmem:[%s7 + $0x8] sm:$0xff]
  %v800 = vld [vmem:[%s7 + $0x10] sm:$0xff]
  %v801 = vld [vmem:[%s7 + $0x18] sm:$0xff]
  %v802 = vld [vmem:[%s8] sm:$0x1]
  %v804 = vlaneseq
  %v805 = vshrl.u32 %v804, 7
  %v806 = vsub.s32 0, %v805
  %v807 = vrot.slane %v802, %v806
  %v810 = vsel %vm579, %v567, 0
  %v813 = vsel %vm579, %v568, 0
  %v816 = vsel %vm579, %v569, 0
  %v819 = vsel %vm579, %v570, 0
  %v822 = vsel %vm579, %v571, 0
  %v825 = vsel %vm579, %v572, 0
  %v828 = vsel %vm579, %v573, 0
  %v831 = vsel %vm579, %v574, 0
  %833 = vmatprep.subr.mxu0 0.0
  %834 = vmatpush1.msra.mxu0 %v798
  %835 = vmatprep.subr.mxu0 0.0
  %836 = vmatpush1.msra.mxu0 %v799
  %837 = vmatprep.subr.mxu0 0.0
  %838 = vmatpush1.msra.mxu0 %v800
  %839 = vmatprep.subr.mxu0 0.0
  %840 = vmatpush1.msra.mxu0 %v801
  %841 = vmatprep.subr.mxu0 0.0
  %842 = vmatpush1.msra.mxu0 0.0
  %843 = vmatprep.subr.mxu0 0.0
  %844 = vmatpush1.msra.mxu0 0.0
  %845 = vmatprep.subr.mxu0 0.0
  %846 = vmatpush1.msra.mxu0 0.0
  %847 = vmatprep.subr.mxu0 0.0
  %848 = vmatpush1.msra.mxu0 0.0
  %849 = vmatprep.subr.mxu0 0.0
  %850 = vmatpush1.msra.mxu0 0.0
  %851 = vmatprep.subr.mxu0 0.0
  %852 = vmatpush1.msra.mxu0 0.0
  %853 = vmatprep.subr.mxu0 0.0
  %854 = vmatpush1.msra.mxu0 0.0
  %855 = vmatprep.subr.mxu0 0.0
  %856 = vmatpush1.msra.mxu0 0.0
  %857 = vmatprep.subr.mxu0 0.0
  %858 = vmatpush1.msra.mxu0 0.0
  %859 = vmatprep.subr.mxu0 0.0
  %860 = vmatpush1.msra.mxu0 0.0
  %861 = vmatprep.subr.mxu0 0.0
  %862 = vmatpush1.msra.mxu0 0.0
  %863 = vmatprep.subr.mxu0 0.0
  %864 = vmatpush1.msra.mxu0 0.0
  %865 = vmatprep.subr.mxu0 0.0
  %866 = vmatpush1.msra.mxu0 0.0
  %867 = vmatprep.subr.mxu0 0.0
  %868 = vmatpush1.msra.mxu0 0.0
  %869 = vmatprep.subr.mxu0 0.0
  %870 = vmatpush1.msra.mxu0 0.0
  %871 = vmatprep.subr.mxu0 0.0
  %872 = vmatpush1.msra.mxu0 0.0
  %873 = vmatprep.subr.mxu0 0.0
  %874 = vmatpush1.msra.mxu0 0.0
  %875 = vmatprep.subr.mxu0 0.0
  %876 = vmatpush1.msra.mxu0 0.0
  %877 = vmatprep.subr.mxu0 0.0
  %878 = vmatpush1.msra.mxu0 0.0
  %879 = vmatprep.subr.mxu0 0.0
  %880 = vmatpush1.msra.mxu0 0.0
  %881 = vmatprep.subr.mxu0 0.0
  %882 = vmatpush1.msra.mxu0 0.0
  %883 = vmatprep.subr.mxu0 0.0
  %884 = vmatpush1.msra.mxu0 0.0
  %885 = vmatprep.subr.mxu0 0.0
  %886 = vmatpush1.msra.mxu0 0.0
  %887 = vmatprep.subr.mxu0 0.0
  %888 = vmatpush1.msra.mxu0 0.0
  %889 = vmatprep.subr.mxu0 0.0
  %890 = vmatpush1.msra.mxu0 0.0
  %891 = vmatprep.subr.mxu0 0.0
  %892 = vmatpush1.msra.mxu0 0.0
  %893 = vmatprep.subr.mxu0 0.0
  %894 = vmatpush1.msra.mxu0 0.0
  %895 = vmatprep.subr.mxu0 0.0
  %896 = vmatpush1.msra.mxu0 0.0
  %897 = vmatprep.mubr.f32.mxu0 0.0
  %898 = vmatmul.mubr.f32.gmra.mrb[0].mxu0 %v810
  %v899 = vpop.f32.mrb[0].mxu0
  %v900 = vadd.f32 %v807, %v899
  %v901 = vpop.f32.mrb[0].mxu0
  %902 = vmatprep.mubr.f32.mxu0 0.0
  %903 = vmatmul.mubr.f32.gmra.mrb[0].mxu0 %v813
  %v904 = vpop.f32.mrb[0].mxu0
  %v905 = vadd.f32 %v807, %v904
  %v906 = vpop.f32.mrb[0].mxu0
  %907 = vmatprep.mubr.f32.mxu0 0.0
  %908 = vmatmul.mubr.f32.gmra.mrb[0].mxu0 %v816
  %v909 = vpop.f32.mrb[0].mxu0
  %v910 = vadd.f32 %v807, %v909
  %v911 = vpop.f32.mrb[0].mxu0
  %912 = vmatprep.mubr.f32.mxu0 0.0
  %913 = vmatmul.mubr.f32.gmra.mrb[0].mxu0 %v819
  %v914 = vpop.f32.mrb[0].mxu0
  %v915 = vadd.f32 %v807, %v914
  %v916 = vpop.f32.mrb[0].mxu0
  %917 = vmatprep.mubr.f32.mxu0 0.0
  %918 = vmatmul.mubr.f32.gmra.mrb[0].mxu0 %v822
  %v919 = vpop.f32.mrb[0].mxu0
  %v920 = vadd.f32 %v807, %v919
  %v921 = vpop.f32.mrb[0].mxu0
  %922 = vmatprep.mubr.f32.mxu0 0.0
  %923 = vmatmul.mubr.f32.gmra.mrb[0].mxu0 %v825
  %v924 = vpop.f32.mrb[0].mxu0
  %v925 = vadd.f32 %v807, %v924
  %v926 = vpop.f32.mrb[0].mxu0
  %927 = vmatprep.mubr.f32.mxu0 0.0
  %928 = vmatmul.mubr.f32.gmra.mrb[0].mxu0 %v828
  %v929 = vpop.f32.mrb[0].mxu0
  %v930 = vadd.f32 %v807, %v929
  %v931 = vpop.f32.mrb[0].mxu0
  %932 = vmatprep.mubr.f32.mxu0 0.0
  %933 = vmatmul.mubr.f32.gmra.mrb[0].mxu0 %v831
  %v934 = vpop.f32.mrb[0].mxu0
  %v935 = vadd.f32 %v807, %v934
  %v936 = vpop.f32.mrb[0].mxu0
  %937 = vdwg.mxu0
  %v938 = vxor.u32 %v900, 2147483648
  %v939 = vxor.u32 %v905, 2147483648
  %v940 = vxor.u32 %v910, 2147483648
  %v941 = vxor.u32 %v915, 2147483648
  %v942 = vxor.u32 %v920, 2147483648
  %v943 = vxor.u32 %v925, 2147483648
  %v944 = vxor.u32 %v930, 2147483648
  %v945 = vxor.u32 %v935, 2147483648
  %v946 = vmul.f32 %v938, 1.442695
  %v947 = vpow.pop %v946
  %v948 = vmul.f32 %v939, 1.442695
  %v949 = vpow.pop %v948
  %v950 = vmul.f32 %v940, 1.442695
  %v951 = vpow.pop %v950
  %v952 = vmul.f32 %v941, 1.442695
  %v953 = vpow.pop %v952
  %v954 = vmul.f32 %v942, 1.442695
  %v955 = vpow.pop %v954
  %v956 = vmul.f32 %v943, 1.442695
  %v957 = vpow.pop %v956
  %v958 = vmul.f32 %v944, 1.442695
  %v959 = vpow.pop %v958
  %v960 = vmul.f32 %v945, 1.442695
  %v961 = vpow.pop %v960
  %v962 = vadd.f32 %v947, 1.0
  %v963 = vadd.f32 %v949, 1.0
  %v964 = vadd.f32 %v951, 1.0
  %v965 = vadd.f32 %v953, 1.0
  %v966 = vadd.f32 %v955, 1.0
  %v967 = vadd.f32 %v957, 1.0
  %v968 = vadd.f32 %v959, 1.0
  %v969 = vadd.f32 %v961, 1.0
  %v970 = vrcp.pop %v962
  %v971 = vmul.f32 1.0, %v970
  %v972 = vrcp.pop %v963
  %v973 = vmul.f32 1.0, %v972
  %v974 = vrcp.pop %v964
  %v975 = vmul.f32 1.0, %v974
  %v976 = vrcp.pop %v965
  %v977 = vmul.f32 1.0, %v976
  %v978 = vrcp.pop %v966
  %v979 = vmul.f32 1.0, %v978
  %v980 = vrcp.pop %v967
  %v981 = vmul.f32 1.0, %v980
  %v982 = vrcp.pop %v968
  %v983 = vmul.f32 1.0, %v982
  %v984 = vrcp.pop %v969
  %v985 = vmul.f32 1.0, %v984
  %v986 = vld [vmem:[%s9] sm:$0xff]
  %v987 = vld [vmem:[%s9 + $0x8] sm:$0xff]
  %v988 = vld [vmem:[%s9 + $0x10] sm:$0xff]
  %v989 = vld [vmem:[%s9 + $0x18] sm:$0xff]
  %v990 = vld [vmem:[%s10] sm:$0x1]
  %v992 = vlaneseq
  %v993 = vshrl.u32 %v992, 7
  %v994 = vsub.s32 0, %v993
  %v995 = vrot.slane %v990, %v994
  %997 = vmatprep.subr.mxu0 0.0
  %998 = vmatpush1.msra.mxu0 %v986
  %999 = vmatprep.subr.mxu0 0.0
  %1000 = vmatpush1.msra.mxu0 %v987
  %1001 = vmatprep.subr.mxu0 0.0
  %1002 = vmatpush1.msra.mxu0 %v988
  %1003 = vmatprep.subr.mxu0 0.0
  %1004 = vmatpush1.msra.mxu0 %v989
  %1005 = vmatprep.subr.mxu0 0.0
  %1006 = vmatpush1.msra.mxu0 0.0
  %1007 = vmatprep.subr.mxu0 0.0
  %1008 = vmatpush1.msra.mxu0 0.0
  %1009 = vmatprep.subr.mxu0 0.0
  %1010 = vmatpush1.msra.mxu0 0.0
  %1011 = vmatprep.subr.mxu0 0.0
  %1012 = vmatpush1.msra.mxu0 0.0
  %1013 = vmatprep.subr.mxu0 0.0
  %1014 = vmatpush1.msra.mxu0 0.0
  %1015 = vmatprep.subr.mxu0 0.0
  %1016 = vmatpush1.msra.mxu0 0.0
  %1017 = vmatprep.subr.mxu0 0.0
  %1018 = vmatpush1.msra.mxu0 0.0
  %1019 = vmatprep.subr.mxu0 0.0
  %1020 = vmatpush1.msra.mxu0 0.0
  %1021 = vmatprep.subr.mxu0 0.0
  %1022 = vmatpush1.msra.mxu0 0.0
  %1023 = vmatprep.subr.mxu0 0.0
  %1024 = vmatpush1.msra.mxu0 0.0
  %1025 = vmatprep.subr.mxu0 0.0
  %1026 = vmatpush1.msra.mxu0 0.0
  %1027 = vmatprep.subr.mxu0 0.0
  %1028 = vmatpush1.msra.mxu0 0.0
  %1029 = vmatprep.subr.mxu0 0.0
  %1030 = vmatpush1.msra.mxu0 0.0
  %1031 = vmatprep.subr.mxu0 0.0
  %1032 = vmatpush1.msra.mxu0 0.0
  %1033 = vmatprep.subr.mxu0 0.0
  %1034 = vmatpush1.msra.mxu0 0.0
  %1035 = vmatprep.subr.mxu0 0.0
  %1036 = vmatpush1.msra.mxu0 0.0
  %1037 = vmatprep.subr.mxu0 0.0
  %1038 = vmatpush1.msra.mxu0 0.0
  %1039 = vmatprep.subr.mxu0 0.0
  %1040 = vmatpush1.msra.mxu0 0.0
  %1041 = vmatprep.subr.mxu0 0.0
  %1042 = vmatpush1.msra.mxu0 0.0
  %1043 = vmatprep.subr.mxu0 0.0
  %1044 = vmatpush1.msra.mxu0 0.0
  %1045 = vmatprep.subr.mxu0 0.0
  %1046 = vmatpush1.msra.mxu0 0.0
  %1047 = vmatprep.subr.mxu0 0.0
  %1048 = vmatpush1.msra.mxu0 0.0
  %1049 = vmatprep.subr.mxu0 0.0
  %1050 = vmatpush1.msra.mxu0 0.0
  %1051 = vmatprep.subr.mxu0 0.0
  %1052 = vmatpush1.msra.mxu0 0.0
  %1053 = vmatprep.subr.mxu0 0.0
  %1054 = vmatpush1.msra.mxu0 0.0
  %1055 = vmatprep.subr.mxu0 0.0
  %1056 = vmatpush1.msra.mxu0 0.0
  %1057 = vmatprep.subr.mxu0 0.0
  %1058 = vmatpush1.msra.mxu0 0.0
  %1059 = vmatprep.subr.mxu0 0.0
  %1060 = vmatpush1.msra.mxu0 0.0
  %1061 = vmatprep.mubr.f32.mxu0 0.0
  %1062 = vmatmul.mubr.f32.gmra.mrb[0].mxu0 %v810
  %v1063 = vpop.f32.mrb[0].mxu0
  %v1064 = vadd.f32 %v995, %v1063
  %v1065 = vpop.f32.mrb[0].mxu0
  %1066 = vmatprep.mubr.f32.mxu0 0.0
  %1067 = vmatmul.mubr.f32.gmra.mrb[0].mxu0 %v813
  %v1068 = vpop.f32.mrb[0].mxu0
  %v1069 = vadd.f32 %v995, %v1068
  %v1070 = vpop.f32.mrb[0].mxu0
  %1071 = vmatprep.mubr.f32.mxu0 0.0
  %1072 = vmatmul.mubr.f32.gmra.mrb[0].mxu0 %v816
  %v1073 = vpop.f32.mrb[0].mxu0
  %v1074 = vadd.f32 %v995, %v1073
  %v1075 = vpop.f32.mrb[0].mxu0
  %1076 = vmatprep.mubr.f32.mxu0 0.0
  %1077 = vmatmul.mubr.f32.gmra.mrb[0].mxu0 %v819
  %v1078 = vpop.f32.mrb[0].mxu0
  %v1079 = vadd.f32 %v995, %v1078
  %v1080 = vpop.f32.mrb[0].mxu0
  %1081 = vmatprep.mubr.f32.mxu0 0.0
  %1082 = vmatmul.mubr.f32.gmra.mrb[0].mxu0 %v822
  %v1083 = vpop.f32.mrb[0].mxu0
  %v1084 = vadd.f32 %v995, %v1083
  %v1085 = vpop.f32.mrb[0].mxu0
  %1086 = vmatprep.mubr.f32.mxu0 0.0
  %1087 = vmatmul.mubr.f32.gmra.mrb[0].mxu0 %v825
  %v1088 = vpop.f32.mrb[0].mxu0
  %v1089 = vadd.f32 %v995, %v1088
  %v1090 = vpop.f32.mrb[0].mxu0
  %1091 = vmatprep.mubr.f32.mxu0 0.0
  %1092 = vmatmul.mubr.f32.gmra.mrb[0].mxu0 %v828
  %v1093 = vpop.f32.mrb[0].mxu0
  %v1094 = vadd.f32 %v995, %v1093
  %v1095 = vpop.f32.mrb[0].mxu0
  %1096 = vmatprep.mubr.f32.mxu0 0.0
  %1097 = vmatmul.mubr.f32.gmra.mrb[0].mxu0 %v831
  %v1098 = vpop.f32.mrb[0].mxu0
  %v1099 = vadd.f32 %v995, %v1098
  %v1100 = vpop.f32.mrb[0].mxu0
  %1101 = vdwg.mxu0
  %v1102 = vtanh.pop %v1064
  %v1103 = vtanh.pop %v1069
  %v1104 = vtanh.pop %v1074
  %v1105 = vtanh.pop %v1079
  %v1106 = vtanh.pop %v1084
  %v1107 = vtanh.pop %v1089
  %v1108 = vtanh.pop %v1094
  %v1109 = vtanh.pop %v1099
  %1110 = vst.msk [vmem:[#allocation5] sm:$0xff] %vm579, %v184
  %1111 = vst.msk [vmem:[#allocation5 + $0x8] sm:$0xff] %vm579, %v189
  %1112 = vst.msk [vmem:[#allocation5 + $0x10] sm:$0xff] %vm579, %v194
  %1113 = vst.msk [vmem:[#allocation5 + $0x18] sm:$0xff] %vm579, %v199
  %1114 = vst.msk [vmem:[#allocation5 + $0x20] sm:$0xff] %vm579, %v204
  %1115 = vst.msk [vmem:[#allocation5 + $0x28] sm:$0xff] %vm579, %v209
  %1116 = vst.msk [vmem:[#allocation5 + $0x30] sm:$0xff] %vm579, %v214
  %1117 = vst.msk [vmem:[#allocation5 + $0x38] sm:$0xff] %vm579, %v219
  %1118 = vst.msk [vmem:[#allocation2] sm:$0xff] %vm709, %v783
  %1119 = vst.msk [vmem:[#allocation2 + $0x8] sm:$0xff] %vm709, %v785
  %1120 = vst.msk [vmem:[#allocation2 + $0x10] sm:$0xff] %vm709, %v787
  %1121 = vst.msk [vmem:[#allocation2 + $0x18] sm:$0xff] %vm709, %v789
  %1122 = vst.msk [vmem:[#allocation2 + $0x20] sm:$0xff] %vm709, %v791
  %1123 = vst.msk [vmem:[#allocation2 + $0x28] sm:$0xff] %vm709, %v793
  %1124 = vst.msk [vmem:[#allocation2 + $0x30] sm:$0xff] %vm709, %v795
  %1125 = vst.msk [vmem:[#allocation2 + $0x38] sm:$0xff] %vm709, %v797
  %1126 = vst.msk [vmem:[#allocation3] sm:$0xff] %vm579, %v971
  %1127 = vst.msk [vmem:[#allocation3 + $0x8] sm:$0xff] %vm579, %v973
  %1128 = vst.msk [vmem:[#allocation3 + $0x10] sm:$0xff] %vm579, %v975
  %1129 = vst.msk [vmem:[#allocation3 + $0x18] sm:$0xff] %vm579, %v977
  %1130 = vst.msk [vmem:[#allocation3 + $0x20] sm:$0xff] %vm579, %v979
  %1131 = vst.msk [vmem:[#allocation3 + $0x28] sm:$0xff] %vm579, %v981
  %1132 = vst.msk [vmem:[#allocation3 + $0x30] sm:$0xff] %vm579, %v983
  %1133 = vst.msk [vmem:[#allocation3 + $0x38] sm:$0xff] %vm579, %v985
  %1134 = vst.msk [vmem:[#allocation4] sm:$0xff] %vm579, %v1102
  %1135 = vst.msk [vmem:[#allocation4 + $0x8] sm:$0xff] %vm579, %v1103
  %1136 = vst.msk [vmem:[#allocation4 + $0x10] sm:$0xff] %vm579, %v1104
  %1137 = vst.msk [vmem:[#allocation4 + $0x18] sm:$0xff] %vm579, %v1105
  %1138 = vst.msk [vmem:[#allocation4 + $0x20] sm:$0xff] %vm579, %v1106
  %1139 = vst.msk [vmem:[#allocation4 + $0x28] sm:$0xff] %vm579, %v1107
  %1140 = vst.msk [vmem:[#allocation4 + $0x30] sm:$0xff] %vm579, %v1108
  %1141 = vst.msk [vmem:[#allocation4 + $0x38] sm:$0xff] %vm579, %v1109
  %v1142 = vld [vmem:[%s17] sm:$0xff]
  %v1143 = vld [vmem:[%s17 + $0x8] sm:$0xff]
  %v1144 = vld [vmem:[#allocation2] sm:$0xff]
  %v1145 = vld [vmem:[#allocation3] sm:$0xff]
  %v1146 = vld [vmem:[#allocation4] sm:$0xff]
  %v1147 = vlaneseq
  %v1148 = vshrl.u32 %v1147, 7
  %v1149 = vsub.s32 0, %v1148
  %v1150 = vrot.slane %v1144, %v1149
  %1152 = vbcast.lane.b32.xlu0 %v1150, 256
  %v1153 = vpop.permute.xlu0 %1152
  %s1155 = sor.u32 256, 8
  %1156 = vbcast.lane.b32.xlu0 %v1150, %s1155
  %v1157 = vpop.permute.xlu0 %1156
  %v1158 = vlaneseq
  %v1159 = vshrl.u32 %v1158, 7
  %v1160 = vsub.s32 1, %v1159
  %v1161 = vrot.slane %v1144, %v1160
  %1163 = vbcast.lane.b32.xlu0 %v1161, 256
  %v1164 = vpop.permute.xlu0 %1163
  %s1166 = sor.u32 256, 8
  %1167 = vbcast.lane.b32.xlu0 %v1161, %s1166
  %v1168 = vpop.permute.xlu0 %1167
  %v1169 = vlaneseq
  %v1170 = vshrl.u32 %v1169, 7
  %v1171 = vsub.s32 2, %v1170
  %v1172 = vrot.slane %v1144, %v1171
  %1174 = vbcast.lane.b32.xlu0 %v1172, 256
  %v1175 = vpop.permute.xlu0 %1174
  %s1177 = sor.u32 256, 8
  %1178 = vbcast.lane.b32.xlu0 %v1172, %s1177
  %v1179 = vpop.permute.xlu0 %1178
  %v1180 = vlaneseq
  %v1181 = vshrl.u32 %v1180, 7
  %v1182 = vsub.s32 3, %v1181
  %v1183 = vrot.slane %v1144, %v1182
  %1185 = vbcast.lane.b32.xlu0 %v1183, 256
  %v1186 = vpop.permute.xlu0 %1185
  %s1188 = sor.u32 256, 8
  %1189 = vbcast.lane.b32.xlu0 %v1183, %s1188
  %v1190 = vpop.permute.xlu0 %1189
  %v1191 = vlaneseq
  %v1192 = vshrl.u32 %v1191, 7
  %v1193 = vsub.s32 4, %v1192
  %v1194 = vrot.slane %v1144, %v1193
  %1196 = vbcast.lane.b32.xlu0 %v1194, 256
  %v1197 = vpop.permute.xlu0 %1196
  %s1199 = sor.u32 256, 8
  %1200 = vbcast.lane.b32.xlu0 %v1194, %s1199
  %v1201 = vpop.permute.xlu0 %1200
  %v1202 = vlaneseq
  %v1203 = vshrl.u32 %v1202, 7
  %v1204 = vsub.s32 5, %v1203
  %v1205 = vrot.slane %v1144, %v1204
  %1207 = vbcast.lane.b32.xlu0 %v1205, 256
  %v1208 = vpop.permute.xlu0 %1207
  %s1210 = sor.u32 256, 8
  %1211 = vbcast.lane.b32.xlu0 %v1205, %s1210
  %v1212 = vpop.permute.xlu0 %1211
  %v1213 = vlaneseq
  %v1214 = vshrl.u32 %v1213, 7
  %v1215 = vsub.s32 6, %v1214
  %v1216 = vrot.slane %v1144, %v1215
  %1218 = vbcast.lane.b32.xlu0 %v1216, 256
  %v1219 = vpop.permute.xlu0 %1218
  %s1221 = sor.u32 256, 8
  %1222 = vbcast.lane.b32.xlu0 %v1216, %s1221
  %v1223 = vpop.permute.xlu0 %1222
  %v1224 = vlaneseq
  %v1225 = vshrl.u32 %v1224, 7
  %v1226 = vsub.s32 7, %v1225
  %v1227 = vrot.slane %v1144, %v1226
  %1229 = vbcast.lane.b32.xlu0 %v1227, 256
  %v1230 = vpop.permute.xlu0 %1229
  %s1232 = sor.u32 256, 8
  %1233 = vbcast.lane.b32.xlu0 %v1227, %s1232
  %v1234 = vpop.permute.xlu0 %1233
  %v1235 = vmul.f32 %v1153, %v1142
  %v1236 = vmul.f32 %v1157, %v1143
  %v1237 = vmul.f32 %v1164, %v1142
  %v1238 = vmul.f32 %v1168, %v1143
  %v1239 = vmul.f32 %v1175, %v1142
  %v1240 = vmul.f32 %v1179, %v1143
  %v1241 = vmul.f32 %v1186, %v1142
  %v1242 = vmul.f32 %v1190, %v1143
  %v1243 = vmul.f32 %v1197, %v1142
  %v1244 = vmul.f32 %v1201, %v1143
  %v1245 = vmul.f32 %v1208, %v1142
  %v1246 = vmul.f32 %v1212, %v1143
  %v1247 = vmul.f32 %v1219, %v1142
  %v1248 = vmul.f32 %v1223, %v1143
  %v1249 = vmul.f32 %v1230, %v1142
  %v1250 = vmul.f32 %v1234, %v1143
  %v1251 = vsel %vm579, %v1235, 0.0
  %v1252 = vsel %vm579, %v1236, 0.0
  %v1253 = vadd.f32 %v1251, %v1252
  %v1254 = vrot.slane %v1253, 4
  %v1255 = vadd.f32 %v1253, %v1254
  %v1256 = vrot.slane %v1255, 2
  %v1257 = vadd.f32 %v1255, %v1256
  %v1258 = vrot.slane %v1257, 1
  %v1259 = vadd.f32 %v1257, %v1258
  %v1260 = vsel %vm579, %v1237, 0.0
  %v1261 = vsel %vm579, %v1238, 0.0
  %v1262 = vadd.f32 %v1260, %v1261
  %v1263 = vrot.slane %v1262, 4
  %v1264 = vadd.f32 %v1262, %v1263
  %v1265 = vrot.slane %v1264, 2
  %v1266 = vadd.f32 %v1264, %v1265
  %v1267 = vrot.slane %v1266, 1
  %v1268 = vadd.f32 %v1266, %v1267
  %v1269 = vsel %vm579, %v1239, 0.0
  %v1270 = vsel %vm579, %v1240, 0.0
  %v1271 = vadd.f32 %v1269, %v1270
  %v1272 = vrot.slane %v1271, 4
  %v1273 = vadd.f32 %v1271, %v1272
  %v1274 = vrot.slane %v1273, 2
  %v1275 = vadd.f32 %v1273, %v1274
  %v1276 = vrot.slane %v1275, 1
  %v1277 = vadd.f32 %v1275, %v1276
  %v1278 = vsel %vm579, %v1241, 0.0
  %v1279 = vsel %vm579, %v1242, 0.0
  %v1280 = vadd.f32 %v1278, %v1279
  %v1281 = vrot.slane %v1280, 4
  %v1282 = vadd.f32 %v1280, %v1281
  %v1283 = vrot.slane %v1282, 2
  %v1284 = vadd.f32 %v1282, %v1283
  %v1285 = vrot.slane %v1284, 1
  %v1286 = vadd.f32 %v1284, %v1285
  %v1287 = vsel %vm579, %v1243, 0.0
  %v1288 = vsel %vm579, %v1244, 0.0
  %v1289 = vadd.f32 %v1287, %v1288
  %v1290 = vrot.slane %v1289, 4
  %v1291 = vadd.f32 %v1289, %v1290
  %v1292 = vrot.slane %v1291, 2
  %v1293 = vadd.f32 %v1291, %v1292
  %v1294 = vrot.slane %v1293, 1
  %v1295 = vadd.f32 %v1293, %v1294
  %v1296 = vsel %vm579, %v1245, 0.0
  %v1297 = vsel %vm579, %v1246, 0.0
  %v1298 = vadd.f32 %v1296, %v1297
  %v1299 = vrot.slane %v1298, 4
  %v1300 = vadd.f32 %v1298, %v1299
  %v1301 = vrot.slane %v1300, 2
  %v1302 = vadd.f32 %v1300, %v1301
  %v1303 = vrot.slane %v1302, 1
  %v1304 = vadd.f32 %v1302, %v1303
  %v1305 = vsel %vm579, %v1247, 0.0
  %v1306 = vsel %vm579, %v1248, 0.0
  %v1307 = vadd.f32 %v1305, %v1306
  %v1308 = vrot.slane %v1307, 4
  %v1309 = vadd.f32 %v1307, %v1308
  %v1310 = vrot.slane %v1309, 2
  %v1311 = vadd.f32 %v1309, %v1310
  %v1312 = vrot.slane %v1311, 1
  %v1313 = vadd.f32 %v1311, %v1312
  %v1314 = vsel %vm579, %v1249, 0.0
  %v1315 = vsel %vm579, %v1250, 0.0
  %v1316 = vadd.f32 %v1314, %v1315
  %v1317 = vrot.slane %v1316, 4
  %v1318 = vadd.f32 %v1316, %v1317
  %v1319 = vrot.slane %v1318, 2
  %v1320 = vadd.f32 %v1318, %v1319
  %v1321 = vrot.slane %v1320, 1
  %v1322 = vadd.f32 %v1320, %v1321
  %vm1331 = vcmask 1041409
  %v1332 = vsel %vm1331, %v1268, %v1259
  %vm1333 = vcmask 1042434
  %v1334 = vsel %vm1333, %v1277, %v1332
  %vm1335 = vcmask 1043459
  %v1336 = vsel %vm1335, %v1286, %v1334
  %vm1337 = vcmask 1044484
  %v1338 = vsel %vm1337, %v1295, %v1336
  %vm1339 = vcmask 1045509
  %v1340 = vsel %vm1339, %v1304, %v1338
  %vm1341 = vcmask 1046534
  %v1342 = vsel %vm1341, %v1313, %v1340
  %vm1343 = vcmask 1047559
  %v1344 = vsel %vm1343, %v1322, %v1342
  %1346 = vst.msk [vmem:[#allocation6] sm:$0xff] %vm579, %v1344
  %v1348 = vcombine.high %v1145, %v1145
  %v1350 = vunpack.c.l.s4 1966171168
  %v1351 = vunpack.c.0.s8 %v1350
  %v1352 = vlaneseq
  %v1353 = vshrl.u32 %v1352, 7
  %v1354 = vsub.s32 %v1351, %v1353
  %v1355 = vrot.slane %v1145, %v1354
  %v1357 = vunpack.c.l.s4 1966171168
  %v1358 = vunpack.c.0.s8 %v1357
  %v1359 = vlaneseq
  %v1360 = vshrl.u32 %v1359, 7
  %v1361 = vsub.s32 %v1358, %v1360
  %v1362 = vrot.slane %v1348, %v1361
  %v1363 = vcombine.high %v1355, %v1355
  %v1364 = vcombine.high %v1362, %v1362
  %v1366 = vunpack.c.l.s4 1966171168
  %v1367 = vunpack.c.0.s8 %v1366
  %v1368 = vlaneseq
  %v1369 = vshrl.u32 %v1368, 7
  %v1370 = vsub.s32 %v1367, %v1369
  %v1371 = vrot.slane %v1355, %v1370
  %v1373 = vunpack.c.l.s4 1966171168
  %v1374 = vunpack.c.0.s8 %v1373
  %v1375 = vlaneseq
  %v1376 = vshrl.u32 %v1375, 7
  %v1377 = vsub.s32 %v1374, %v1376
  %v1378 = vrot.slane %v1362, %v1377
  %v1380 = vunpack.c.l.s4 1966171168
  %v1381 = vunpack.c.0.s8 %v1380
  %v1382 = vlaneseq
  %v1383 = vshrl.u32 %v1382, 7
  %v1384 = vsub.s32 %v1381, %v1383
  %v1385 = vrot.slane %v1363, %v1384
  %v1387 = vunpack.c.l.s4 1966171168
  %v1388 = vunpack.c.0.s8 %v1387
  %v1389 = vlaneseq
  %v1390 = vshrl.u32 %v1389, 7
  %v1391 = vsub.s32 %v1388, %v1390
  %v1392 = vrot.slane %v1364, %v1391
  %v1393 = vcombine.high %v1371, %v1371
  %v1394 = vcombine.high %v1378, %v1378
  %v1395 = vcombine.high %v1385, %v1385
  %v1396 = vcombine.high %v1392, %v1392
  %v1397 = vlaneseq
  %v1398 = vshrl.u32 %v1397, 7
  %v1399 = vsub.s32 0, %v1398
  %v1400 = vrot.slane %v1371, %v1399
  %v1401 = vlaneseq
  %v1402 = vshrl.u32 %v1401, 7
  %v1403 = vsub.s32 0, %v1402
  %v1404 = vrot.slane %v1385, %v1403
  %v1405 = vlaneseq
  %v1406 = vshrl.u32 %v1405, 7
  %v1407 = vsub.s32 0, %v1406
  %v1408 = vrot.slane %v1393, %v1407
  %v1409 = vlaneseq
  %v1410 = vshrl.u32 %v1409, 7
  %v1411 = vsub.s32 0, %v1410
  %v1412 = vrot.slane %v1395, %v1411
  %v1413 = vlaneseq
  %v1414 = vshrl.u32 %v1413, 7
  %v1415 = vsub.s32 0, %v1414
  %v1416 = vrot.slane %v1378, %v1415
  %v1417 = vlaneseq
  %v1418 = vshrl.u32 %v1417, 7
  %v1419 = vsub.s32 0, %v1418
  %v1420 = vrot.slane %v1392, %v1419
  %v1421 = vlaneseq
  %v1422 = vshrl.u32 %v1421, 7
  %v1423 = vsub.s32 0, %v1422
  %v1424 = vrot.slane %v1394, %v1423
  %v1425 = vlaneseq
  %v1426 = vshrl.u32 %v1425, 7
  %v1427 = vsub.s32 0, %v1426
  %v1428 = vrot.slane %v1396, %v1427
  %v1437 = vmul.f32 %v1153, %v1400
  %v1438 = vmul.f32 %v1157, %v1400
  %v1439 = vmul.f32 %v1164, %v1404
  %v1440 = vmul.f32 %v1168, %v1404
  %v1441 = vmul.f32 %v1175, %v1408
  %v1442 = vmul.f32 %v1179, %v1408
  %v1443 = vmul.f32 %v1186, %v1412
  %v1444 = vmul.f32 %v1190, %v1412
  %v1445 = vmul.f32 %v1197, %v1416
  %v1446 = vmul.f32 %v1201, %v1416
  %v1447 = vmul.f32 %v1208, %v1420
  %v1448 = vmul.f32 %v1212, %v1420
  %v1449 = vmul.f32 %v1219, %v1424
  %v1450 = vmul.f32 %v1223, %v1424
  %v1451 = vmul.f32 %v1230, %v1428
  %v1452 = vmul.f32 %v1234, %v1428
  %v1453 = vsub.f32 1.0, %v1437
  %v1454 = vsub.f32 1.0, %v1438
  %v1455 = vsub.f32 1.0, %v1439
  %v1456 = vsub.f32 1.0, %v1440
  %v1457 = vsub.f32 1.0, %v1441
  %v1458 = vsub.f32 1.0, %v1442
  %v1459 = vsub.f32 1.0, %v1443
  %v1460 = vsub.f32 1.0, %v1444
  %v1461 = vsub.f32 1.0, %v1445
  %v1462 = vsub.f32 1.0, %v1446
  %v1463 = vsub.f32 1.0, %v1447
  %v1464 = vsub.f32 1.0, %v1448
  %v1465 = vsub.f32 1.0, %v1449
  %v1466 = vsub.f32 1.0, %v1450
  %v1467 = vsub.f32 1.0, %v1451
  %v1468 = vsub.f32 1.0, %v1452
  %v1469 = vmul.f32 %v1142, %v1453
  %v1470 = vmul.f32 %v1143, %v1454
  %v1471 = vmul.f32 %v1142, %v1455
  %v1472 = vmul.f32 %v1143, %v1456
  %v1473 = vmul.f32 %v1142, %v1457
  %v1474 = vmul.f32 %v1143, %v1458
  %v1475 = vmul.f32 %v1142, %v1459
  %v1476 = vmul.f32 %v1143, %v1460
  %v1477 = vmul.f32 %v1142, %v1461
  %v1478 = vmul.f32 %v1143, %v1462
  %v1479 = vmul.f32 %v1142, %v1463
  %v1480 = vmul.f32 %v1143, %v1464
  %v1481 = vmul.f32 %v1142, %v1465
  %v1482 = vmul.f32 %v1143, %v1466
  %v1483 = vmul.f32 %v1142, %v1467
  %v1484 = vmul.f32 %v1143, %v1468
  %v1486 = vcombine.high %v1146, %v1146
  %v1488 = vunpack.c.l.s4 1966171168
  %v1489 = vunpack.c.0.s8 %v1488
  %v1490 = vlaneseq
  %v1491 = vshrl.u32 %v1490, 7
  %v1492 = vsub.s32 %v1489, %v1491
  %v1493 = vrot.slane %v1146, %v1492
  %v1495 = vunpack.c.l.s4 1966171168
  %v1496 = vunpack.c.0.s8 %v1495
  %v1497 = vlaneseq
  %v1498 = vshrl.u32 %v1497, 7
  %v1499 = vsub.s32 %v1496, %v1498
  %v1500 = vrot.slane %v1486, %v1499
  %v1501 = vcombine.high %v1493, %v1493
  %v1502 = vcombine.high %v1500, %v1500
  %v1504 = vunpack.c.l.s4 1966171168
  %v1505 = vunpack.c.0.s8 %v1504
  %v1506 = vlaneseq
  %v1507 = vshrl.u32 %v1506, 7
  %v1508 = vsub.s32 %v1505, %v1507
  %v1509 = vrot.slane %v1493, %v1508
  %v1511 = vunpack.c.l.s4 1966171168
  %v1512 = vunpack.c.0.s8 %v1511
  %v1513 = vlaneseq
  %v1514 = vshrl.u32 %v1513, 7
  %v1515 = vsub.s32 %v1512, %v1514
  %v1516 = vrot.slane %v1500, %v1515
  %v1518 = vunpack.c.l.s4 1966171168
  %v1519 = vunpack.c.0.s8 %v1518
  %v1520 = vlaneseq
  %v1521 = vshrl.u32 %v1520, 7
  %v1522 = vsub.s32 %v1519, %v1521
  %v1523 = vrot.slane %v1501, %v1522
  %v1525 = vunpack.c.l.s4 1966171168
  %v1526 = vunpack.c.0.s8 %v1525
  %v1527 = vlaneseq
  %v1528 = vshrl.u32 %v1527, 7
  %v1529 = vsub.s32 %v1526, %v1528
  %v1530 = vrot.slane %v1502, %v1529
  %v1531 = vcombine.high %v1509, %v1509
  %v1532 = vcombine.high %v1516, %v1516
  %v1533 = vcombine.high %v1523, %v1523
  %v1534 = vcombine.high %v1530, %v1530
  %v1535 = vlaneseq
  %v1536 = vshrl.u32 %v1535, 7
  %v1537 = vsub.s32 0, %v1536
  %v1538 = vrot.slane %v1509, %v1537
  %v1539 = vlaneseq
  %v1540 = vshrl.u32 %v1539, 7
  %v1541 = vsub.s32 0, %v1540
  %v1542 = vrot.slane %v1523, %v1541
  %v1543 = vlaneseq
  %v1544 = vshrl.u32 %v1543, 7
  %v1545 = vsub.s32 0, %v1544
  %v1546 = vrot.slane %v1531, %v1545
  %v1547 = vlaneseq
  %v1548 = vshrl.u32 %v1547, 7
  %v1549 = vsub.s32 0, %v1548
  %v1550 = vrot.slane %v1533, %v1549
  %v1551 = vlaneseq
  %v1552 = vshrl.u32 %v1551, 7
  %v1553 = vsub.s32 0, %v1552
  %v1554 = vrot.slane %v1516, %v1553
  %v1555 = vlaneseq
  %v1556 = vshrl.u32 %v1555, 7
  %v1557 = vsub.s32 0, %v1556
  %v1558 = vrot.slane %v1530, %v1557
  %v1559 = vlaneseq
  %v1560 = vshrl.u32 %v1559, 7
  %v1561 = vsub.s32 0, %v1560
  %v1562 = vrot.slane %v1532, %v1561
  %v1563 = vlaneseq
  %v1564 = vshrl.u32 %v1563, 7
  %v1565 = vsub.s32 0, %v1564
  %v1566 = vrot.slane %v1534, %v1565
  %v1575 = vmul.f32 %v1153, %v1538
  %v1576 = vmul.f32 %v1157, %v1538
  %v1577 = vmul.f32 %v1164, %v1542
  %v1578 = vmul.f32 %v1168, %v1542
  %v1579 = vmul.f32 %v1175, %v1546
  %v1580 = vmul.f32 %v1179, %v1546
  %v1581 = vmul.f32 %v1186, %v1550
  %v1582 = vmul.f32 %v1190, %v1550
  %v1583 = vmul.f32 %v1197, %v1554
  %v1584 = vmul.f32 %v1201, %v1554
  %v1585 = vmul.f32 %v1208, %v1558
  %v1586 = vmul.f32 %v1212, %v1558
  %v1587 = vmul.f32 %v1219, %v1562
  %v1588 = vmul.f32 %v1223, %v1562
  %v1589 = vmul.f32 %v1230, %v1566
  %v1590 = vmul.f32 %v1234, %v1566
  %v1591 = vadd.f32 %v1469, %v1575
  %v1592 = vadd.f32 %v1470, %v1576
  %v1593 = vadd.f32 %v1471, %v1577
  %v1594 = vadd.f32 %v1472, %v1578
  %v1595 = vadd.f32 %v1473, %v1579
  %v1596 = vadd.f32 %v1474, %v1580
  %v1597 = vadd.f32 %v1475, %v1581
  %v1598 = vadd.f32 %v1476, %v1582
  %v1599 = vadd.f32 %v1477, %v1583
  %v1600 = vadd.f32 %v1478, %v1584
  %v1601 = vadd.f32 %v1479, %v1585
  %v1602 = vadd.f32 %v1480, %v1586
  %v1603 = vadd.f32 %v1481, %v1587
  %v1604 = vadd.f32 %v1482, %v1588
  %v1605 = vadd.f32 %v1483, %v1589
  %v1606 = vadd.f32 %v1484, %v1590
  %s1607 = scalar_lea.vmem [#allocation2], 8
  %v1608 = vld [vmem:[%s1607] sm:$0xff]
  %s1609 = scalar_lea.vmem [#allocation3], 8
  %v1610 = vld [vmem:[%s1609] sm:$0xff]
  %s1611 = scalar_lea.vmem [#allocation4], 8
  %v1612 = vld [vmem:[%s1611] sm:$0xff]
  %v1613 = vlaneseq
  %v1614 = vshrl.u32 %v1613, 7
  %v1615 = vsub.s32 0, %v1614
  %v1616 = vrot.slane %v1608, %v1615
  %1618 = vbcast.lane.b32.xlu0 %v1616, 256
  %v1619 = vpop.permute.xlu0 %1618
  %s1621 = sor.u32 256, 8
  %1622 = vbcast.lane.b32.xlu0 %v1616, %s1621
  %v1623 = vpop.permute.xlu0 %1622
  %v1624 = vlaneseq
  %v1625 = vshrl.u32 %v1624, 7
  %v1626 = vsub.s32 1, %v1625
  %v1627 = vrot.slane %v1608, %v1626
  %1629 = vbcast.lane.b32.xlu0 %v1627, 256
  %v1630 = vpop.permute.xlu0 %1629
  %s1632 = sor.u32 256, 8
  %1633 = vbcast.lane.b32.xlu0 %v1627, %s1632
  %v1634 = vpop.permute.xlu0 %1633
  %v1635 = vlaneseq
  %v1636 = vshrl.u32 %v1635, 7
  %v1637 = vsub.s32 2, %v1636
  %v1638 = vrot.slane %v1608, %v1637
  %1640 = vbcast.lane.b32.xlu0 %v1638, 256
  %v1641 = vpop.permute.xlu0 %1640
  %s1643 = sor.u32 256, 8
  %1644 = vbcast.lane.b32.xlu0 %v1638, %s1643
  %v1645 = vpop.permute.xlu0 %1644
  %v1646 = vlaneseq
  %v1647 = vshrl.u32 %v1646, 7
  %v1648 = vsub.s32 3, %v1647
  %v1649 = vrot.slane %v1608, %v1648
  %1651 = vbcast.lane.b32.xlu0 %v1649, 256
  %v1652 = vpop.permute.xlu0 %1651
  %s1654 = sor.u32 256, 8
  %1655 = vbcast.lane.b32.xlu0 %v1649, %s1654
  %v1656 = vpop.permute.xlu0 %1655
  %v1657 = vlaneseq
  %v1658 = vshrl.u32 %v1657, 7
  %v1659 = vsub.s32 4, %v1658
  %v1660 = vrot.slane %v1608, %v1659
  %1662 = vbcast.lane.b32.xlu0 %v1660, 256
  %v1663 = vpop.permute.xlu0 %1662
  %s1665 = sor.u32 256, 8
  %1666 = vbcast.lane.b32.xlu0 %v1660, %s1665
  %v1667 = vpop.permute.xlu0 %1666
  %v1668 = vlaneseq
  %v1669 = vshrl.u32 %v1668, 7
  %v1670 = vsub.s32 5, %v1669
  %v1671 = vrot.slane %v1608, %v1670
  %1673 = vbcast.lane.b32.xlu0 %v1671, 256
  %v1674 = vpop.permute.xlu0 %1673
  %s1676 = sor.u32 256, 8
  %1677 = vbcast.lane.b32.xlu0 %v1671, %s1676
  %v1678 = vpop.permute.xlu0 %1677
  %v1679 = vlaneseq
  %v1680 = vshrl.u32 %v1679, 7
  %v1681 = vsub.s32 6, %v1680
  %v1682 = vrot.slane %v1608, %v1681
  %1684 = vbcast.lane.b32.xlu0 %v1682, 256
  %v1685 = vpop.permute.xlu0 %1684
  %s1687 = sor.u32 256, 8
  %1688 = vbcast.lane.b32.xlu0 %v1682, %s1687
  %v1689 = vpop.permute.xlu0 %1688
  %v1690 = vlaneseq
  %v1691 = vshrl.u32 %v1690, 7
  %v1692 = vsub.s32 7, %v1691
  %v1693 = vrot.slane %v1608, %v1692
  %1695 = vbcast.lane.b32.xlu0 %v1693, 256
  %v1696 = vpop.permute.xlu0 %1695
  %s1698 = sor.u32 256, 8
  %1699 = vbcast.lane.b32.xlu0 %v1693, %s1698
  %v1700 = vpop.permute.xlu0 %1699
  %v1701 = vmul.f32 %v1619, %v1591
  %v1702 = vmul.f32 %v1623, %v1592
  %v1703 = vmul.f32 %v1630, %v1593
  %v1704 = vmul.f32 %v1634, %v1594
  %v1705 = vmul.f32 %v1641, %v1595
  %v1706 = vmul.f32 %v1645, %v1596
  %v1707 = vmul.f32 %v1652, %v1597
  %v1708 = vmul.f32 %v1656, %v1598
  %v1709 = vmul.f32 %v1663, %v1599
  %v1710 = vmul.f32 %v1667, %v1600
  %v1711 = vmul.f32 %v1674, %v1601
  %v1712 = vmul.f32 %v1678, %v1602
  %v1713 = vmul.f32 %v1685, %v1603
  %v1714 = vmul.f32 %v1689, %v1604
  %v1715 = vmul.f32 %v1696, %v1605
  %v1716 = vmul.f32 %v1700, %v1606
  %v1717 = vsel %vm579, %v1701, 0.0
  %v1718 = vsel %vm579, %v1702, 0.0
  %v1719 = vadd.f32 %v1717, %v1718
  %v1720 = vrot.slane %v1719, 4
  %v1721 = vadd.f32 %v1719, %v1720
  %v1722 = vrot.slane %v1721, 2
  %v1723 = vadd.f32 %v1721, %v1722
  %v1724 = vrot.slane %v1723, 1
  %v1725 = vadd.f32 %v1723, %v1724
  %v1726 = vsel %vm579, %v1703, 0.0
  %v1727 = vsel %vm579, %v1704, 0.0
  %v1728 = vadd.f32 %v1726, %v1727
  %v1729 = vrot.slane %v1728, 4
  %v1730 = vadd.f32 %v1728, %v1729
  %v1731 = vrot.slane %v1730, 2
  %v1732 = vadd.f32 %v1730, %v1731
  %v1733 = vrot.slane %v1732, 1
  %v1734 = vadd.f32 %v1732, %v1733
  %v1735 = vsel %vm579, %v1705, 0.0
  %v1736 = vsel %vm579, %v1706, 0.0
  %v1737 = vadd.f32 %v1735, %v1736
  %v1738 = vrot.slane %v1737, 4
  %v1739 = vadd.f32 %v1737, %v1738
  %v1740 = vrot.slane %v1739, 2
  %v1741 = vadd.f32 %v1739, %v1740
  %v1742 = vrot.slane %v1741, 1
  %v1743 = vadd.f32 %v1741, %v1742
  %v1744 = vsel %vm579, %v1707, 0.0
  %v1745 = vsel %vm579, %v1708, 0.0
  %v1746 = vadd.f32 %v1744, %v1745
  %v1747 = vrot.slane %v1746, 4
  %v1748 = vadd.f32 %v1746, %v1747
  %v1749 = vrot.slane %v1748, 2
  %v1750 = vadd.f32 %v1748, %v1749
  %v1751 = vrot.slane %v1750, 1
  %v1752 = vadd.f32 %v1750, %v1751
  %v1753 = vsel %vm579, %v1709, 0.0
  %v1754 = vsel %vm579, %v1710, 0.0
  %v1755 = vadd.f32 %v1753, %v1754
  %v1756 = vrot.slane %v1755, 4
  %v1757 = vadd.f32 %v1755, %v1756
  %v1758 = vrot.slane %v1757, 2
  %v1759 = vadd.f32 %v1757, %v1758
  %v1760 = vrot.slane %v1759, 1
  %v1761 = vadd.f32 %v1759, %v1760
  %v1762 = vsel %vm579, %v1711, 0.0
  %v1763 = vsel %vm579, %v1712, 0.0
  %v1764 = vadd.f32 %v1762, %v1763
  %v1765 = vrot.slane %v1764, 4
  %v1766 = vadd.f32 %v1764, %v1765
  %v1767 = vrot.slane %v1766, 2
  %v1768 = vadd.f32 %v1766, %v1767
  %v1769 = vrot.slane %v1768, 1
  %v1770 = vadd.f32 %v1768, %v1769
  %v1771 = vsel %vm579, %v1713, 0.0
  %v1772 = vsel %vm579, %v1714, 0.0
  %v1773 = vadd.f32 %v1771, %v1772
  %v1774 = vrot.slane %v1773, 4
  %v1775 = vadd.f32 %v1773, %v1774
  %v1776 = vrot.slane %v1775, 2
  %v1777 = vadd.f32 %v1775, %v1776
  %v1778 = vrot.slane %v1777, 1
  %v1779 = vadd.f32 %v1777, %v1778
  %v1780 = vsel %vm579, %v1715, 0.0
  %v1781 = vsel %vm579, %v1716, 0.0
  %v1782 = vadd.f32 %v1780, %v1781
  %v1783 = vrot.slane %v1782, 4
  %v1784 = vadd.f32 %v1782, %v1783
  %v1785 = vrot.slane %v1784, 2
  %v1786 = vadd.f32 %v1784, %v1785
  %v1787 = vrot.slane %v1786, 1
  %v1788 = vadd.f32 %v1786, %v1787
  %v1797 = vsel %vm1331, %v1734, %v1725
  %v1798 = vsel %vm1333, %v1743, %v1797
  %v1799 = vsel %vm1335, %v1752, %v1798
  %v1800 = vsel %vm1337, %v1761, %v1799
  %v1801 = vsel %vm1339, %v1770, %v1800
  %v1802 = vsel %vm1341, %v1779, %v1801
  %v1803 = vsel %vm1343, %v1788, %v1802
  %s1805 = scalar_lea.vmem [#allocation6], 8
  %1806 = vst.msk [vmem:[%s1805] sm:$0xff] %vm579, %v1803
  %v1808 = vcombine.high %v1610, %v1610
  %v1810 = vunpack.c.l.s4 1966171168
  %v1811 = vunpack.c.0.s8 %v1810
  %v1812 = vlaneseq
  %v1813 = vshrl.u32 %v1812, 7
  %v1814 = vsub.s32 %v1811, %v1813
  %v1815 = vrot.slane %v1610, %v1814
  %v1817 = vunpack.c.l.s4 1966171168
  %v1818 = vunpack.c.0.s8 %v1817
  %v1819 = vlaneseq
  %v1820 = vshrl.u32 %v1819, 7
  %v1821 = vsub.s32 %v1818, %v1820
  %v1822 = vrot.slane %v1808, %v1821
  %v1823 = vcombine.high %v1815, %v1815
  %v1824 = vcombine.high %v1822, %v1822
  %v1826 = vunpack.c.l.s4 1966171168
  %v1827 = vunpack.c.0.s8 %v1826
  %v1828 = vlaneseq
  %v1829 = vshrl.u32 %v1828, 7
  %v1830 = vsub.s32 %v1827, %v1829
  %v1831 = vrot.slane %v1815, %v1830
  %v1833 = vunpack.c.l.s4 1966171168
  %v1834 = vunpack.c.0.s8 %v1833
  %v1835 = vlaneseq
  %v1836 = vshrl.u32 %v1835, 7
  %v1837 = vsub.s32 %v1834, %v1836
  %v1838 = vrot.slane %v1822, %v1837
  %v1840 = vunpack.c.l.s4 1966171168
  %v1841 = vunpack.c.0.s8 %v1840
  %v1842 = vlaneseq
  %v1843 = vshrl.u32 %v1842, 7
  %v1844 = vsub.s32 %v1841, %v1843
  %v1845 = vrot.slane %v1823, %v1844
  %v1847 = vunpack.c.l.s4 1966171168
  %v1848 = vunpack.c.0.s8 %v1847
  %v1849 = vlaneseq
  %v1850 = vshrl.u32 %v1849, 7
  %v1851 = vsub.s32 %v1848, %v1850
  %v1852 = vrot.slane %v1824, %v1851
  %v1853 = vcombine.high %v1831, %v1831
  %v1854 = vcombine.high %v1838, %v1838
  %v1855 = vcombine.high %v1845, %v1845
  %v1856 = vcombine.high %v1852, %v1852
  %v1857 = vlaneseq
  %v1858 = vshrl.u32 %v1857, 7
  %v1859 = vsub.s32 0, %v1858
  %v1860 = vrot.slane %v1831, %v1859
  %v1861 = vlaneseq
  %v1862 = vshrl.u32 %v1861, 7
  %v1863 = vsub.s32 0, %v1862
  %v1864 = vrot.slane %v1845, %v1863
  %v1865 = vlaneseq
  %v1866 = vshrl.u32 %v1865, 7
  %v1867 = vsub.s32 0, %v1866
  %v1868 = vrot.slane %v1853, %v1867
  %v1869 = vlaneseq
  %v1870 = vshrl.u32 %v1869, 7
  %v1871 = vsub.s32 0, %v1870
  %v1872 = vrot.slane %v1855, %v1871
  %v1873 = vlaneseq
  %v1874 = vshrl.u32 %v1873, 7
  %v1875 = vsub.s32 0, %v1874
  %v1876 = vrot.slane %v1838, %v1875
  %v1877 = vlaneseq
  %v1878 = vshrl.u32 %v1877, 7
  %v1879 = vsub.s32 0, %v1878
  %v1880 = vrot.slane %v1852, %v1879
  %v1881 = vlaneseq
  %v1882 = vshrl.u32 %v1881, 7
  %v1883 = vsub.s32 0, %v1882
  %v1884 = vrot.slane %v1854, %v1883
  %v1885 = vlaneseq
  %v1886 = vshrl.u32 %v1885, 7
  %v1887 = vsub.s32 0, %v1886
  %v1888 = vrot.slane %v1856, %v1887
  %v1897 = vmul.f32 %v1619, %v1860
  %v1898 = vmul.f32 %v1623, %v1860
  %v1899 = vmul.f32 %v1630, %v1864
  %v1900 = vmul.f32 %v1634, %v1864
  %v1901 = vmul.f32 %v1641, %v1868
  %v1902 = vmul.f32 %v1645, %v1868
  %v1903 = vmul.f32 %v1652, %v1872
  %v1904 = vmul.f32 %v1656, %v1872
  %v1905 = vmul.f32 %v1663, %v1876
  %v1906 = vmul.f32 %v1667, %v1876
  %v1907 = vmul.f32 %v1674, %v1880
  %v1908 = vmul.f32 %v1678, %v1880
  %v1909 = vmul.f32 %v1685, %v1884
  %v1910 = vmul.f32 %v1689, %v1884
  %v1911 = vmul.f32 %v1696, %v1888
  %v1912 = vmul.f32 %v1700, %v1888
  %v1913 = vsub.f32 1.0, %v1897
  %v1914 = vsub.f32 1.0, %v1898
  %v1915 = vsub.f32 1.0, %v1899
  %v1916 = vsub.f32 1.0, %v1900
  %v1917 = vsub.f32 1.0, %v1901
  %v1918 = vsub.f32 1.0, %v1902
  %v1919 = vsub.f32 1.0, %v1903
  %v1920 = vsub.f32 1.0, %v1904
  %v1921 = vsub.f32 1.0, %v1905
  %v1922 = vsub.f32 1.0, %v1906
  %v1923 = vsub.f32 1.0, %v1907
  %v1924 = vsub.f32 1.0, %v1908
  %v1925 = vsub.f32 1.0, %v1909
  %v1926 = vsub.f32 1.0, %v1910
  %v1927 = vsub.f32 1.0, %v1911
  %v1928 = vsub.f32 1.0, %v1912
  %v1929 = vmul.f32 %v1591, %v1913
  %v1930 = vmul.f32 %v1592, %v1914
  %v1931 = vmul.f32 %v1593, %v1915
  %v1932 = vmul.f32 %v1594, %v1916
  %v1933 = vmul.f32 %v1595, %v1917
  %v1934 = vmul.f32 %v1596, %v1918
  %v1935 = vmul.f32 %v1597, %v1919
  %v1936 = vmul.f32 %v1598, %v1920
  %v1937 = vmul.f32 %v1599, %v1921
  %v1938 = vmul.f32 %v1600, %v1922
  %v1939 = vmul.f32 %v1601, %v1923
  %v1940 = vmul.f32 %v1602, %v1924
  %v1941 = vmul.f32 %v1603, %v1925
  %v1942 = vmul.f32 %v1604, %v1926
  %v1943 = vmul.f32 %v1605, %v1927
  %v1944 = vmul.f32 %v1606, %v1928
  %v1946 = vcombine.high %v1612, %v1612
  %v1948 = vunpack.c.l.s4 1966171168
  %v1949 = vunpack.c.0.s8 %v1948
  %v1950 = vlaneseq
  %v1951 = vshrl.u32 %v1950, 7
  %v1952 = vsub.s32 %v1949, %v1951
  %v1953 = vrot.slane %v1612, %v1952
  %v1955 = vunpack.c.l.s4 1966171168
  %v1956 = vunpack.c.0.s8 %v1955
  %v1957 = vlaneseq
  %v1958 = vshrl.u32 %v1957, 7
  %v1959 = vsub.s32 %v1956, %v1958
  %v1960 = vrot.slane %v1946, %v1959
  %v1961 = vcombine.high %v1953, %v1953
  %v1962 = vcombine.high %v1960, %v1960
  %v1964 = vunpack.c.l.s4 1966171168
  %v1965 = vunpack.c.0.s8 %v1964
  %v1966 = vlaneseq
  %v1967 = vshrl.u32 %v1966, 7
  %v1968 = vsub.s32 %v1965, %v1967
  %v1969 = vrot.slane %v1953, %v1968
  %v1971 = vunpack.c.l.s4 1966171168
  %v1972 = vunpack.c.0.s8 %v1971
  %v1973 = vlaneseq
  %v1974 = vshrl.u32 %v1973, 7
  %v1975 = vsub.s32 %v1972, %v1974
  %v1976 = vrot.slane %v1960, %v1975
  %v1978 = vunpack.c.l.s4 1966171168
  %v1979 = vunpack.c.0.s8 %v1978
  %v1980 = vlaneseq
  %v1981 = vshrl.u32 %v1980, 7
  %v1982 = vsub.s32 %v1979, %v1981
  %v1983 = vrot.slane %v1961, %v1982
  %v1985 = vunpack.c.l.s4 1966171168
  %v1986 = vunpack.c.0.s8 %v1985
  %v1987 = vlaneseq
  %v1988 = vshrl.u32 %v1987, 7
  %v1989 = vsub.s32 %v1986, %v1988
  %v1990 = vrot.slane %v1962, %v1989
  %v1991 = vcombine.high %v1969, %v1969
  %v1992 = vcombine.high %v1976, %v1976
  %v1993 = vcombine.high %v1983, %v1983
  %v1994 = vcombine.high %v1990, %v1990
  %v1995 = vlaneseq
  %v1996 = vshrl.u32 %v1995, 7
  %v1997 = vsub.s32 0, %v1996
  %v1998 = vrot.slane %v1969, %v1997
  %v1999 = vlaneseq
  %v2000 = vshrl.u32 %v1999, 7
  %v2001 = vsub.s32 0, %v2000
  %v2002 = vrot.slane %v1983, %v2001
  %v2003 = vlaneseq
  %v2004 = vshrl.u32 %v2003, 7
  %v2005 = vsub.s32 0, %v2004
  %v2006 = vrot.slane %v1991, %v2005
  %v2007 = vlaneseq
  %v2008 = vshrl.u32 %v2007, 7
  %v2009 = vsub.s32 0, %v2008
  %v2010 = vrot.slane %v1993, %v2009
  %v2011 = vlaneseq
  %v2012 = vshrl.u32 %v2011, 7
  %v2013 = vsub.s32 0, %v2012
  %v2014 = vrot.slane %v1976, %v2013
  %v2015 = vlaneseq
  %v2016 = vshrl.u32 %v2015, 7
  %v2017 = vsub.s32 0, %v2016
  %v2018 = vrot.slane %v1990, %v2017
  %v2019 = vlaneseq
  %v2020 = vshrl.u32 %v2019, 7
  %v2021 = vsub.s32 0, %v2020
  %v2022 = vrot.slane %v1992, %v2021
  %v2023 = vlaneseq
  %v2024 = vshrl.u32 %v2023, 7
  %v2025 = vsub.s32 0, %v2024
  %v2026 = vrot.slane %v1994, %v2025
  %v2035 = vmul.f32 %v1619, %v1998
  %v2036 = vmul.f32 %v1623, %v1998
  %v2037 = vmul.f32 %v1630, %v2002
  %v2038 = vmul.f32 %v1634, %v2002
  %v2039 = vmul.f32 %v1641, %v2006
  %v2040 = vmul.f32 %v1645, %v2006
  %v2041 = vmul.f32 %v1652, %v2010
  %v2042 = vmul.f32 %v1656, %v2010
  %v2043 = vmul.f32 %v1663, %v2014
  %v2044 = vmul.f32 %v1667, %v2014
  %v2045 = vmul.f32 %v1674, %v2018
  %v2046 = vmul.f32 %v1678, %v2018
  %v2047 = vmul.f32 %v1685, %v2022
  %v2048 = vmul.f32 %v1689, %v2022
  %v2049 = vmul.f32 %v1696, %v2026
  %v2050 = vmul.f32 %v1700, %v2026
  %v2051 = vadd.f32 %v1929, %v2035
  %v2052 = vadd.f32 %v1930, %v2036
  %v2053 = vadd.f32 %v1931, %v2037
  %v2054 = vadd.f32 %v1932, %v2038
  %v2055 = vadd.f32 %v1933, %v2039
  %v2056 = vadd.f32 %v1934, %v2040
  %v2057 = vadd.f32 %v1935, %v2041
  %v2058 = vadd.f32 %v1936, %v2042
  %v2059 = vadd.f32 %v1937, %v2043
  %v2060 = vadd.f32 %v1938, %v2044
  %v2061 = vadd.f32 %v1939, %v2045
  %v2062 = vadd.f32 %v1940, %v2046
  %v2063 = vadd.f32 %v1941, %v2047
  %v2064 = vadd.f32 %v1942, %v2048
  %v2065 = vadd.f32 %v1943, %v2049
  %v2066 = vadd.f32 %v1944, %v2050
  %s2067 = scalar_lea.vmem [#allocation2], 16
  %v2068 = vld [vmem:[%s2067] sm:$0xff]
  %s2069 = scalar_lea.vmem [#allocation3], 16
  %v2070 = vld [vmem:[%s2069] sm:$0xff]
  %s2071 = scalar_lea.vmem [#allocation4], 16
  %v2072 = vld [vmem:[%s2071] sm:$0xff]
  %v2073 = vlaneseq
  %v2074 = vshrl.u32 %v2073, 7
  %v2075 = vsub.s32 0, %v2074
  %v2076 = vrot.slane %v2068, %v2075
  %2078 = vbcast.lane.b32.xlu0 %v2076, 256
  %v2079 = vpop.permute.xlu0 %2078
  %s2081 = sor.u32 256, 8
  %2082 = vbcast.lane.b32.xlu0 %v2076, %s2081
  %v2083 = vpop.permute.xlu0 %2082
  %v2084 = vlaneseq
  %v2085 = vshrl.u32 %v2084, 7
  %v2086 = vsub.s32 1, %v2085
  %v2087 = vrot.slane %v2068, %v2086
  %2089 = vbcast.lane.b32.xlu0 %v2087, 256
  %v2090 = vpop.permute.xlu0 %2089
  %s2092 = sor.u32 256, 8
  %2093 = vbcast.lane.b32.xlu0 %v2087, %s2092
  %v2094 = vpop.permute.xlu0 %2093
  %v2095 = vlaneseq
  %v2096 = vshrl.u32 %v2095, 7
  %v2097 = vsub.s32 2, %v2096
  %v2098 = vrot.slane %v2068, %v2097
  %2100 = vbcast.lane.b32.xlu0 %v2098, 256
  %v2101 = vpop.permute.xlu0 %2100
  %s2103 = sor.u32 256, 8
  %2104 = vbcast.lane.b32.xlu0 %v2098, %s2103
  %v2105 = vpop.permute.xlu0 %2104
  %v2106 = vlaneseq
  %v2107 = vshrl.u32 %v2106, 7
  %v2108 = vsub.s32 3, %v2107
  %v2109 = vrot.slane %v2068, %v2108
  %2111 = vbcast.lane.b32.xlu0 %v2109, 256
  %v2112 = vpop.permute.xlu0 %2111
  %s2114 = sor.u32 256, 8
  %2115 = vbcast.lane.b32.xlu0 %v2109, %s2114
  %v2116 = vpop.permute.xlu0 %2115
  %v2117 = vlaneseq
  %v2118 = vshrl.u32 %v2117, 7
  %v2119 = vsub.s32 4, %v2118
  %v2120 = vrot.slane %v2068, %v2119
  %2122 = vbcast.lane.b32.xlu0 %v2120, 256
  %v2123 = vpop.permute.xlu0 %2122
  %s2125 = sor.u32 256, 8
  %2126 = vbcast.lane.b32.xlu0 %v2120, %s2125
  %v2127 = vpop.permute.xlu0 %2126
  %v2128 = vlaneseq
  %v2129 = vshrl.u32 %v2128, 7
  %v2130 = vsub.s32 5, %v2129
  %v2131 = vrot.slane %v2068, %v2130
  %2133 = vbcast.lane.b32.xlu0 %v2131, 256
  %v2134 = vpop.permute.xlu0 %2133
  %s2136 = sor.u32 256, 8
  %2137 = vbcast.lane.b32.xlu0 %v2131, %s2136
  %v2138 = vpop.permute.xlu0 %2137
  %v2139 = vlaneseq
  %v2140 = vshrl.u32 %v2139, 7
  %v2141 = vsub.s32 6, %v2140
  %v2142 = vrot.slane %v2068, %v2141
  %2144 = vbcast.lane.b32.xlu0 %v2142, 256
  %v2145 = vpop.permute.xlu0 %2144
  %s2147 = sor.u32 256, 8
  %2148 = vbcast.lane.b32.xlu0 %v2142, %s2147
  %v2149 = vpop.permute.xlu0 %2148
  %v2150 = vlaneseq
  %v2151 = vshrl.u32 %v2150, 7
  %v2152 = vsub.s32 7, %v2151
  %v2153 = vrot.slane %v2068, %v2152
  %2155 = vbcast.lane.b32.xlu0 %v2153, 256
  %v2156 = vpop.permute.xlu0 %2155
  %s2158 = sor.u32 256, 8
  %2159 = vbcast.lane.b32.xlu0 %v2153, %s2158
  %v2160 = vpop.permute.xlu0 %2159
  %v2161 = vmul.f32 %v2079, %v2051
  %v2162 = vmul.f32 %v2083, %v2052
  %v2163 = vmul.f32 %v2090, %v2053
  %v2164 = vmul.f32 %v2094, %v2054
  %v2165 = vmul.f32 %v2101, %v2055
  %v2166 = vmul.f32 %v2105, %v2056
  %v2167 = vmul.f32 %v2112, %v2057
  %v2168 = vmul.f32 %v2116, %v2058
  %v2169 = vmul.f32 %v2123, %v2059
  %v2170 = vmul.f32 %v2127, %v2060
  %v2171 = vmul.f32 %v2134, %v2061
  %v2172 = vmul.f32 %v2138, %v2062
  %v2173 = vmul.f32 %v2145, %v2063
  %v2174 = vmul.f32 %v2149, %v2064
  %v2175 = vmul.f32 %v2156, %v2065
  %v2176 = vmul.f32 %v2160, %v2066
  %v2177 = vsel %vm579, %v2161, 0.0
  %v2178 = vsel %vm579, %v2162, 0.0
  %v2179 = vadd.f32 %v2177, %v2178
  %v2180 = vrot.slane %v2179, 4
  %v2181 = vadd.f32 %v2179, %v2180
  %v2182 = vrot.slane %v2181, 2
  %v2183 = vadd.f32 %v2181, %v2182
  %v2184 = vrot.slane %v2183, 1
  %v2185 = vadd.f32 %v2183, %v2184
  %v2186 = vsel %vm579, %v2163, 0.0
  %v2187 = vsel %vm579, %v2164, 0.0
  %v2188 = vadd.f32 %v2186, %v2187
  %v2189 = vrot.slane %v2188, 4
  %v2190 = vadd.f32 %v2188, %v2189
  %v2191 = vrot.slane %v2190, 2
  %v2192 = vadd.f32 %v2190, %v2191
  %v2193 = vrot.slane %v2192, 1
  %v2194 = vadd.f32 %v2192, %v2193
  %v2195 = vsel %vm579, %v2165, 0.0
  %v2196 = vsel %vm579, %v2166, 0.0
  %v2197 = vadd.f32 %v2195, %v2196
  %v2198 = vrot.slane %v2197, 4
  %v2199 = vadd.f32 %v2197, %v2198
  %v2200 = vrot.slane %v2199, 2
  %v2201 = vadd.f32 %v2199, %v2200
  %v2202 = vrot.slane %v2201, 1
  %v2203 = vadd.f32 %v2201, %v2202
  %v2204 = vsel %vm579, %v2167, 0.0
  %v2205 = vsel %vm579, %v2168, 0.0
  %v2206 = vadd.f32 %v2204, %v2205
  %v2207 = vrot.slane %v2206, 4
  %v2208 = vadd.f32 %v2206, %v2207
  %v2209 = vrot.slane %v2208, 2
  %v2210 = vadd.f32 %v2208, %v2209
  %v2211 = vrot.slane %v2210, 1
  %v2212 = vadd.f32 %v2210, %v2211
  %v2213 = vsel %vm579, %v2169, 0.0
  %v2214 = vsel %vm579, %v2170, 0.0
  %v2215 = vadd.f32 %v2213, %v2214
  %v2216 = vrot.slane %v2215, 4
  %v2217 = vadd.f32 %v2215, %v2216
  %v2218 = vrot.slane %v2217, 2
  %v2219 = vadd.f32 %v2217, %v2218
  %v2220 = vrot.slane %v2219, 1
  %v2221 = vadd.f32 %v2219, %v2220
  %v2222 = vsel %vm579, %v2171, 0.0
  %v2223 = vsel %vm579, %v2172, 0.0
  %v2224 = vadd.f32 %v2222, %v2223
  %v2225 = vrot.slane %v2224, 4
  %v2226 = vadd.f32 %v2224, %v2225
  %v2227 = vrot.slane %v2226, 2
  %v2228 = vadd.f32 %v2226, %v2227
  %v2229 = vrot.slane %v2228, 1
  %v2230 = vadd.f32 %v2228, %v2229
  %v2231 = vsel %vm579, %v2173, 0.0
  %v2232 = vsel %vm579, %v2174, 0.0
  %v2233 = vadd.f32 %v2231, %v2232
  %v2234 = vrot.slane %v2233, 4
  %v2235 = vadd.f32 %v2233, %v2234
  %v2236 = vrot.slane %v2235, 2
  %v2237 = vadd.f32 %v2235, %v2236
  %v2238 = vrot.slane %v2237, 1
  %v2239 = vadd.f32 %v2237, %v2238
  %v2240 = vsel %vm579, %v2175, 0.0
  %v2241 = vsel %vm579, %v2176, 0.0
  %v2242 = vadd.f32 %v2240, %v2241
  %v2243 = vrot.slane %v2242, 4
  %v2244 = vadd.f32 %v2242, %v2243
  %v2245 = vrot.slane %v2244, 2
  %v2246 = vadd.f32 %v2244, %v2245
  %v2247 = vrot.slane %v2246, 1
  %v2248 = vadd.f32 %v2246, %v2247
  %v2257 = vsel %vm1331, %v2194, %v2185
  %v2258 = vsel %vm1333, %v2203, %v2257
  %v2259 = vsel %vm1335, %v2212, %v2258
  %v2260 = vsel %vm1337, %v2221, %v2259
  %v2261 = vsel %vm1339, %v2230, %v2260
  %v2262 = vsel %vm1341, %v2239, %v2261
  %v2263 = vsel %vm1343, %v2248, %v2262
  %s2265 = scalar_lea.vmem [#allocation6], 16
  %2266 = vst.msk [vmem:[%s2265] sm:$0xff] %vm579, %v2263
  %v2268 = vcombine.high %v2070, %v2070
  %v2270 = vunpack.c.l.s4 1966171168
  %v2271 = vunpack.c.0.s8 %v2270
  %v2272 = vlaneseq
  %v2273 = vshrl.u32 %v2272, 7
  %v2274 = vsub.s32 %v2271, %v2273
  %v2275 = vrot.slane %v2070, %v2274
  %v2277 = vunpack.c.l.s4 1966171168
  %v2278 = vunpack.c.0.s8 %v2277
  %v2279 = vlaneseq
  %v2280 = vshrl.u32 %v2279, 7
  %v2281 = vsub.s32 %v2278, %v2280
  %v2282 = vrot.slane %v2268, %v2281
  %v2283 = vcombine.high %v2275, %v2275
  %v2284 = vcombine.high %v2282, %v2282
  %v2286 = vunpack.c.l.s4 1966171168
  %v2287 = vunpack.c.0.s8 %v2286
  %v2288 = vlaneseq
  %v2289 = vshrl.u32 %v2288, 7
  %v2290 = vsub.s32 %v2287, %v2289
  %v2291 = vrot.slane %v2275, %v2290
  %v2293 = vunpack.c.l.s4 1966171168
  %v2294 = vunpack.c.0.s8 %v2293
  %v2295 = vlaneseq
  %v2296 = vshrl.u32 %v2295, 7
  %v2297 = vsub.s32 %v2294, %v2296
  %v2298 = vrot.slane %v2282, %v2297
  %v2300 = vunpack.c.l.s4 1966171168
  %v2301 = vunpack.c.0.s8 %v2300
  %v2302 = vlaneseq
  %v2303 = vshrl.u32 %v2302, 7
  %v2304 = vsub.s32 %v2301, %v2303
  %v2305 = vrot.slane %v2283, %v2304
  %v2307 = vunpack.c.l.s4 1966171168
  %v2308 = vunpack.c.0.s8 %v2307
  %v2309 = vlaneseq
  %v2310 = vshrl.u32 %v2309, 7
  %v2311 = vsub.s32 %v2308, %v2310
  %v2312 = vrot.slane %v2284, %v2311
  %v2313 = vcombine.high %v2291, %v2291
  %v2314 = vcombine.high %v2298, %v2298
  %v2315 = vcombine.high %v2305, %v2305
  %v2316 = vcombine.high %v2312, %v2312
  %v2317 = vlaneseq
  %v2318 = vshrl.u32 %v2317, 7
  %v2319 = vsub.s32 0, %v2318
  %v2320 = vrot.slane %v2291, %v2319
  %v2321 = vlaneseq
  %v2322 = vshrl.u32 %v2321, 7
  %v2323 = vsub.s32 0, %v2322
  %v2324 = vrot.slane %v2305, %v2323
  %v2325 = vlaneseq
  %v2326 = vshrl.u32 %v2325, 7
  %v2327 = vsub.s32 0, %v2326
  %v2328 = vrot.slane %v2313, %v2327
  %v2329 = vlaneseq
  %v2330 = vshrl.u32 %v2329, 7
  %v2331 = vsub.s32 0, %v2330
  %v2332 = vrot.slane %v2315, %v2331
  %v2333 = vlaneseq
  %v2334 = vshrl.u32 %v2333, 7
  %v2335 = vsub.s32 0, %v2334
  %v2336 = vrot.slane %v2298, %v2335
  %v2337 = vlaneseq
  %v2338 = vshrl.u32 %v2337, 7
  %v2339 = vsub.s32 0, %v2338
  %v2340 = vrot.slane %v2312, %v2339
  %v2341 = vlaneseq
  %v2342 = vshrl.u32 %v2341, 7
  %v2343 = vsub.s32 0, %v2342
  %v2344 = vrot.slane %v2314, %v2343
  %v2345 = vlaneseq
  %v2346 = vshrl.u32 %v2345, 7
  %v2347 = vsub.s32 0, %v2346
  %v2348 = vrot.slane %v2316, %v2347
  %v2357 = vmul.f32 %v2079, %v2320
  %v2358 = vmul.f32 %v2083, %v2320
  %v2359 = vmul.f32 %v2090, %v2324
  %v2360 = vmul.f32 %v2094, %v2324
  %v2361 = vmul.f32 %v2101, %v2328
  %v2362 = vmul.f32 %v2105, %v2328
  %v2363 = vmul.f32 %v2112, %v2332
  %v2364 = vmul.f32 %v2116, %v2332
  %v2365 = vmul.f32 %v2123, %v2336
  %v2366 = vmul.f32 %v2127, %v2336
  %v2367 = vmul.f32 %v2134, %v2340
  %v2368 = vmul.f32 %v2138, %v2340
  %v2369 = vmul.f32 %v2145, %v2344
  %v2370 = vmul.f32 %v2149, %v2344
  %v2371 = vmul.f32 %v2156, %v2348
  %v2372 = vmul.f32 %v2160, %v2348
  %v2373 = vsub.f32 1.0, %v2357
  %v2374 = vsub.f32 1.0, %v2358
  %v2375 = vsub.f32 1.0, %v2359
  %v2376 = vsub.f32 1.0, %v2360
  %v2377 = vsub.f32 1.0, %v2361
  %v2378 = vsub.f32 1.0, %v2362
  %v2379 = vsub.f32 1.0, %v2363
  %v2380 = vsub.f32 1.0, %v2364
  %v2381 = vsub.f32 1.0, %v2365
  %v2382 = vsub.f32 1.0, %v2366
  %v2383 = vsub.f32 1.0, %v2367
  %v2384 = vsub.f32 1.0, %v2368
  %v2385 = vsub.f32 1.0, %v2369
  %v2386 = vsub.f32 1.0, %v2370
  %v2387 = vsub.f32 1.0, %v2371
  %v2388 = vsub.f32 1.0, %v2372
  %v2389 = vmul.f32 %v2051, %v2373
  %v2390 = vmul.f32 %v2052, %v2374
  %v2391 = vmul.f32 %v2053, %v2375
  %v2392 = vmul.f32 %v2054, %v2376
  %v2393 = vmul.f32 %v2055, %v2377
  %v2394 = vmul.f32 %v2056, %v2378
  %v2395 = vmul.f32 %v2057, %v2379
  %v2396 = vmul.f32 %v2058, %v2380
  %v2397 = vmul.f32 %v2059, %v2381
  %v2398 = vmul.f32 %v2060, %v2382
  %v2399 = vmul.f32 %v2061, %v2383
  %v2400 = vmul.f32 %v2062, %v2384
  %v2401 = vmul.f32 %v2063, %v2385
  %v2402 = vmul.f32 %v2064, %v2386
  %v2403 = vmul.f32 %v2065, %v2387
  %v2404 = vmul.f32 %v2066, %v2388
  %v2406 = vcombine.high %v2072, %v2072
  %v2408 = vunpack.c.l.s4 1966171168
  %v2409 = vunpack.c.0.s8 %v2408
  %v2410 = vlaneseq
  %v2411 = vshrl.u32 %v2410, 7
  %v2412 = vsub.s32 %v2409, %v2411
  %v2413 = vrot.slane %v2072, %v2412
  %v2415 = vunpack.c.l.s4 1966171168
  %v2416 = vunpack.c.0.s8 %v2415
  %v2417 = vlaneseq
  %v2418 = vshrl.u32 %v2417, 7
  %v2419 = vsub.s32 %v2416, %v2418
  %v2420 = vrot.slane %v2406, %v2419
  %v2421 = vcombine.high %v2413, %v2413
  %v2422 = vcombine.high %v2420, %v2420
  %v2424 = vunpack.c.l.s4 1966171168
  %v2425 = vunpack.c.0.s8 %v2424
  %v2426 = vlaneseq
  %v2427 = vshrl.u32 %v2426, 7
  %v2428 = vsub.s32 %v2425, %v2427
  %v2429 = vrot.slane %v2413, %v2428
  %v2431 = vunpack.c.l.s4 1966171168
  %v2432 = vunpack.c.0.s8 %v2431
  %v2433 = vlaneseq
  %v2434 = vshrl.u32 %v2433, 7
  %v2435 = vsub.s32 %v2432, %v2434
  %v2436 = vrot.slane %v2420, %v2435
  %v2438 = vunpack.c.l.s4 1966171168
  %v2439 = vunpack.c.0.s8 %v2438
  %v2440 = vlaneseq
  %v2441 = vshrl.u32 %v2440, 7
  %v2442 = vsub.s32 %v2439, %v2441
  %v2443 = vrot.slane %v2421, %v2442
  %v2445 = vunpack.c.l.s4 1966171168
  %v2446 = vunpack.c.0.s8 %v2445
  %v2447 = vlaneseq
  %v2448 = vshrl.u32 %v2447, 7
  %v2449 = vsub.s32 %v2446, %v2448
  %v2450 = vrot.slane %v2422, %v2449
  %v2451 = vcombine.high %v2429, %v2429
  %v2452 = vcombine.high %v2436, %v2436
  %v2453 = vcombine.high %v2443, %v2443
  %v2454 = vcombine.high %v2450, %v2450
  %v2455 = vlaneseq
  %v2456 = vshrl.u32 %v2455, 7
  %v2457 = vsub.s32 0, %v2456
  %v2458 = vrot.slane %v2429, %v2457
  %v2459 = vlaneseq
  %v2460 = vshrl.u32 %v2459, 7
  %v2461 = vsub.s32 0, %v2460
  %v2462 = vrot.slane %v2443, %v2461
  %v2463 = vlaneseq
  %v2464 = vshrl.u32 %v2463, 7
  %v2465 = vsub.s32 0, %v2464
  %v2466 = vrot.slane %v2451, %v2465
  %v2467 = vlaneseq
  %v2468 = vshrl.u32 %v2467, 7
  %v2469 = vsub.s32 0, %v2468
  %v2470 = vrot.slane %v2453, %v2469
  %v2471 = vlaneseq
  %v2472 = vshrl.u32 %v2471, 7
  %v2473 = vsub.s32 0, %v2472
  %v2474 = vrot.slane %v2436, %v2473
  %v2475 = vlaneseq
  %v2476 = vshrl.u32 %v2475, 7
  %v2477 = vsub.s32 0, %v2476
  %v2478 = vrot.slane %v2450, %v2477
  %v2479 = vlaneseq
  %v2480 = vshrl.u32 %v2479, 7
  %v2481 = vsub.s32 0, %v2480
  %v2482 = vrot.slane %v2452, %v2481
  %v2483 = vlaneseq
  %v2484 = vshrl.u32 %v2483, 7
  %v2485 = vsub.s32 0, %v2484
  %v2486 = vrot.slane %v2454, %v2485
  %v2495 = vmul.f32 %v2079, %v2458
  %v2496 = vmul.f32 %v2083, %v2458
  %v2497 = vmul.f32 %v2090, %v2462
  %v2498 = vmul.f32 %v2094, %v2462
  %v2499 = vmul.f32 %v2101, %v2466
  %v2500 = vmul.f32 %v2105, %v2466
  %v2501 = vmul.f32 %v2112, %v2470
  %v2502 = vmul.f32 %v2116, %v2470
  %v2503 = vmul.f32 %v2123, %v2474
  %v2504 = vmul.f32 %v2127, %v2474
  %v2505 = vmul.f32 %v2134, %v2478
  %v2506 = vmul.f32 %v2138, %v2478
  %v2507 = vmul.f32 %v2145, %v2482
  %v2508 = vmul.f32 %v2149, %v2482
  %v2509 = vmul.f32 %v2156, %v2486
  %v2510 = vmul.f32 %v2160, %v2486
  %v2511 = vadd.f32 %v2389, %v2495
  %v2512 = vadd.f32 %v2390, %v2496
  %v2513 = vadd.f32 %v2391, %v2497
  %v2514 = vadd.f32 %v2392, %v2498
  %v2515 = vadd.f32 %v2393, %v2499
  %v2516 = vadd.f32 %v2394, %v2500
  %v2517 = vadd.f32 %v2395, %v2501
  %v2518 = vadd.f32 %v2396, %v2502
  %v2519 = vadd.f32 %v2397, %v2503
  %v2520 = vadd.f32 %v2398, %v2504
  %v2521 = vadd.f32 %v2399, %v2505
  %v2522 = vadd.f32 %v2400, %v2506
  %v2523 = vadd.f32 %v2401, %v2507
  %v2524 = vadd.f32 %v2402, %v2508
  %v2525 = vadd.f32 %v2403, %v2509
  %v2526 = vadd.f32 %v2404, %v2510
  %s2527 = scalar_lea.vmem [#allocation2], 24
  %v2528 = vld [vmem:[%s2527] sm:$0xff]
  %s2529 = scalar_lea.vmem [#allocation3], 24
  %v2530 = vld [vmem:[%s2529] sm:$0xff]
  %s2531 = scalar_lea.vmem [#allocation4], 24
  %v2532 = vld [vmem:[%s2531] sm:$0xff]
  %v2533 = vlaneseq
  %v2534 = vshrl.u32 %v2533, 7
  %v2535 = vsub.s32 0, %v2534
  %v2536 = vrot.slane %v2528, %v2535
  %2538 = vbcast.lane.b32.xlu0 %v2536, 256
  %v2539 = vpop.permute.xlu0 %2538
  %s2541 = sor.u32 256, 8
  %2542 = vbcast.lane.b32.xlu0 %v2536, %s2541
  %v2543 = vpop.permute.xlu0 %2542
  %v2544 = vlaneseq
  %v2545 = vshrl.u32 %v2544, 7
  %v2546 = vsub.s32 1, %v2545
  %v2547 = vrot.slane %v2528, %v2546
  %2549 = vbcast.lane.b32.xlu0 %v2547, 256
  %v2550 = vpop.permute.xlu0 %2549
  %s2552 = sor.u32 256, 8
  %2553 = vbcast.lane.b32.xlu0 %v2547, %s2552
  %v2554 = vpop.permute.xlu0 %2553
  %v2555 = vlaneseq
  %v2556 = vshrl.u32 %v2555, 7
  %v2557 = vsub.s32 2, %v2556
  %v2558 = vrot.slane %v2528, %v2557
  %2560 = vbcast.lane.b32.xlu0 %v2558, 256
  %v2561 = vpop.permute.xlu0 %2560
  %s2563 = sor.u32 256, 8
  %2564 = vbcast.lane.b32.xlu0 %v2558, %s2563
  %v2565 = vpop.permute.xlu0 %2564
  %v2566 = vlaneseq
  %v2567 = vshrl.u32 %v2566, 7
  %v2568 = vsub.s32 3, %v2567
  %v2569 = vrot.slane %v2528, %v2568
  %2571 = vbcast.lane.b32.xlu0 %v2569, 256
  %v2572 = vpop.permute.xlu0 %2571
  %s2574 = sor.u32 256, 8
  %2575 = vbcast.lane.b32.xlu0 %v2569, %s2574
  %v2576 = vpop.permute.xlu0 %2575
  %v2577 = vlaneseq
  %v2578 = vshrl.u32 %v2577, 7
  %v2579 = vsub.s32 4, %v2578
  %v2580 = vrot.slane %v2528, %v2579
  %2582 = vbcast.lane.b32.xlu0 %v2580, 256
  %v2583 = vpop.permute.xlu0 %2582
  %s2585 = sor.u32 256, 8
  %2586 = vbcast.lane.b32.xlu0 %v2580, %s2585
  %v2587 = vpop.permute.xlu0 %2586
  %v2588 = vlaneseq
  %v2589 = vshrl.u32 %v2588, 7
  %v2590 = vsub.s32 5, %v2589
  %v2591 = vrot.slane %v2528, %v2590
  %2593 = vbcast.lane.b32.xlu0 %v2591, 256
  %v2594 = vpop.permute.xlu0 %2593
  %s2596 = sor.u32 256, 8
  %2597 = vbcast.lane.b32.xlu0 %v2591, %s2596
  %v2598 = vpop.permute.xlu0 %2597
  %v2599 = vlaneseq
  %v2600 = vshrl.u32 %v2599, 7
  %v2601 = vsub.s32 6, %v2600
  %v2602 = vrot.slane %v2528, %v2601
  %2604 = vbcast.lane.b32.xlu0 %v2602, 256
  %v2605 = vpop.permute.xlu0 %2604
  %s2607 = sor.u32 256, 8
  %2608 = vbcast.lane.b32.xlu0 %v2602, %s2607
  %v2609 = vpop.permute.xlu0 %2608
  %v2610 = vlaneseq
  %v2611 = vshrl.u32 %v2610, 7
  %v2612 = vsub.s32 7, %v2611
  %v2613 = vrot.slane %v2528, %v2612
  %2615 = vbcast.lane.b32.xlu0 %v2613, 256
  %v2616 = vpop.permute.xlu0 %2615
  %s2618 = sor.u32 256, 8
  %2619 = vbcast.lane.b32.xlu0 %v2613, %s2618
  %v2620 = vpop.permute.xlu0 %2619
  %v2621 = vmul.f32 %v2539, %v2511
  %v2622 = vmul.f32 %v2543, %v2512
  %v2623 = vmul.f32 %v2550, %v2513
  %v2624 = vmul.f32 %v2554, %v2514
  %v2625 = vmul.f32 %v2561, %v2515
  %v2626 = vmul.f32 %v2565, %v2516
  %v2627 = vmul.f32 %v2572, %v2517
  %v2628 = vmul.f32 %v2576, %v2518
  %v2629 = vmul.f32 %v2583, %v2519
  %v2630 = vmul.f32 %v2587, %v2520
  %v2631 = vmul.f32 %v2594, %v2521
  %v2632 = vmul.f32 %v2598, %v2522
  %v2633 = vmul.f32 %v2605, %v2523
  %v2634 = vmul.f32 %v2609, %v2524
  %v2635 = vmul.f32 %v2616, %v2525
  %v2636 = vmul.f32 %v2620, %v2526
  %v2637 = vsel %vm579, %v2621, 0.0
  %v2638 = vsel %vm579, %v2622, 0.0
  %v2639 = vadd.f32 %v2637, %v2638
  %v2640 = vrot.slane %v2639, 4
  %v2641 = vadd.f32 %v2639, %v2640
  %v2642 = vrot.slane %v2641, 2
  %v2643 = vadd.f32 %v2641, %v2642
  %v2644 = vrot.slane %v2643, 1
  %v2645 = vadd.f32 %v2643, %v2644
  %v2646 = vsel %vm579, %v2623, 0.0
  %v2647 = vsel %vm579, %v2624, 0.0
  %v2648 = vadd.f32 %v2646, %v2647
  %v2649 = vrot.slane %v2648, 4
  %v2650 = vadd.f32 %v2648, %v2649
  %v2651 = vrot.slane %v2650, 2
  %v2652 = vadd.f32 %v2650, %v2651
  %v2653 = vrot.slane %v2652, 1
  %v2654 = vadd.f32 %v2652, %v2653
  %v2655 = vsel %vm579, %v2625, 0.0
  %v2656 = vsel %vm579, %v2626, 0.0
  %v2657 = vadd.f32 %v2655, %v2656
  %v2658 = vrot.slane %v2657, 4
  %v2659 = vadd.f32 %v2657, %v2658
  %v2660 = vrot.slane %v2659, 2
  %v2661 = vadd.f32 %v2659, %v2660
  %v2662 = vrot.slane %v2661, 1
  %v2663 = vadd.f32 %v2661, %v2662
  %v2664 = vsel %vm579, %v2627, 0.0
  %v2665 = vsel %vm579, %v2628, 0.0
  %v2666 = vadd.f32 %v2664, %v2665
  %v2667 = vrot.slane %v2666, 4
  %v2668 = vadd.f32 %v2666, %v2667
  %v2669 = vrot.slane %v2668, 2
  %v2670 = vadd.f32 %v2668, %v2669
  %v2671 = vrot.slane %v2670, 1
  %v2672 = vadd.f32 %v2670, %v2671
  %v2673 = vsel %vm579, %v2629, 0.0
  %v2674 = vsel %vm579, %v2630, 0.0
  %v2675 = vadd.f32 %v2673, %v2674
  %v2676 = vrot.slane %v2675, 4
  %v2677 = vadd.f32 %v2675, %v2676
  %v2678 = vrot.slane %v2677, 2
  %v2679 = vadd.f32 %v2677, %v2678
  %v2680 = vrot.slane %v2679, 1
  %v2681 = vadd.f32 %v2679, %v2680
  %v2682 = vsel %vm579, %v2631, 0.0
  %v2683 = vsel %vm579, %v2632, 0.0
  %v2684 = vadd.f32 %v2682, %v2683
  %v2685 = vrot.slane %v2684, 4
  %v2686 = vadd.f32 %v2684, %v2685
  %v2687 = vrot.slane %v2686, 2
  %v2688 = vadd.f32 %v2686, %v2687
  %v2689 = vrot.slane %v2688, 1
  %v2690 = vadd.f32 %v2688, %v2689
  %v2691 = vsel %vm579, %v2633, 0.0
  %v2692 = vsel %vm579, %v2634, 0.0
  %v2693 = vadd.f32 %v2691, %v2692
  %v2694 = vrot.slane %v2693, 4
  %v2695 = vadd.f32 %v2693, %v2694
  %v2696 = vrot.slane %v2695, 2
  %v2697 = vadd.f32 %v2695, %v2696
  %v2698 = vrot.slane %v2697, 1
  %v2699 = vadd.f32 %v2697, %v2698
  %v2700 = vsel %vm579, %v2635, 0.0
  %v2701 = vsel %vm579, %v2636, 0.0
  %v2702 = vadd.f32 %v2700, %v2701
  %v2703 = vrot.slane %v2702, 4
  %v2704 = vadd.f32 %v2702, %v2703
  %v2705 = vrot.slane %v2704, 2
  %v2706 = vadd.f32 %v2704, %v2705
  %v2707 = vrot.slane %v2706, 1
  %v2708 = vadd.f32 %v2706, %v2707
  %v2717 = vsel %vm1331, %v2654, %v2645
  %v2718 = vsel %vm1333, %v2663, %v2717
  %v2719 = vsel %vm1335, %v2672, %v2718
  %v2720 = vsel %vm1337, %v2681, %v2719
  %v2721 = vsel %vm1339, %v2690, %v2720
  %v2722 = vsel %vm1341, %v2699, %v2721
  %v2723 = vsel %vm1343, %v2708, %v2722
  %s2725 = scalar_lea.vmem [#allocation6], 24
  %2726 = vst.msk [vmem:[%s2725] sm:$0xff] %vm579, %v2723
  %v2728 = vcombine.high %v2530, %v2530
  %v2730 = vunpack.c.l.s4 1966171168
  %v2731 = vunpack.c.0.s8 %v2730
  %v2732 = vlaneseq
  %v2733 = vshrl.u32 %v2732, 7
  %v2734 = vsub.s32 %v2731, %v2733
  %v2735 = vrot.slane %v2530, %v2734
  %v2737 = vunpack.c.l.s4 1966171168
  %v2738 = vunpack.c.0.s8 %v2737
  %v2739 = vlaneseq
  %v2740 = vshrl.u32 %v2739, 7
  %v2741 = vsub.s32 %v2738, %v2740
  %v2742 = vrot.slane %v2728, %v2741
  %v2743 = vcombine.high %v2735, %v2735
  %v2744 = vcombine.high %v2742, %v2742
  %v2746 = vunpack.c.l.s4 1966171168
  %v2747 = vunpack.c.0.s8 %v2746
  %v2748 = vlaneseq
  %v2749 = vshrl.u32 %v2748, 7
  %v2750 = vsub.s32 %v2747, %v2749
  %v2751 = vrot.slane %v2735, %v2750
  %v2753 = vunpack.c.l.s4 1966171168
  %v2754 = vunpack.c.0.s8 %v2753
  %v2755 = vlaneseq
  %v2756 = vshrl.u32 %v2755, 7
  %v2757 = vsub.s32 %v2754, %v2756
  %v2758 = vrot.slane %v2742, %v2757
  %v2760 = vunpack.c.l.s4 1966171168
  %v2761 = vunpack.c.0.s8 %v2760
  %v2762 = vlaneseq
  %v2763 = vshrl.u32 %v2762, 7
  %v2764 = vsub.s32 %v2761, %v2763
  %v2765 = vrot.slane %v2743, %v2764
  %v2767 = vunpack.c.l.s4 1966171168
  %v2768 = vunpack.c.0.s8 %v2767
  %v2769 = vlaneseq
  %v2770 = vshrl.u32 %v2769, 7
  %v2771 = vsub.s32 %v2768, %v2770
  %v2772 = vrot.slane %v2744, %v2771
  %v2773 = vcombine.high %v2751, %v2751
  %v2774 = vcombine.high %v2758, %v2758
  %v2775 = vcombine.high %v2765, %v2765
  %v2776 = vcombine.high %v2772, %v2772
  %v2777 = vlaneseq
  %v2778 = vshrl.u32 %v2777, 7
  %v2779 = vsub.s32 0, %v2778
  %v2780 = vrot.slane %v2751, %v2779
  %v2781 = vlaneseq
  %v2782 = vshrl.u32 %v2781, 7
  %v2783 = vsub.s32 0, %v2782
  %v2784 = vrot.slane %v2765, %v2783
  %v2785 = vlaneseq
  %v2786 = vshrl.u32 %v2785, 7
  %v2787 = vsub.s32 0, %v2786
  %v2788 = vrot.slane %v2773, %v2787
  %v2789 = vlaneseq
  %v2790 = vshrl.u32 %v2789, 7
  %v2791 = vsub.s32 0, %v2790
  %v2792 = vrot.slane %v2775, %v2791
  %v2793 = vlaneseq
  %v2794 = vshrl.u32 %v2793, 7
  %v2795 = vsub.s32 0, %v2794
  %v2796 = vrot.slane %v2758, %v2795
  %v2797 = vlaneseq
  %v2798 = vshrl.u32 %v2797, 7
  %v2799 = vsub.s32 0, %v2798
  %v2800 = vrot.slane %v2772, %v2799
  %v2801 = vlaneseq
  %v2802 = vshrl.u32 %v2801, 7
  %v2803 = vsub.s32 0, %v2802
  %v2804 = vrot.slane %v2774, %v2803
  %v2805 = vlaneseq
  %v2806 = vshrl.u32 %v2805, 7
  %v2807 = vsub.s32 0, %v2806
  %v2808 = vrot.slane %v2776, %v2807
  %v2817 = vmul.f32 %v2539, %v2780
  %v2818 = vmul.f32 %v2543, %v2780
  %v2819 = vmul.f32 %v2550, %v2784
  %v2820 = vmul.f32 %v2554, %v2784
  %v2821 = vmul.f32 %v2561, %v2788
  %v2822 = vmul.f32 %v2565, %v2788
  %v2823 = vmul.f32 %v2572, %v2792
  %v2824 = vmul.f32 %v2576, %v2792
  %v2825 = vmul.f32 %v2583, %v2796
  %v2826 = vmul.f32 %v2587, %v2796
  %v2827 = vmul.f32 %v2594, %v2800
  %v2828 = vmul.f32 %v2598, %v2800
  %v2829 = vmul.f32 %v2605, %v2804
  %v2830 = vmul.f32 %v2609, %v2804
  %v2831 = vmul.f32 %v2616, %v2808
  %v2832 = vmul.f32 %v2620, %v2808
  %v2833 = vsub.f32 1.0, %v2817
  %v2834 = vsub.f32 1.0, %v2818
  %v2835 = vsub.f32 1.0, %v2819
  %v2836 = vsub.f32 1.0, %v2820
  %v2837 = vsub.f32 1.0, %v2821
  %v2838 = vsub.f32 1.0, %v2822
  %v2839 = vsub.f32 1.0, %v2823
  %v2840 = vsub.f32 1.0, %v2824
  %v2841 = vsub.f32 1.0, %v2825
  %v2842 = vsub.f32 1.0, %v2826
  %v2843 = vsub.f32 1.0, %v2827
  %v2844 = vsub.f32 1.0, %v2828
  %v2845 = vsub.f32 1.0, %v2829
  %v2846 = vsub.f32 1.0, %v2830
  %v2847 = vsub.f32 1.0, %v2831
  %v2848 = vsub.f32 1.0, %v2832
  %v2849 = vmul.f32 %v2511, %v2833
  %v2850 = vmul.f32 %v2512, %v2834
  %v2851 = vmul.f32 %v2513, %v2835
  %v2852 = vmul.f32 %v2514, %v2836
  %v2853 = vmul.f32 %v2515, %v2837
  %v2854 = vmul.f32 %v2516, %v2838
  %v2855 = vmul.f32 %v2517, %v2839
  %v2856 = vmul.f32 %v2518, %v2840
  %v2857 = vmul.f32 %v2519, %v2841
  %v2858 = vmul.f32 %v2520, %v2842
  %v2859 = vmul.f32 %v2521, %v2843
  %v2860 = vmul.f32 %v2522, %v2844
  %v2861 = vmul.f32 %v2523, %v2845
  %v2862 = vmul.f32 %v2524, %v2846
  %v2863 = vmul.f32 %v2525, %v2847
  %v2864 = vmul.f32 %v2526, %v2848
  %v2866 = vcombine.high %v2532, %v2532
  %v2868 = vunpack.c.l.s4 1966171168
  %v2869 = vunpack.c.0.s8 %v2868
  %v2870 = vlaneseq
  %v2871 = vshrl.u32 %v2870, 7
  %v2872 = vsub.s32 %v2869, %v2871
  %v2873 = vrot.slane %v2532, %v2872
  %v2875 = vunpack.c.l.s4 1966171168
  %v2876 = vunpack.c.0.s8 %v2875
  %v2877 = vlaneseq
  %v2878 = vshrl.u32 %v2877, 7
  %v2879 = vsub.s32 %v2876, %v2878
  %v2880 = vrot.slane %v2866, %v2879
  %v2881 = vcombine.high %v2873, %v2873
  %v2882 = vcombine.high %v2880, %v2880
  %v2884 = vunpack.c.l.s4 1966171168
  %v2885 = vunpack.c.0.s8 %v2884
  %v2886 = vlaneseq
  %v2887 = vshrl.u32 %v2886, 7
  %v2888 = vsub.s32 %v2885, %v2887
  %v2889 = vrot.slane %v2873, %v2888
  %v2891 = vunpack.c.l.s4 1966171168
  %v2892 = vunpack.c.0.s8 %v2891
  %v2893 = vlaneseq
  %v2894 = vshrl.u32 %v2893, 7
  %v2895 = vsub.s32 %v2892, %v2894
  %v2896 = vrot.slane %v2880, %v2895
  %v2898 = vunpack.c.l.s4 1966171168
  %v2899 = vunpack.c.0.s8 %v2898
  %v2900 = vlaneseq
  %v2901 = vshrl.u32 %v2900, 7
  %v2902 = vsub.s32 %v2899, %v2901
  %v2903 = vrot.slane %v2881, %v2902
  %v2905 = vunpack.c.l.s4 1966171168
  %v2906 = vunpack.c.0.s8 %v2905
  %v2907 = vlaneseq
  %v2908 = vshrl.u32 %v2907, 7
  %v2909 = vsub.s32 %v2906, %v2908
  %v2910 = vrot.slane %v2882, %v2909
  %v2911 = vcombine.high %v2889, %v2889
  %v2912 = vcombine.high %v2896, %v2896
  %v2913 = vcombine.high %v2903, %v2903
  %v2914 = vcombine.high %v2910, %v2910
  %v2915 = vlaneseq
  %v2916 = vshrl.u32 %v2915, 7
  %v2917 = vsub.s32 0, %v2916
  %v2918 = vrot.slane %v2889, %v2917
  %v2919 = vlaneseq
  %v2920 = vshrl.u32 %v2919, 7
  %v2921 = vsub.s32 0, %v2920
  %v2922 = vrot.slane %v2903, %v2921
  %v2923 = vlaneseq
  %v2924 = vshrl.u32 %v2923, 7
  %v2925 = vsub.s32 0, %v2924
  %v2926 = vrot.slane %v2911, %v2925
  %v2927 = vlaneseq
  %v2928 = vshrl.u32 %v2927, 7
  %v2929 = vsub.s32 0, %v2928
  %v2930 = vrot.slane %v2913, %v2929
  %v2931 = vlaneseq
  %v2932 = vshrl.u32 %v2931, 7
  %v2933 = vsub.s32 0, %v2932
  %v2934 = vrot.slane %v2896, %v2933
  %v2935 = vlaneseq
  %v2936 = vshrl.u32 %v2935, 7
  %v2937 = vsub.s32 0, %v2936
  %v2938 = vrot.slane %v2910, %v2937
  %v2939 = vlaneseq
  %v2940 = vshrl.u32 %v2939, 7
  %v2941 = vsub.s32 0, %v2940
  %v2942 = vrot.slane %v2912, %v2941
  %v2943 = vlaneseq
  %v2944 = vshrl.u32 %v2943, 7
  %v2945 = vsub.s32 0, %v2944
  %v2946 = vrot.slane %v2914, %v2945
  %v2955 = vmul.f32 %v2539, %v2918
  %v2956 = vmul.f32 %v2543, %v2918
  %v2957 = vmul.f32 %v2550, %v2922
  %v2958 = vmul.f32 %v2554, %v2922
  %v2959 = vmul.f32 %v2561, %v2926
  %v2960 = vmul.f32 %v2565, %v2926
  %v2961 = vmul.f32 %v2572, %v2930
  %v2962 = vmul.f32 %v2576, %v2930
  %v2963 = vmul.f32 %v2583, %v2934
  %v2964 = vmul.f32 %v2587, %v2934
  %v2965 = vmul.f32 %v2594, %v2938
  %v2966 = vmul.f32 %v2598, %v2938
  %v2967 = vmul.f32 %v2605, %v2942
  %v2968 = vmul.f32 %v2609, %v2942
  %v2969 = vmul.f32 %v2616, %v2946
  %v2970 = vmul.f32 %v2620, %v2946
  %v2971 = vadd.f32 %v2849, %v2955
  %v2972 = vadd.f32 %v2850, %v2956
  %v2973 = vadd.f32 %v2851, %v2957
  %v2974 = vadd.f32 %v2852, %v2958
  %v2975 = vadd.f32 %v2853, %v2959
  %v2976 = vadd.f32 %v2854, %v2960
  %v2977 = vadd.f32 %v2855, %v2961
  %v2978 = vadd.f32 %v2856, %v2962
  %v2979 = vadd.f32 %v2857, %v2963
  %v2980 = vadd.f32 %v2858, %v2964
  %v2981 = vadd.f32 %v2859, %v2965
  %v2982 = vadd.f32 %v2860, %v2966
  %v2983 = vadd.f32 %v2861, %v2967
  %v2984 = vadd.f32 %v2862, %v2968
  %v2985 = vadd.f32 %v2863, %v2969
  %v2986 = vadd.f32 %v2864, %v2970
  %s2987 = scalar_lea.vmem [#allocation2], 32
  %v2988 = vld [vmem:[%s2987] sm:$0xff]
  %s2989 = scalar_lea.vmem [#allocation3], 32
  %v2990 = vld [vmem:[%s2989] sm:$0xff]
  %s2991 = scalar_lea.vmem [#allocation4], 32
  %v2992 = vld [vmem:[%s2991] sm:$0xff]
  %v2993 = vlaneseq
  %v2994 = vshrl.u32 %v2993, 7
  %v2995 = vsub.s32 0, %v2994
  %v2996 = vrot.slane %v2988, %v2995
  %2998 = vbcast.lane.b32.xlu0 %v2996, 256
  %v2999 = vpop.permute.xlu0 %2998
  %s3001 = sor.u32 256, 8
  %3002 = vbcast.lane.b32.xlu0 %v2996, %s3001
  %v3003 = vpop.permute.xlu0 %3002
  %v3004 = vlaneseq
  %v3005 = vshrl.u32 %v3004, 7
  %v3006 = vsub.s32 1, %v3005
  %v3007 = vrot.slane %v2988, %v3006
  %3009 = vbcast.lane.b32.xlu0 %v3007, 256
  %v3010 = vpop.permute.xlu0 %3009
  %s3012 = sor.u32 256, 8
  %3013 = vbcast.lane.b32.xlu0 %v3007, %s3012
  %v3014 = vpop.permute.xlu0 %3013
  %v3015 = vlaneseq
  %v3016 = vshrl.u32 %v3015, 7
  %v3017 = vsub.s32 2, %v3016
  %v3018 = vrot.slane %v2988, %v3017
  %3020 = vbcast.lane.b32.xlu0 %v3018, 256
  %v3021 = vpop.permute.xlu0 %3020
  %s3023 = sor.u32 256, 8
  %3024 = vbcast.lane.b32.xlu0 %v3018, %s3023
  %v3025 = vpop.permute.xlu0 %3024
  %v3026 = vlaneseq
  %v3027 = vshrl.u32 %v3026, 7
  %v3028 = vsub.s32 3, %v3027
  %v3029 = vrot.slane %v2988, %v3028
  %3031 = vbcast.lane.b32.xlu0 %v3029, 256
  %v3032 = vpop.permute.xlu0 %3031
  %s3034 = sor.u32 256, 8
  %3035 = vbcast.lane.b32.xlu0 %v3029, %s3034
  %v3036 = vpop.permute.xlu0 %3035
  %v3037 = vlaneseq
  %v3038 = vshrl.u32 %v3037, 7
  %v3039 = vsub.s32 4, %v3038
  %v3040 = vrot.slane %v2988, %v3039
  %3042 = vbcast.lane.b32.xlu0 %v3040, 256
  %v3043 = vpop.permute.xlu0 %3042
  %s3045 = sor.u32 256, 8
  %3046 = vbcast.lane.b32.xlu0 %v3040, %s3045
  %v3047 = vpop.permute.xlu0 %3046
  %v3048 = vlaneseq
  %v3049 = vshrl.u32 %v3048, 7
  %v3050 = vsub.s32 5, %v3049
  %v3051 = vrot.slane %v2988, %v3050
  %3053 = vbcast.lane.b32.xlu0 %v3051, 256
  %v3054 = vpop.permute.xlu0 %3053
  %s3056 = sor.u32 256, 8
  %3057 = vbcast.lane.b32.xlu0 %v3051, %s3056
  %v3058 = vpop.permute.xlu0 %3057
  %v3059 = vlaneseq
  %v3060 = vshrl.u32 %v3059, 7
  %v3061 = vsub.s32 6, %v3060
  %v3062 = vrot.slane %v2988, %v3061
  %3064 = vbcast.lane.b32.xlu0 %v3062, 256
  %v3065 = vpop.permute.xlu0 %3064
  %s3067 = sor.u32 256, 8
  %3068 = vbcast.lane.b32.xlu0 %v3062, %s3067
  %v3069 = vpop.permute.xlu0 %3068
  %v3070 = vlaneseq
  %v3071 = vshrl.u32 %v3070, 7
  %v3072 = vsub.s32 7, %v3071
  %v3073 = vrot.slane %v2988, %v3072
  %3075 = vbcast.lane.b32.xlu0 %v3073, 256
  %v3076 = vpop.permute.xlu0 %3075
  %s3078 = sor.u32 256, 8
  %3079 = vbcast.lane.b32.xlu0 %v3073, %s3078
  %v3080 = vpop.permute.xlu0 %3079
  %v3081 = vmul.f32 %v2999, %v2971
  %v3082 = vmul.f32 %v3003, %v2972
  %v3083 = vmul.f32 %v3010, %v2973
  %v3084 = vmul.f32 %v3014, %v2974
  %v3085 = vmul.f32 %v3021, %v2975
  %v3086 = vmul.f32 %v3025, %v2976
  %v3087 = vmul.f32 %v3032, %v2977
  %v3088 = vmul.f32 %v3036, %v2978
  %v3089 = vmul.f32 %v3043, %v2979
  %v3090 = vmul.f32 %v3047, %v2980
  %v3091 = vmul.f32 %v3054, %v2981
  %v3092 = vmul.f32 %v3058, %v2982
  %v3093 = vmul.f32 %v3065, %v2983
  %v3094 = vmul.f32 %v3069, %v2984
  %v3095 = vmul.f32 %v3076, %v2985
  %v3096 = vmul.f32 %v3080, %v2986
  %v3097 = vsel %vm579, %v3081, 0.0
  %v3098 = vsel %vm579, %v3082, 0.0
  %v3099 = vadd.f32 %v3097, %v3098
  %v3100 = vrot.slane %v3099, 4
  %v3101 = vadd.f32 %v3099, %v3100
  %v3102 = vrot.slane %v3101, 2
  %v3103 = vadd.f32 %v3101, %v3102
  %v3104 = vrot.slane %v3103, 1
  %v3105 = vadd.f32 %v3103, %v3104
  %v3106 = vsel %vm579, %v3083, 0.0
  %v3107 = vsel %vm579, %v3084, 0.0
  %v3108 = vadd.f32 %v3106, %v3107
  %v3109 = vrot.slane %v3108, 4
  %v3110 = vadd.f32 %v3108, %v3109
  %v3111 = vrot.slane %v3110, 2
  %v3112 = vadd.f32 %v3110, %v3111
  %v3113 = vrot.slane %v3112, 1
  %v3114 = vadd.f32 %v3112, %v3113
  %v3115 = vsel %vm579, %v3085, 0.0
  %v3116 = vsel %vm579, %v3086, 0.0
  %v3117 = vadd.f32 %v3115, %v3116
  %v3118 = vrot.slane %v3117, 4
  %v3119 = vadd.f32 %v3117, %v3118
  %v3120 = vrot.slane %v3119, 2
  %v3121 = vadd.f32 %v3119, %v3120
  %v3122 = vrot.slane %v3121, 1
  %v3123 = vadd.f32 %v3121, %v3122
  %v3124 = vsel %vm579, %v3087, 0.0
  %v3125 = vsel %vm579, %v3088, 0.0
  %v3126 = vadd.f32 %v3124, %v3125
  %v3127 = vrot.slane %v3126, 4
  %v3128 = vadd.f32 %v3126, %v3127
  %v3129 = vrot.slane %v3128, 2
  %v3130 = vadd.f32 %v3128, %v3129
  %v3131 = vrot.slane %v3130, 1
  %v3132 = vadd.f32 %v3130, %v3131
  %v3133 = vsel %vm579, %v3089, 0.0
  %v3134 = vsel %vm579, %v3090, 0.0
  %v3135 = vadd.f32 %v3133, %v3134
  %v3136 = vrot.slane %v3135, 4
  %v3137 = vadd.f32 %v3135, %v3136
  %v3138 = vrot.slane %v3137, 2
  %v3139 = vadd.f32 %v3137, %v3138
  %v3140 = vrot.slane %v3139, 1
  %v3141 = vadd.f32 %v3139, %v3140
  %v3142 = vsel %vm579, %v3091, 0.0
  %v3143 = vsel %vm579, %v3092, 0.0
  %v3144 = vadd.f32 %v3142, %v3143
  %v3145 = vrot.slane %v3144, 4
  %v3146 = vadd.f32 %v3144, %v3145
  %v3147 = vrot.slane %v3146, 2
  %v3148 = vadd.f32 %v3146, %v3147
  %v3149 = vrot.slane %v3148, 1
  %v3150 = vadd.f32 %v3148, %v3149
  %v3151 = vsel %vm579, %v3093, 0.0
  %v3152 = vsel %vm579, %v3094, 0.0
  %v3153 = vadd.f32 %v3151, %v3152
  %v3154 = vrot.slane %v3153, 4
  %v3155 = vadd.f32 %v3153, %v3154
  %v3156 = vrot.slane %v3155, 2
  %v3157 = vadd.f32 %v3155, %v3156
  %v3158 = vrot.slane %v3157, 1
  %v3159 = vadd.f32 %v3157, %v3158
  %v3160 = vsel %vm579, %v3095, 0.0
  %v3161 = vsel %vm579, %v3096, 0.0
  %v3162 = vadd.f32 %v3160, %v3161
  %v3163 = vrot.slane %v3162, 4
  %v3164 = vadd.f32 %v3162, %v3163
  %v3165 = vrot.slane %v3164, 2
  %v3166 = vadd.f32 %v3164, %v3165
  %v3167 = vrot.slane %v3166, 1
  %v3168 = vadd.f32 %v3166, %v3167
  %v3177 = vsel %vm1331, %v3114, %v3105
  %v3178 = vsel %vm1333, %v3123, %v3177
  %v3179 = vsel %vm1335, %v3132, %v3178
  %v3180 = vsel %vm1337, %v3141, %v3179
  %v3181 = vsel %vm1339, %v3150, %v3180
  %v3182 = vsel %vm1341, %v3159, %v3181
  %v3183 = vsel %vm1343, %v3168, %v3182
  %s3185 = scalar_lea.vmem [#allocation6], 32
  %3186 = vst.msk [vmem:[%s3185] sm:$0xff] %vm579, %v3183
  %v3188 = vcombine.high %v2990, %v2990
  %v3190 = vunpack.c.l.s4 1966171168
  %v3191 = vunpack.c.0.s8 %v3190
  %v3192 = vlaneseq
  %v3193 = vshrl.u32 %v3192, 7
  %v3194 = vsub.s32 %v3191, %v3193
  %v3195 = vrot.slane %v2990, %v3194
  %v3197 = vunpack.c.l.s4 1966171168
  %v3198 = vunpack.c.0.s8 %v3197
  %v3199 = vlaneseq
  %v3200 = vshrl.u32 %v3199, 7
  %v3201 = vsub.s32 %v3198, %v3200
  %v3202 = vrot.slane %v3188, %v3201
  %v3203 = vcombine.high %v3195, %v3195
  %v3204 = vcombine.high %v3202, %v3202
  %v3206 = vunpack.c.l.s4 1966171168
  %v3207 = vunpack.c.0.s8 %v3206
  %v3208 = vlaneseq
  %v3209 = vshrl.u32 %v3208, 7
  %v3210 = vsub.s32 %v3207, %v3209
  %v3211 = vrot.slane %v3195, %v3210
  %v3213 = vunpack.c.l.s4 1966171168
  %v3214 = vunpack.c.0.s8 %v3213
  %v3215 = vlaneseq
  %v3216 = vshrl.u32 %v3215, 7
  %v3217 = vsub.s32 %v3214, %v3216
  %v3218 = vrot.slane %v3202, %v3217
  %v3220 = vunpack.c.l.s4 1966171168
  %v3221 = vunpack.c.0.s8 %v3220
  %v3222 = vlaneseq
  %v3223 = vshrl.u32 %v3222, 7
  %v3224 = vsub.s32 %v3221, %v3223
  %v3225 = vrot.slane %v3203, %v3224
  %v3227 = vunpack.c.l.s4 1966171168
  %v3228 = vunpack.c.0.s8 %v3227
  %v3229 = vlaneseq
  %v3230 = vshrl.u32 %v3229, 7
  %v3231 = vsub.s32 %v3228, %v3230
  %v3232 = vrot.slane %v3204, %v3231
  %v3233 = vcombine.high %v3211, %v3211
  %v3234 = vcombine.high %v3218, %v3218
  %v3235 = vcombine.high %v3225, %v3225
  %v3236 = vcombine.high %v3232, %v3232
  %v3237 = vlaneseq
  %v3238 = vshrl.u32 %v3237, 7
  %v3239 = vsub.s32 0, %v3238
  %v3240 = vrot.slane %v3211, %v3239
  %v3241 = vlaneseq
  %v3242 = vshrl.u32 %v3241, 7
  %v3243 = vsub.s32 0, %v3242
  %v3244 = vrot.slane %v3225, %v3243
  %v3245 = vlaneseq
  %v3246 = vshrl.u32 %v3245, 7
  %v3247 = vsub.s32 0, %v3246
  %v3248 = vrot.slane %v3233, %v3247
  %v3249 = vlaneseq
  %v3250 = vshrl.u32 %v3249, 7
  %v3251 = vsub.s32 0, %v3250
  %v3252 = vrot.slane %v3235, %v3251
  %v3253 = vlaneseq
  %v3254 = vshrl.u32 %v3253, 7
  %v3255 = vsub.s32 0, %v3254
  %v3256 = vrot.slane %v3218, %v3255
  %v3257 = vlaneseq
  %v3258 = vshrl.u32 %v3257, 7
  %v3259 = vsub.s32 0, %v3258
  %v3260 = vrot.slane %v3232, %v3259
  %v3261 = vlaneseq
  %v3262 = vshrl.u32 %v3261, 7
  %v3263 = vsub.s32 0, %v3262
  %v3264 = vrot.slane %v3234, %v3263
  %v3265 = vlaneseq
  %v3266 = vshrl.u32 %v3265, 7
  %v3267 = vsub.s32 0, %v3266
  %v3268 = vrot.slane %v3236, %v3267
  %v3277 = vmul.f32 %v2999, %v3240
  %v3278 = vmul.f32 %v3003, %v3240
  %v3279 = vmul.f32 %v3010, %v3244
  %v3280 = vmul.f32 %v3014, %v3244
  %v3281 = vmul.f32 %v3021, %v3248
  %v3282 = vmul.f32 %v3025, %v3248
  %v3283 = vmul.f32 %v3032, %v3252
  %v3284 = vmul.f32 %v3036, %v3252
  %v3285 = vmul.f32 %v3043, %v3256
  %v3286 = vmul.f32 %v3047, %v3256
  %v3287 = vmul.f32 %v3054, %v3260
  %v3288 = vmul.f32 %v3058, %v3260
  %v3289 = vmul.f32 %v3065, %v3264
  %v3290 = vmul.f32 %v3069, %v3264
  %v3291 = vmul.f32 %v3076, %v3268
  %v3292 = vmul.f32 %v3080, %v3268
  %v3293 = vsub.f32 1.0, %v3277
  %v3294 = vsub.f32 1.0, %v3278
  %v3295 = vsub.f32 1.0, %v3279
  %v3296 = vsub.f32 1.0, %v3280
  %v3297 = vsub.f32 1.0, %v3281
  %v3298 = vsub.f32 1.0, %v3282
  %v3299 = vsub.f32 1.0, %v3283
  %v3300 = vsub.f32 1.0, %v3284
  %v3301 = vsub.f32 1.0, %v3285
  %v3302 = vsub.f32 1.0, %v3286
  %v3303 = vsub.f32 1.0, %v3287
  %v3304 = vsub.f32 1.0, %v3288
  %v3305 = vsub.f32 1.0, %v3289
  %v3306 = vsub.f32 1.0, %v3290
  %v3307 = vsub.f32 1.0, %v3291
  %v3308 = vsub.f32 1.0, %v3292
  %v3309 = vmul.f32 %v2971, %v3293
  %v3310 = vmul.f32 %v2972, %v3294
  %v3311 = vmul.f32 %v2973, %v3295
  %v3312 = vmul.f32 %v2974, %v3296
  %v3313 = vmul.f32 %v2975, %v3297
  %v3314 = vmul.f32 %v2976, %v3298
  %v3315 = vmul.f32 %v2977, %v3299
  %v3316 = vmul.f32 %v2978, %v3300
  %v3317 = vmul.f32 %v2979, %v3301
  %v3318 = vmul.f32 %v2980, %v3302
  %v3319 = vmul.f32 %v2981, %v3303
  %v3320 = vmul.f32 %v2982, %v3304
  %v3321 = vmul.f32 %v2983, %v3305
  %v3322 = vmul.f32 %v2984, %v3306
  %v3323 = vmul.f32 %v2985, %v3307
  %v3324 = vmul.f32 %v2986, %v3308
  %v3326 = vcombine.high %v2992, %v2992
  %v3328 = vunpack.c.l.s4 1966171168
  %v3329 = vunpack.c.0.s8 %v3328
  %v3330 = vlaneseq
  %v3331 = vshrl.u32 %v3330, 7
  %v3332 = vsub.s32 %v3329, %v3331
  %v3333 = vrot.slane %v2992, %v3332
  %v3335 = vunpack.c.l.s4 1966171168
  %v3336 = vunpack.c.0.s8 %v3335
  %v3337 = vlaneseq
  %v3338 = vshrl.u32 %v3337, 7
  %v3339 = vsub.s32 %v3336, %v3338
  %v3340 = vrot.slane %v3326, %v3339
  %v3341 = vcombine.high %v3333, %v3333
  %v3342 = vcombine.high %v3340, %v3340
  %v3344 = vunpack.c.l.s4 1966171168
  %v3345 = vunpack.c.0.s8 %v3344
  %v3346 = vlaneseq
  %v3347 = vshrl.u32 %v3346, 7
  %v3348 = vsub.s32 %v3345, %v3347
  %v3349 = vrot.slane %v3333, %v3348
  %v3351 = vunpack.c.l.s4 1966171168
  %v3352 = vunpack.c.0.s8 %v3351
  %v3353 = vlaneseq
  %v3354 = vshrl.u32 %v3353, 7
  %v3355 = vsub.s32 %v3352, %v3354
  %v3356 = vrot.slane %v3340, %v3355
  %v3358 = vunpack.c.l.s4 1966171168
  %v3359 = vunpack.c.0.s8 %v3358
  %v3360 = vlaneseq
  %v3361 = vshrl.u32 %v3360, 7
  %v3362 = vsub.s32 %v3359, %v3361
  %v3363 = vrot.slane %v3341, %v3362
  %v3365 = vunpack.c.l.s4 1966171168
  %v3366 = vunpack.c.0.s8 %v3365
  %v3367 = vlaneseq
  %v3368 = vshrl.u32 %v3367, 7
  %v3369 = vsub.s32 %v3366, %v3368
  %v3370 = vrot.slane %v3342, %v3369
  %v3371 = vcombine.high %v3349, %v3349
  %v3372 = vcombine.high %v3356, %v3356
  %v3373 = vcombine.high %v3363, %v3363
  %v3374 = vcombine.high %v3370, %v3370
  %v3375 = vlaneseq
  %v3376 = vshrl.u32 %v3375, 7
  %v3377 = vsub.s32 0, %v3376
  %v3378 = vrot.slane %v3349, %v3377
  %v3379 = vlaneseq
  %v3380 = vshrl.u32 %v3379, 7
  %v3381 = vsub.s32 0, %v3380
  %v3382 = vrot.slane %v3363, %v3381
  %v3383 = vlaneseq
  %v3384 = vshrl.u32 %v3383, 7
  %v3385 = vsub.s32 0, %v3384
  %v3386 = vrot.slane %v3371, %v3385
  %v3387 = vlaneseq
  %v3388 = vshrl.u32 %v3387, 7
  %v3389 = vsub.s32 0, %v3388
  %v3390 = vrot.slane %v3373, %v3389
  %v3391 = vlaneseq
  %v3392 = vshrl.u32 %v3391, 7
  %v3393 = vsub.s32 0, %v3392
  %v3394 = vrot.slane %v3356, %v3393
  %v3395 = vlaneseq
  %v3396 = vshrl.u32 %v3395, 7
  %v3397 = vsub.s32 0, %v3396
  %v3398 = vrot.slane %v3370, %v3397
  %v3399 = vlaneseq
  %v3400 = vshrl.u32 %v3399, 7
  %v3401 = vsub.s32 0, %v3400
  %v3402 = vrot.slane %v3372, %v3401
  %v3403 = vlaneseq
  %v3404 = vshrl.u32 %v3403, 7
  %v3405 = vsub.s32 0, %v3404
  %v3406 = vrot.slane %v3374, %v3405
  %v3415 = vmul.f32 %v2999, %v3378
  %v3416 = vmul.f32 %v3003, %v3378
  %v3417 = vmul.f32 %v3010, %v3382
  %v3418 = vmul.f32 %v3014, %v3382
  %v3419 = vmul.f32 %v3021, %v3386
  %v3420 = vmul.f32 %v3025, %v3386
  %v3421 = vmul.f32 %v3032, %v3390
  %v3422 = vmul.f32 %v3036, %v3390
  %v3423 = vmul.f32 %v3043, %v3394
  %v3424 = vmul.f32 %v3047, %v3394
  %v3425 = vmul.f32 %v3054, %v3398
  %v3426 = vmul.f32 %v3058, %v3398
  %v3427 = vmul.f32 %v3065, %v3402
  %v3428 = vmul.f32 %v3069, %v3402
  %v3429 = vmul.f32 %v3076, %v3406
  %v3430 = vmul.f32 %v3080, %v3406
  %v3431 = vadd.f32 %v3309, %v3415
  %v3432 = vadd.f32 %v3310, %v3416
  %v3433 = vadd.f32 %v3311, %v3417
  %v3434 = vadd.f32 %v3312, %v3418
  %v3435 = vadd.f32 %v3313, %v3419
  %v3436 = vadd.f32 %v3314, %v3420
  %v3437 = vadd.f32 %v3315, %v3421
  %v3438 = vadd.f32 %v3316, %v3422
  %v3439 = vadd.f32 %v3317, %v3423
  %v3440 = vadd.f32 %v3318, %v3424
  %v3441 = vadd.f32 %v3319, %v3425
  %v3442 = vadd.f32 %v3320, %v3426
  %v3443 = vadd.f32 %v3321, %v3427
  %v3444 = vadd.f32 %v3322, %v3428
  %v3445 = vadd.f32 %v3323, %v3429
  %v3446 = vadd.f32 %v3324, %v3430
  %s3447 = scalar_lea.vmem [#allocation2], 40
  %v3448 = vld [vmem:[%s3447] sm:$0xff]
  %s3449 = scalar_lea.vmem [#allocation3], 40
  %v3450 = vld [vmem:[%s3449] sm:$0xff]
  %s3451 = scalar_lea.vmem [#allocation4], 40
  %v3452 = vld [vmem:[%s3451] sm:$0xff]
  %v3453 = vlaneseq
  %v3454 = vshrl.u32 %v3453, 7
  %v3455 = vsub.s32 0, %v3454
  %v3456 = vrot.slane %v3448, %v3455
  %3458 = vbcast.lane.b32.xlu0 %v3456, 256
  %v3459 = vpop.permute.xlu0 %3458
  %s3461 = sor.u32 256, 8
  %3462 = vbcast.lane.b32.xlu0 %v3456, %s3461
  %v3463 = vpop.permute.xlu0 %3462
  %v3464 = vlaneseq
  %v3465 = vshrl.u32 %v3464, 7
  %v3466 = vsub.s32 1, %v3465
  %v3467 = vrot.slane %v3448, %v3466
  %3469 = vbcast.lane.b32.xlu0 %v3467, 256
  %v3470 = vpop.permute.xlu0 %3469
  %s3472 = sor.u32 256, 8
  %3473 = vbcast.lane.b32.xlu0 %v3467, %s3472
  %v3474 = vpop.permute.xlu0 %3473
  %v3475 = vlaneseq
  %v3476 = vshrl.u32 %v3475, 7
  %v3477 = vsub.s32 2, %v3476
  %v3478 = vrot.slane %v3448, %v3477
  %3480 = vbcast.lane.b32.xlu0 %v3478, 256
  %v3481 = vpop.permute.xlu0 %3480
  %s3483 = sor.u32 256, 8
  %3484 = vbcast.lane.b32.xlu0 %v3478, %s3483
  %v3485 = vpop.permute.xlu0 %3484
  %v3486 = vlaneseq
  %v3487 = vshrl.u32 %v3486, 7
  %v3488 = vsub.s32 3, %v3487
  %v3489 = vrot.slane %v3448, %v3488
  %3491 = vbcast.lane.b32.xlu0 %v3489, 256
  %v3492 = vpop.permute.xlu0 %3491
  %s3494 = sor.u32 256, 8
  %3495 = vbcast.lane.b32.xlu0 %v3489, %s3494
  %v3496 = vpop.permute.xlu0 %3495
  %v3497 = vlaneseq
  %v3498 = vshrl.u32 %v3497, 7
  %v3499 = vsub.s32 4, %v3498
  %v3500 = vrot.slane %v3448, %v3499
  %3502 = vbcast.lane.b32.xlu0 %v3500, 256
  %v3503 = vpop.permute.xlu0 %3502
  %s3505 = sor.u32 256, 8
  %3506 = vbcast.lane.b32.xlu0 %v3500, %s3505
  %v3507 = vpop.permute.xlu0 %3506
  %v3508 = vlaneseq
  %v3509 = vshrl.u32 %v3508, 7
  %v3510 = vsub.s32 5, %v3509
  %v3511 = vrot.slane %v3448, %v3510
  %3513 = vbcast.lane.b32.xlu0 %v3511, 256
  %v3514 = vpop.permute.xlu0 %3513
  %s3516 = sor.u32 256, 8
  %3517 = vbcast.lane.b32.xlu0 %v3511, %s3516
  %v3518 = vpop.permute.xlu0 %3517
  %v3519 = vlaneseq
  %v3520 = vshrl.u32 %v3519, 7
  %v3521 = vsub.s32 6, %v3520
  %v3522 = vrot.slane %v3448, %v3521
  %3524 = vbcast.lane.b32.xlu0 %v3522, 256
  %v3525 = vpop.permute.xlu0 %3524
  %s3527 = sor.u32 256, 8
  %3528 = vbcast.lane.b32.xlu0 %v3522, %s3527
  %v3529 = vpop.permute.xlu0 %3528
  %v3530 = vlaneseq
  %v3531 = vshrl.u32 %v3530, 7
  %v3532 = vsub.s32 7, %v3531
  %v3533 = vrot.slane %v3448, %v3532
  %3535 = vbcast.lane.b32.xlu0 %v3533, 256
  %v3536 = vpop.permute.xlu0 %3535
  %s3538 = sor.u32 256, 8
  %3539 = vbcast.lane.b32.xlu0 %v3533, %s3538
  %v3540 = vpop.permute.xlu0 %3539
  %v3541 = vmul.f32 %v3459, %v3431
  %v3542 = vmul.f32 %v3463, %v3432
  %v3543 = vmul.f32 %v3470, %v3433
  %v3544 = vmul.f32 %v3474, %v3434
  %v3545 = vmul.f32 %v3481, %v3435
  %v3546 = vmul.f32 %v3485, %v3436
  %v3547 = vmul.f32 %v3492, %v3437
  %v3548 = vmul.f32 %v3496, %v3438
  %v3549 = vmul.f32 %v3503, %v3439
  %v3550 = vmul.f32 %v3507, %v3440
  %v3551 = vmul.f32 %v3514, %v3441
  %v3552 = vmul.f32 %v3518, %v3442
  %v3553 = vmul.f32 %v3525, %v3443
  %v3554 = vmul.f32 %v3529, %v3444
  %v3555 = vmul.f32 %v3536, %v3445
  %v3556 = vmul.f32 %v3540, %v3446
  %v3557 = vsel %vm579, %v3541, 0.0
  %v3558 = vsel %vm579, %v3542, 0.0
  %v3559 = vadd.f32 %v3557, %v3558
  %v3560 = vrot.slane %v3559, 4
  %v3561 = vadd.f32 %v3559, %v3560
  %v3562 = vrot.slane %v3561, 2
  %v3563 = vadd.f32 %v3561, %v3562
  %v3564 = vrot.slane %v3563, 1
  %v3565 = vadd.f32 %v3563, %v3564
  %v3566 = vsel %vm579, %v3543, 0.0
  %v3567 = vsel %vm579, %v3544, 0.0
  %v3568 = vadd.f32 %v3566, %v3567
  %v3569 = vrot.slane %v3568, 4
  %v3570 = vadd.f32 %v3568, %v3569
  %v3571 = vrot.slane %v3570, 2
  %v3572 = vadd.f32 %v3570, %v3571
  %v3573 = vrot.slane %v3572, 1
  %v3574 = vadd.f32 %v3572, %v3573
  %v3575 = vsel %vm579, %v3545, 0.0
  %v3576 = vsel %vm579, %v3546, 0.0
  %v3577 = vadd.f32 %v3575, %v3576
  %v3578 = vrot.slane %v3577, 4
  %v3579 = vadd.f32 %v3577, %v3578
  %v3580 = vrot.slane %v3579, 2
  %v3581 = vadd.f32 %v3579, %v3580
  %v3582 = vrot.slane %v3581, 1
  %v3583 = vadd.f32 %v3581, %v3582
  %v3584 = vsel %vm579, %v3547, 0.0
  %v3585 = vsel %vm579, %v3548, 0.0
  %v3586 = vadd.f32 %v3584, %v3585
  %v3587 = vrot.slane %v3586, 4
  %v3588 = vadd.f32 %v3586, %v3587
  %v3589 = vrot.slane %v3588, 2
  %v3590 = vadd.f32 %v3588, %v3589
  %v3591 = vrot.slane %v3590, 1
  %v3592 = vadd.f32 %v3590, %v3591
  %v3593 = vsel %vm579, %v3549, 0.0
  %v3594 = vsel %vm579, %v3550, 0.0
  %v3595 = vadd.f32 %v3593, %v3594
  %v3596 = vrot.slane %v3595, 4
  %v3597 = vadd.f32 %v3595, %v3596
  %v3598 = vrot.slane %v3597, 2
  %v3599 = vadd.f32 %v3597, %v3598
  %v3600 = vrot.slane %v3599, 1
  %v3601 = vadd.f32 %v3599, %v3600
  %v3602 = vsel %vm579, %v3551, 0.0
  %v3603 = vsel %vm579, %v3552, 0.0
  %v3604 = vadd.f32 %v3602, %v3603
  %v3605 = vrot.slane %v3604, 4
  %v3606 = vadd.f32 %v3604, %v3605
  %v3607 = vrot.slane %v3606, 2
  %v3608 = vadd.f32 %v3606, %v3607
  %v3609 = vrot.slane %v3608, 1
  %v3610 = vadd.f32 %v3608, %v3609
  %v3611 = vsel %vm579, %v3553, 0.0
  %v3612 = vsel %vm579, %v3554, 0.0
  %v3613 = vadd.f32 %v3611, %v3612
  %v3614 = vrot.slane %v3613, 4
  %v3615 = vadd.f32 %v3613, %v3614
  %v3616 = vrot.slane %v3615, 2
  %v3617 = vadd.f32 %v3615, %v3616
  %v3618 = vrot.slane %v3617, 1
  %v3619 = vadd.f32 %v3617, %v3618
  %v3620 = vsel %vm579, %v3555, 0.0
  %v3621 = vsel %vm579, %v3556, 0.0
  %v3622 = vadd.f32 %v3620, %v3621
  %v3623 = vrot.slane %v3622, 4
  %v3624 = vadd.f32 %v3622, %v3623
  %v3625 = vrot.slane %v3624, 2
  %v3626 = vadd.f32 %v3624, %v3625
  %v3627 = vrot.slane %v3626, 1
  %v3628 = vadd.f32 %v3626, %v3627
  %v3637 = vsel %vm1331, %v3574, %v3565
  %v3638 = vsel %vm1333, %v3583, %v3637
  %v3639 = vsel %vm1335, %v3592, %v3638
  %v3640 = vsel %vm1337, %v3601, %v3639
  %v3641 = vsel %vm1339, %v3610, %v3640
  %v3642 = vsel %vm1341, %v3619, %v3641
  %v3643 = vsel %vm1343, %v3628, %v3642
  %s3645 = scalar_lea.vmem [#allocation6], 40
  %3646 = vst.msk [vmem:[%s3645] sm:$0xff] %vm579, %v3643
  %v3648 = vcombine.high %v3450, %v3450
  %v3650 = vunpack.c.l.s4 1966171168
  %v3651 = vunpack.c.0.s8 %v3650
  %v3652 = vlaneseq
  %v3653 = vshrl.u32 %v3652, 7
  %v3654 = vsub.s32 %v3651, %v3653
  %v3655 = vrot.slane %v3450, %v3654
  %v3657 = vunpack.c.l.s4 1966171168
  %v3658 = vunpack.c.0.s8 %v3657
  %v3659 = vlaneseq
  %v3660 = vshrl.u32 %v3659, 7
  %v3661 = vsub.s32 %v3658, %v3660
  %v3662 = vrot.slane %v3648, %v3661
  %v3663 = vcombine.high %v3655, %v3655
  %v3664 = vcombine.high %v3662, %v3662
  %v3666 = vunpack.c.l.s4 1966171168
  %v3667 = vunpack.c.0.s8 %v3666
  %v3668 = vlaneseq
  %v3669 = vshrl.u32 %v3668, 7
  %v3670 = vsub.s32 %v3667, %v3669
  %v3671 = vrot.slane %v3655, %v3670
  %v3673 = vunpack.c.l.s4 1966171168
  %v3674 = vunpack.c.0.s8 %v3673
  %v3675 = vlaneseq
  %v3676 = vshrl.u32 %v3675, 7
  %v3677 = vsub.s32 %v3674, %v3676
  %v3678 = vrot.slane %v3662, %v3677
  %v3680 = vunpack.c.l.s4 1966171168
  %v3681 = vunpack.c.0.s8 %v3680
  %v3682 = vlaneseq
  %v3683 = vshrl.u32 %v3682, 7
  %v3684 = vsub.s32 %v3681, %v3683
  %v3685 = vrot.slane %v3663, %v3684
  %v3687 = vunpack.c.l.s4 1966171168
  %v3688 = vunpack.c.0.s8 %v3687
  %v3689 = vlaneseq
  %v3690 = vshrl.u32 %v3689, 7
  %v3691 = vsub.s32 %v3688, %v3690
  %v3692 = vrot.slane %v3664, %v3691
  %v3693 = vcombine.high %v3671, %v3671
  %v3694 = vcombine.high %v3678, %v3678
  %v3695 = vcombine.high %v3685, %v3685
  %v3696 = vcombine.high %v3692, %v3692
  %v3697 = vlaneseq
  %v3698 = vshrl.u32 %v3697, 7
  %v3699 = vsub.s32 0, %v3698
  %v3700 = vrot.slane %v3671, %v3699
  %v3701 = vlaneseq
  %v3702 = vshrl.u32 %v3701, 7
  %v3703 = vsub.s32 0, %v3702
  %v3704 = vrot.slane %v3685, %v3703
  %v3705 = vlaneseq
  %v3706 = vshrl.u32 %v3705, 7
  %v3707 = vsub.s32 0, %v3706
  %v3708 = vrot.slane %v3693, %v3707
  %v3709 = vlaneseq
  %v3710 = vshrl.u32 %v3709, 7
  %v3711 = vsub.s32 0, %v3710
  %v3712 = vrot.slane %v3695, %v3711
  %v3713 = vlaneseq
  %v3714 = vshrl.u32 %v3713, 7
  %v3715 = vsub.s32 0, %v3714
  %v3716 = vrot.slane %v3678, %v3715
  %v3717 = vlaneseq
  %v3718 = vshrl.u32 %v3717, 7
  %v3719 = vsub.s32 0, %v3718
  %v3720 = vrot.slane %v3692, %v3719
  %v3721 = vlaneseq
  %v3722 = vshrl.u32 %v3721, 7
  %v3723 = vsub.s32 0, %v3722
  %v3724 = vrot.slane %v3694, %v3723
  %v3725 = vlaneseq
  %v3726 = vshrl.u32 %v3725, 7
  %v3727 = vsub.s32 0, %v3726
  %v3728 = vrot.slane %v3696, %v3727
  %v3737 = vmul.f32 %v3459, %v3700
  %v3738 = vmul.f32 %v3463, %v3700
  %v3739 = vmul.f32 %v3470, %v3704
  %v3740 = vmul.f32 %v3474, %v3704
  %v3741 = vmul.f32 %v3481, %v3708
  %v3742 = vmul.f32 %v3485, %v3708
  %v3743 = vmul.f32 %v3492, %v3712
  %v3744 = vmul.f32 %v3496, %v3712
  %v3745 = vmul.f32 %v3503, %v3716
  %v3746 = vmul.f32 %v3507, %v3716
  %v3747 = vmul.f32 %v3514, %v3720
  %v3748 = vmul.f32 %v3518, %v3720
  %v3749 = vmul.f32 %v3525, %v3724
  %v3750 = vmul.f32 %v3529, %v3724
  %v3751 = vmul.f32 %v3536, %v3728
  %v3752 = vmul.f32 %v3540, %v3728
  %v3753 = vsub.f32 1.0, %v3737
  %v3754 = vsub.f32 1.0, %v3738
  %v3755 = vsub.f32 1.0, %v3739
  %v3756 = vsub.f32 1.0, %v3740
  %v3757 = vsub.f32 1.0, %v3741
  %v3758 = vsub.f32 1.0, %v3742
  %v3759 = vsub.f32 1.0, %v3743
  %v3760 = vsub.f32 1.0, %v3744
  %v3761 = vsub.f32 1.0, %v3745
  %v3762 = vsub.f32 1.0, %v3746
  %v3763 = vsub.f32 1.0, %v3747
  %v3764 = vsub.f32 1.0, %v3748
  %v3765 = vsub.f32 1.0, %v3749
  %v3766 = vsub.f32 1.0, %v3750
  %v3767 = vsub.f32 1.0, %v3751
  %v3768 = vsub.f32 1.0, %v3752
  %v3769 = vmul.f32 %v3431, %v3753
  %v3770 = vmul.f32 %v3432, %v3754
  %v3771 = vmul.f32 %v3433, %v3755
  %v3772 = vmul.f32 %v3434, %v3756
  %v3773 = vmul.f32 %v3435, %v3757
  %v3774 = vmul.f32 %v3436, %v3758
  %v3775 = vmul.f32 %v3437, %v3759
  %v3776 = vmul.f32 %v3438, %v3760
  %v3777 = vmul.f32 %v3439, %v3761
  %v3778 = vmul.f32 %v3440, %v3762
  %v3779 = vmul.f32 %v3441, %v3763
  %v3780 = vmul.f32 %v3442, %v3764
  %v3781 = vmul.f32 %v3443, %v3765
  %v3782 = vmul.f32 %v3444, %v3766
  %v3783 = vmul.f32 %v3445, %v3767
  %v3784 = vmul.f32 %v3446, %v3768
  %v3786 = vcombine.high %v3452, %v3452
  %v3788 = vunpack.c.l.s4 1966171168
  %v3789 = vunpack.c.0.s8 %v3788
  %v3790 = vlaneseq
  %v3791 = vshrl.u32 %v3790, 7
  %v3792 = vsub.s32 %v3789, %v3791
  %v3793 = vrot.slane %v3452, %v3792
  %v3795 = vunpack.c.l.s4 1966171168
  %v3796 = vunpack.c.0.s8 %v3795
  %v3797 = vlaneseq
  %v3798 = vshrl.u32 %v3797, 7
  %v3799 = vsub.s32 %v3796, %v3798
  %v3800 = vrot.slane %v3786, %v3799
  %v3801 = vcombine.high %v3793, %v3793
  %v3802 = vcombine.high %v3800, %v3800
  %v3804 = vunpack.c.l.s4 1966171168
  %v3805 = vunpack.c.0.s8 %v3804
  %v3806 = vlaneseq
  %v3807 = vshrl.u32 %v3806, 7
  %v3808 = vsub.s32 %v3805, %v3807
  %v3809 = vrot.slane %v3793, %v3808
  %v3811 = vunpack.c.l.s4 1966171168
  %v3812 = vunpack.c.0.s8 %v3811
  %v3813 = vlaneseq
  %v3814 = vshrl.u32 %v3813, 7
  %v3815 = vsub.s32 %v3812, %v3814
  %v3816 = vrot.slane %v3800, %v3815
  %v3818 = vunpack.c.l.s4 1966171168
  %v3819 = vunpack.c.0.s8 %v3818
  %v3820 = vlaneseq
  %v3821 = vshrl.u32 %v3820, 7
  %v3822 = vsub.s32 %v3819, %v3821
  %v3823 = vrot.slane %v3801, %v3822
  %v3825 = vunpack.c.l.s4 1966171168
  %v3826 = vunpack.c.0.s8 %v3825
  %v3827 = vlaneseq
  %v3828 = vshrl.u32 %v3827, 7
  %v3829 = vsub.s32 %v3826, %v3828
  %v3830 = vrot.slane %v3802, %v3829
  %v3831 = vcombine.high %v3809, %v3809
  %v3832 = vcombine.high %v3816, %v3816
  %v3833 = vcombine.high %v3823, %v3823
  %v3834 = vcombine.high %v3830, %v3830
  %v3835 = vlaneseq
  %v3836 = vshrl.u32 %v3835, 7
  %v3837 = vsub.s32 0, %v3836
  %v3838 = vrot.slane %v3809, %v3837
  %v3839 = vlaneseq
  %v3840 = vshrl.u32 %v3839, 7
  %v3841 = vsub.s32 0, %v3840
  %v3842 = vrot.slane %v3823, %v3841
  %v3843 = vlaneseq
  %v3844 = vshrl.u32 %v3843, 7
  %v3845 = vsub.s32 0, %v3844
  %v3846 = vrot.slane %v3831, %v3845
  %v3847 = vlaneseq
  %v3848 = vshrl.u32 %v3847, 7
  %v3849 = vsub.s32 0, %v3848
  %v3850 = vrot.slane %v3833, %v3849
  %v3851 = vlaneseq
  %v3852 = vshrl.u32 %v3851, 7
  %v3853 = vsub.s32 0, %v3852
  %v3854 = vrot.slane %v3816, %v3853
  %v3855 = vlaneseq
  %v3856 = vshrl.u32 %v3855, 7
  %v3857 = vsub.s32 0, %v3856
  %v3858 = vrot.slane %v3830, %v3857
  %v3859 = vlaneseq
  %v3860 = vshrl.u32 %v3859, 7
  %v3861 = vsub.s32 0, %v3860
  %v3862 = vrot.slane %v3832, %v3861
  %v3863 = vlaneseq
  %v3864 = vshrl.u32 %v3863, 7
  %v3865 = vsub.s32 0, %v3864
  %v3866 = vrot.slane %v3834, %v3865
  %v3875 = vmul.f32 %v3459, %v3838
  %v3876 = vmul.f32 %v3463, %v3838
  %v3877 = vmul.f32 %v3470, %v3842
  %v3878 = vmul.f32 %v3474, %v3842
  %v3879 = vmul.f32 %v3481, %v3846
  %v3880 = vmul.f32 %v3485, %v3846
  %v3881 = vmul.f32 %v3492, %v3850
  %v3882 = vmul.f32 %v3496, %v3850
  %v3883 = vmul.f32 %v3503, %v3854
  %v3884 = vmul.f32 %v3507, %v3854
  %v3885 = vmul.f32 %v3514, %v3858
  %v3886 = vmul.f32 %v3518, %v3858
  %v3887 = vmul.f32 %v3525, %v3862
  %v3888 = vmul.f32 %v3529, %v3862
  %v3889 = vmul.f32 %v3536, %v3866
  %v3890 = vmul.f32 %v3540, %v3866
  %v3891 = vadd.f32 %v3769, %v3875
  %v3892 = vadd.f32 %v3770, %v3876
  %v3893 = vadd.f32 %v3771, %v3877
  %v3894 = vadd.f32 %v3772, %v3878
  %v3895 = vadd.f32 %v3773, %v3879
  %v3896 = vadd.f32 %v3774, %v3880
  %v3897 = vadd.f32 %v3775, %v3881
  %v3898 = vadd.f32 %v3776, %v3882
  %v3899 = vadd.f32 %v3777, %v3883
  %v3900 = vadd.f32 %v3778, %v3884
  %v3901 = vadd.f32 %v3779, %v3885
  %v3902 = vadd.f32 %v3780, %v3886
  %v3903 = vadd.f32 %v3781, %v3887
  %v3904 = vadd.f32 %v3782, %v3888
  %v3905 = vadd.f32 %v3783, %v3889
  %v3906 = vadd.f32 %v3784, %v3890
  %s3907 = scalar_lea.vmem [#allocation2], 48
  %v3908 = vld [vmem:[%s3907] sm:$0xff]
  %s3909 = scalar_lea.vmem [#allocation3], 48
  %v3910 = vld [vmem:[%s3909] sm:$0xff]
  %s3911 = scalar_lea.vmem [#allocation4], 48
  %v3912 = vld [vmem:[%s3911] sm:$0xff]
  %v3913 = vlaneseq
  %v3914 = vshrl.u32 %v3913, 7
  %v3915 = vsub.s32 0, %v3914
  %v3916 = vrot.slane %v3908, %v3915
  %3918 = vbcast.lane.b32.xlu0 %v3916, 256
  %v3919 = vpop.permute.xlu0 %3918
  %s3921 = sor.u32 256, 8
  %3922 = vbcast.lane.b32.xlu0 %v3916, %s3921
  %v3923 = vpop.permute.xlu0 %3922
  %v3924 = vlaneseq
  %v3925 = vshrl.u32 %v3924, 7
  %v3926 = vsub.s32 1, %v3925
  %v3927 = vrot.slane %v3908, %v3926
  %3929 = vbcast.lane.b32.xlu0 %v3927, 256
  %v3930 = vpop.permute.xlu0 %3929
  %s3932 = sor.u32 256, 8
  %3933 = vbcast.lane.b32.xlu0 %v3927, %s3932
  %v3934 = vpop.permute.xlu0 %3933
  %v3935 = vlaneseq
  %v3936 = vshrl.u32 %v3935, 7
  %v3937 = vsub.s32 2, %v3936
  %v3938 = vrot.slane %v3908, %v3937
  %3940 = vbcast.lane.b32.xlu0 %v3938, 256
  %v3941 = vpop.permute.xlu0 %3940
  %s3943 = sor.u32 256, 8
  %3944 = vbcast.lane.b32.xlu0 %v3938, %s3943
  %v3945 = vpop.permute.xlu0 %3944
  %v3946 = vlaneseq
  %v3947 = vshrl.u32 %v3946, 7
  %v3948 = vsub.s32 3, %v3947
  %v3949 = vrot.slane %v3908, %v3948
  %3951 = vbcast.lane.b32.xlu0 %v3949, 256
  %v3952 = vpop.permute.xlu0 %3951
  %s3954 = sor.u32 256, 8
  %3955 = vbcast.lane.b32.xlu0 %v3949, %s3954
  %v3956 = vpop.permute.xlu0 %3955
  %v3957 = vlaneseq
  %v3958 = vshrl.u32 %v3957, 7
  %v3959 = vsub.s32 4, %v3958
  %v3960 = vrot.slane %v3908, %v3959
  %3962 = vbcast.lane.b32.xlu0 %v3960, 256
  %v3963 = vpop.permute.xlu0 %3962
  %s3965 = sor.u32 256, 8
  %3966 = vbcast.lane.b32.xlu0 %v3960, %s3965
  %v3967 = vpop.permute.xlu0 %3966
  %v3968 = vlaneseq
  %v3969 = vshrl.u32 %v3968, 7
  %v3970 = vsub.s32 5, %v3969
  %v3971 = vrot.slane %v3908, %v3970
  %3973 = vbcast.lane.b32.xlu0 %v3971, 256
  %v3974 = vpop.permute.xlu0 %3973
  %s3976 = sor.u32 256, 8
  %3977 = vbcast.lane.b32.xlu0 %v3971, %s3976
  %v3978 = vpop.permute.xlu0 %3977
  %v3979 = vlaneseq
  %v3980 = vshrl.u32 %v3979, 7
  %v3981 = vsub.s32 6, %v3980
  %v3982 = vrot.slane %v3908, %v3981
  %3984 = vbcast.lane.b32.xlu0 %v3982, 256
  %v3985 = vpop.permute.xlu0 %3984
  %s3987 = sor.u32 256, 8
  %3988 = vbcast.lane.b32.xlu0 %v3982, %s3987
  %v3989 = vpop.permute.xlu0 %3988
  %v3990 = vlaneseq
  %v3991 = vshrl.u32 %v3990, 7
  %v3992 = vsub.s32 7, %v3991
  %v3993 = vrot.slane %v3908, %v3992
  %3995 = vbcast.lane.b32.xlu0 %v3993, 256
  %v3996 = vpop.permute.xlu0 %3995
  %s3998 = sor.u32 256, 8
  %3999 = vbcast.lane.b32.xlu0 %v3993, %s3998
  %v4000 = vpop.permute.xlu0 %3999
  %v4001 = vmul.f32 %v3919, %v3891
  %v4002 = vmul.f32 %v3923, %v3892
  %v4003 = vmul.f32 %v3930, %v3893
  %v4004 = vmul.f32 %v3934, %v3894
  %v4005 = vmul.f32 %v3941, %v3895
  %v4006 = vmul.f32 %v3945, %v3896
  %v4007 = vmul.f32 %v3952, %v3897
  %v4008 = vmul.f32 %v3956, %v3898
  %v4009 = vmul.f32 %v3963, %v3899
  %v4010 = vmul.f32 %v3967, %v3900
  %v4011 = vmul.f32 %v3974, %v3901
  %v4012 = vmul.f32 %v3978, %v3902
  %v4013 = vmul.f32 %v3985, %v3903
  %v4014 = vmul.f32 %v3989, %v3904
  %v4015 = vmul.f32 %v3996, %v3905
  %v4016 = vmul.f32 %v4000, %v3906
  %v4017 = vsel %vm579, %v4001, 0.0
  %v4018 = vsel %vm579, %v4002, 0.0
  %v4019 = vadd.f32 %v4017, %v4018
  %v4020 = vrot.slane %v4019, 4
  %v4021 = vadd.f32 %v4019, %v4020
  %v4022 = vrot.slane %v4021, 2
  %v4023 = vadd.f32 %v4021, %v4022
  %v4024 = vrot.slane %v4023, 1
  %v4025 = vadd.f32 %v4023, %v4024
  %v4026 = vsel %vm579, %v4003, 0.0
  %v4027 = vsel %vm579, %v4004, 0.0
  %v4028 = vadd.f32 %v4026, %v4027
  %v4029 = vrot.slane %v4028, 4
  %v4030 = vadd.f32 %v4028, %v4029
  %v4031 = vrot.slane %v4030, 2
  %v4032 = vadd.f32 %v4030, %v4031
  %v4033 = vrot.slane %v4032, 1
  %v4034 = vadd.f32 %v4032, %v4033
  %v4035 = vsel %vm579, %v4005, 0.0
  %v4036 = vsel %vm579, %v4006, 0.0
  %v4037 = vadd.f32 %v4035, %v4036
  %v4038 = vrot.slane %v4037, 4
  %v4039 = vadd.f32 %v4037, %v4038
  %v4040 = vrot.slane %v4039, 2
  %v4041 = vadd.f32 %v4039, %v4040
  %v4042 = vrot.slane %v4041, 1
  %v4043 = vadd.f32 %v4041, %v4042
  %v4044 = vsel %vm579, %v4007, 0.0
  %v4045 = vsel %vm579, %v4008, 0.0
  %v4046 = vadd.f32 %v4044, %v4045
  %v4047 = vrot.slane %v4046, 4
  %v4048 = vadd.f32 %v4046, %v4047
  %v4049 = vrot.slane %v4048, 2
  %v4050 = vadd.f32 %v4048, %v4049
  %v4051 = vrot.slane %v4050, 1
  %v4052 = vadd.f32 %v4050, %v4051
  %v4053 = vsel %vm579, %v4009, 0.0
  %v4054 = vsel %vm579, %v4010, 0.0
  %v4055 = vadd.f32 %v4053, %v4054
  %v4056 = vrot.slane %v4055, 4
  %v4057 = vadd.f32 %v4055, %v4056
  %v4058 = vrot.slane %v4057, 2
  %v4059 = vadd.f32 %v4057, %v4058
  %v4060 = vrot.slane %v4059, 1
  %v4061 = vadd.f32 %v4059, %v4060
  %v4062 = vsel %vm579, %v4011, 0.0
  %v4063 = vsel %vm579, %v4012, 0.0
  %v4064 = vadd.f32 %v4062, %v4063
  %v4065 = vrot.slane %v4064, 4
  %v4066 = vadd.f32 %v4064, %v4065
  %v4067 = vrot.slane %v4066, 2
  %v4068 = vadd.f32 %v4066, %v4067
  %v4069 = vrot.slane %v4068, 1
  %v4070 = vadd.f32 %v4068, %v4069
  %v4071 = vsel %vm579, %v4013, 0.0
  %v4072 = vsel %vm579, %v4014, 0.0
  %v4073 = vadd.f32 %v4071, %v4072
  %v4074 = vrot.slane %v4073, 4
  %v4075 = vadd.f32 %v4073, %v4074
  %v4076 = vrot.slane %v4075, 2
  %v4077 = vadd.f32 %v4075, %v4076
  %v4078 = vrot.slane %v4077, 1
  %v4079 = vadd.f32 %v4077, %v4078
  %v4080 = vsel %vm579, %v4015, 0.0
  %v4081 = vsel %vm579, %v4016, 0.0
  %v4082 = vadd.f32 %v4080, %v4081
  %v4083 = vrot.slane %v4082, 4
  %v4084 = vadd.f32 %v4082, %v4083
  %v4085 = vrot.slane %v4084, 2
  %v4086 = vadd.f32 %v4084, %v4085
  %v4087 = vrot.slane %v4086, 1
  %v4088 = vadd.f32 %v4086, %v4087
  %v4097 = vsel %vm1331, %v4034, %v4025
  %v4098 = vsel %vm1333, %v4043, %v4097
  %v4099 = vsel %vm1335, %v4052, %v4098
  %v4100 = vsel %vm1337, %v4061, %v4099
  %v4101 = vsel %vm1339, %v4070, %v4100
  %v4102 = vsel %vm1341, %v4079, %v4101
  %v4103 = vsel %vm1343, %v4088, %v4102
  %s4105 = scalar_lea.vmem [#allocation6], 48
  %4106 = vst.msk [vmem:[%s4105] sm:$0xff] %vm579, %v4103
  %v4108 = vcombine.high %v3910, %v3910
  %v4110 = vunpack.c.l.s4 1966171168
  %v4111 = vunpack.c.0.s8 %v4110
  %v4112 = vlaneseq
  %v4113 = vshrl.u32 %v4112, 7
  %v4114 = vsub.s32 %v4111, %v4113
  %v4115 = vrot.slane %v3910, %v4114
  %v4117 = vunpack.c.l.s4 1966171168
  %v4118 = vunpack.c.0.s8 %v4117
  %v4119 = vlaneseq
  %v4120 = vshrl.u32 %v4119, 7
  %v4121 = vsub.s32 %v4118, %v4120
  %v4122 = vrot.slane %v4108, %v4121
  %v4123 = vcombine.high %v4115, %v4115
  %v4124 = vcombine.high %v4122, %v4122
  %v4126 = vunpack.c.l.s4 1966171168
  %v4127 = vunpack.c.0.s8 %v4126
  %v4128 = vlaneseq
  %v4129 = vshrl.u32 %v4128, 7
  %v4130 = vsub.s32 %v4127, %v4129
  %v4131 = vrot.slane %v4115, %v4130
  %v4133 = vunpack.c.l.s4 1966171168
  %v4134 = vunpack.c.0.s8 %v4133
  %v4135 = vlaneseq
  %v4136 = vshrl.u32 %v4135, 7
  %v4137 = vsub.s32 %v4134, %v4136
  %v4138 = vrot.slane %v4122, %v4137
  %v4140 = vunpack.c.l.s4 1966171168
  %v4141 = vunpack.c.0.s8 %v4140
  %v4142 = vlaneseq
  %v4143 = vshrl.u32 %v4142, 7
  %v4144 = vsub.s32 %v4141, %v4143
  %v4145 = vrot.slane %v4123, %v4144
  %v4147 = vunpack.c.l.s4 1966171168
  %v4148 = vunpack.c.0.s8 %v4147
  %v4149 = vlaneseq
  %v4150 = vshrl.u32 %v4149, 7
  %v4151 = vsub.s32 %v4148, %v4150
  %v4152 = vrot.slane %v4124, %v4151
  %v4153 = vcombine.high %v4131, %v4131
  %v4154 = vcombine.high %v4138, %v4138
  %v4155 = vcombine.high %v4145, %v4145
  %v4156 = vcombine.high %v4152, %v4152
  %v4157 = vlaneseq
  %v4158 = vshrl.u32 %v4157, 7
  %v4159 = vsub.s32 0, %v4158
  %v4160 = vrot.slane %v4131, %v4159
  %v4161 = vlaneseq
  %v4162 = vshrl.u32 %v4161, 7
  %v4163 = vsub.s32 0, %v4162
  %v4164 = vrot.slane %v4145, %v4163
  %v4165 = vlaneseq
  %v4166 = vshrl.u32 %v4165, 7
  %v4167 = vsub.s32 0, %v4166
  %v4168 = vrot.slane %v4153, %v4167
  %v4169 = vlaneseq
  %v4170 = vshrl.u32 %v4169, 7
  %v4171 = vsub.s32 0, %v4170
  %v4172 = vrot.slane %v4155, %v4171
  %v4173 = vlaneseq
  %v4174 = vshrl.u32 %v4173, 7
  %v4175 = vsub.s32 0, %v4174
  %v4176 = vrot.slane %v4138, %v4175
  %v4177 = vlaneseq
  %v4178 = vshrl.u32 %v4177, 7
  %v4179 = vsub.s32 0, %v4178
  %v4180 = vrot.slane %v4152, %v4179
  %v4181 = vlaneseq
  %v4182 = vshrl.u32 %v4181, 7
  %v4183 = vsub.s32 0, %v4182
  %v4184 = vrot.slane %v4154, %v4183
  %v4185 = vlaneseq
  %v4186 = vshrl.u32 %v4185, 7
  %v4187 = vsub.s32 0, %v4186
  %v4188 = vrot.slane %v4156, %v4187
  %v4197 = vmul.f32 %v3919, %v4160
  %v4198 = vmul.f32 %v3923, %v4160
  %v4199 = vmul.f32 %v3930, %v4164
  %v4200 = vmul.f32 %v3934, %v4164
  %v4201 = vmul.f32 %v3941, %v4168
  %v4202 = vmul.f32 %v3945, %v4168
  %v4203 = vmul.f32 %v3952, %v4172
  %v4204 = vmul.f32 %v3956, %v4172
  %v4205 = vmul.f32 %v3963, %v4176
  %v4206 = vmul.f32 %v3967, %v4176
  %v4207 = vmul.f32 %v3974, %v4180
  %v4208 = vmul.f32 %v3978, %v4180
  %v4209 = vmul.f32 %v3985, %v4184
  %v4210 = vmul.f32 %v3989, %v4184
  %v4211 = vmul.f32 %v3996, %v4188
  %v4212 = vmul.f32 %v4000, %v4188
  %v4213 = vsub.f32 1.0, %v4197
  %v4214 = vsub.f32 1.0, %v4198
  %v4215 = vsub.f32 1.0, %v4199
  %v4216 = vsub.f32 1.0, %v4200
  %v4217 = vsub.f32 1.0, %v4201
  %v4218 = vsub.f32 1.0, %v4202
  %v4219 = vsub.f32 1.0, %v4203
  %v4220 = vsub.f32 1.0, %v4204
  %v4221 = vsub.f32 1.0, %v4205
  %v4222 = vsub.f32 1.0, %v4206
  %v4223 = vsub.f32 1.0, %v4207
  %v4224 = vsub.f32 1.0, %v4208
  %v4225 = vsub.f32 1.0, %v4209
  %v4226 = vsub.f32 1.0, %v4210
  %v4227 = vsub.f32 1.0, %v4211
  %v4228 = vsub.f32 1.0, %v4212
  %v4229 = vmul.f32 %v3891, %v4213
  %v4230 = vmul.f32 %v3892, %v4214
  %v4231 = vmul.f32 %v3893, %v4215
  %v4232 = vmul.f32 %v3894, %v4216
  %v4233 = vmul.f32 %v3895, %v4217
  %v4234 = vmul.f32 %v3896, %v4218
  %v4235 = vmul.f32 %v3897, %v4219
  %v4236 = vmul.f32 %v3898, %v4220
  %v4237 = vmul.f32 %v3899, %v4221
  %v4238 = vmul.f32 %v3900, %v4222
  %v4239 = vmul.f32 %v3901, %v4223
  %v4240 = vmul.f32 %v3902, %v4224
  %v4241 = vmul.f32 %v3903, %v4225
  %v4242 = vmul.f32 %v3904, %v4226
  %v4243 = vmul.f32 %v3905, %v4227
  %v4244 = vmul.f32 %v3906, %v4228
  %v4246 = vcombine.high %v3912, %v3912
  %v4248 = vunpack.c.l.s4 1966171168
  %v4249 = vunpack.c.0.s8 %v4248
  %v4250 = vlaneseq
  %v4251 = vshrl.u32 %v4250, 7
  %v4252 = vsub.s32 %v4249, %v4251
  %v4253 = vrot.slane %v3912, %v4252
  %v4255 = vunpack.c.l.s4 1966171168
  %v4256 = vunpack.c.0.s8 %v4255
  %v4257 = vlaneseq
  %v4258 = vshrl.u32 %v4257, 7
  %v4259 = vsub.s32 %v4256, %v4258
  %v4260 = vrot.slane %v4246, %v4259
  %v4261 = vcombine.high %v4253, %v4253
  %v4262 = vcombine.high %v4260, %v4260
  %v4264 = vunpack.c.l.s4 1966171168
  %v4265 = vunpack.c.0.s8 %v4264
  %v4266 = vlaneseq
  %v4267 = vshrl.u32 %v4266, 7
  %v4268 = vsub.s32 %v4265, %v4267
  %v4269 = vrot.slane %v4253, %v4268
  %v4271 = vunpack.c.l.s4 1966171168
  %v4272 = vunpack.c.0.s8 %v4271
  %v4273 = vlaneseq
  %v4274 = vshrl.u32 %v4273, 7
  %v4275 = vsub.s32 %v4272, %v4274
  %v4276 = vrot.slane %v4260, %v4275
  %v4278 = vunpack.c.l.s4 1966171168
  %v4279 = vunpack.c.0.s8 %v4278
  %v4280 = vlaneseq
  %v4281 = vshrl.u32 %v4280, 7
  %v4282 = vsub.s32 %v4279, %v4281
  %v4283 = vrot.slane %v4261, %v4282
  %v4285 = vunpack.c.l.s4 1966171168
  %v4286 = vunpack.c.0.s8 %v4285
  %v4287 = vlaneseq
  %v4288 = vshrl.u32 %v4287, 7
  %v4289 = vsub.s32 %v4286, %v4288
  %v4290 = vrot.slane %v4262, %v4289
  %v4291 = vcombine.high %v4269, %v4269
  %v4292 = vcombine.high %v4276, %v4276
  %v4293 = vcombine.high %v4283, %v4283
  %v4294 = vcombine.high %v4290, %v4290
  %v4295 = vlaneseq
  %v4296 = vshrl.u32 %v4295, 7
  %v4297 = vsub.s32 0, %v4296
  %v4298 = vrot.slane %v4269, %v4297
  %v4299 = vlaneseq
  %v4300 = vshrl.u32 %v4299, 7
  %v4301 = vsub.s32 0, %v4300
  %v4302 = vrot.slane %v4283, %v4301
  %v4303 = vlaneseq
  %v4304 = vshrl.u32 %v4303, 7
  %v4305 = vsub.s32 0, %v4304
  %v4306 = vrot.slane %v4291, %v4305
  %v4307 = vlaneseq
  %v4308 = vshrl.u32 %v4307, 7
  %v4309 = vsub.s32 0, %v4308
  %v4310 = vrot.slane %v4293, %v4309
  %v4311 = vlaneseq
  %v4312 = vshrl.u32 %v4311, 7
  %v4313 = vsub.s32 0, %v4312
  %v4314 = vrot.slane %v4276, %v4313
  %v4315 = vlaneseq
  %v4316 = vshrl.u32 %v4315, 7
  %v4317 = vsub.s32 0, %v4316
  %v4318 = vrot.slane %v4290, %v4317
  %v4319 = vlaneseq
  %v4320 = vshrl.u32 %v4319, 7
  %v4321 = vsub.s32 0, %v4320
  %v4322 = vrot.slane %v4292, %v4321
  %v4323 = vlaneseq
  %v4324 = vshrl.u32 %v4323, 7
  %v4325 = vsub.s32 0, %v4324
  %v4326 = vrot.slane %v4294, %v4325
  %v4335 = vmul.f32 %v3919, %v4298
  %v4336 = vmul.f32 %v3923, %v4298
  %v4337 = vmul.f32 %v3930, %v4302
  %v4338 = vmul.f32 %v3934, %v4302
  %v4339 = vmul.f32 %v3941, %v4306
  %v4340 = vmul.f32 %v3945, %v4306
  %v4341 = vmul.f32 %v3952, %v4310
  %v4342 = vmul.f32 %v3956, %v4310
  %v4343 = vmul.f32 %v3963, %v4314
  %v4344 = vmul.f32 %v3967, %v4314
  %v4345 = vmul.f32 %v3974, %v4318
  %v4346 = vmul.f32 %v3978, %v4318
  %v4347 = vmul.f32 %v3985, %v4322
  %v4348 = vmul.f32 %v3989, %v4322
  %v4349 = vmul.f32 %v3996, %v4326
  %v4350 = vmul.f32 %v4000, %v4326
  %v4351 = vadd.f32 %v4229, %v4335
  %v4352 = vadd.f32 %v4230, %v4336
  %v4353 = vadd.f32 %v4231, %v4337
  %v4354 = vadd.f32 %v4232, %v4338
  %v4355 = vadd.f32 %v4233, %v4339
  %v4356 = vadd.f32 %v4234, %v4340
  %v4357 = vadd.f32 %v4235, %v4341
  %v4358 = vadd.f32 %v4236, %v4342
  %v4359 = vadd.f32 %v4237, %v4343
  %v4360 = vadd.f32 %v4238, %v4344
  %v4361 = vadd.f32 %v4239, %v4345
  %v4362 = vadd.f32 %v4240, %v4346
  %v4363 = vadd.f32 %v4241, %v4347
  %v4364 = vadd.f32 %v4242, %v4348
  %v4365 = vadd.f32 %v4243, %v4349
  %v4366 = vadd.f32 %v4244, %v4350
  %s4367 = scalar_lea.vmem [#allocation2], 56
  %v4368 = vld [vmem:[%s4367] sm:$0xff]
  %v4369 = vlaneseq
  %v4370 = vshrl.u32 %v4369, 7
  %v4371 = vsub.s32 0, %v4370
  %v4372 = vrot.slane %v4368, %v4371
  %4374 = vbcast.lane.b32.xlu0 %v4372, 256
  %v4375 = vpop.permute.xlu0 %4374
  %s4377 = sor.u32 256, 8
  %4378 = vbcast.lane.b32.xlu0 %v4372, %s4377
  %v4379 = vpop.permute.xlu0 %4378
  %v4380 = vlaneseq
  %v4381 = vshrl.u32 %v4380, 7
  %v4382 = vsub.s32 1, %v4381
  %v4383 = vrot.slane %v4368, %v4382
  %4385 = vbcast.lane.b32.xlu0 %v4383, 256
  %v4386 = vpop.permute.xlu0 %4385
  %s4388 = sor.u32 256, 8
  %4389 = vbcast.lane.b32.xlu0 %v4383, %s4388
  %v4390 = vpop.permute.xlu0 %4389
  %v4391 = vlaneseq
  %v4392 = vshrl.u32 %v4391, 7
  %v4393 = vsub.s32 2, %v4392
  %v4394 = vrot.slane %v4368, %v4393
  %4396 = vbcast.lane.b32.xlu0 %v4394, 256
  %v4397 = vpop.permute.xlu0 %4396
  %s4399 = sor.u32 256, 8
  %4400 = vbcast.lane.b32.xlu0 %v4394, %s4399
  %v4401 = vpop.permute.xlu0 %4400
  %v4402 = vlaneseq
  %v4403 = vshrl.u32 %v4402, 7
  %v4404 = vsub.s32 3, %v4403
  %v4405 = vrot.slane %v4368, %v4404
  %4407 = vbcast.lane.b32.xlu0 %v4405, 256
  %v4408 = vpop.permute.xlu0 %4407
  %s4410 = sor.u32 256, 8
  %4411 = vbcast.lane.b32.xlu0 %v4405, %s4410
  %v4412 = vpop.permute.xlu0 %4411
  %v4413 = vlaneseq
  %v4414 = vshrl.u32 %v4413, 7
  %v4415 = vsub.s32 4, %v4414
  %v4416 = vrot.slane %v4368, %v4415
  %4418 = vbcast.lane.b32.xlu0 %v4416, 256
  %v4419 = vpop.permute.xlu0 %4418
  %s4421 = sor.u32 256, 8
  %4422 = vbcast.lane.b32.xlu0 %v4416, %s4421
  %v4423 = vpop.permute.xlu0 %4422
  %v4424 = vlaneseq
  %v4425 = vshrl.u32 %v4424, 7
  %v4426 = vsub.s32 5, %v4425
  %v4427 = vrot.slane %v4368, %v4426
  %4429 = vbcast.lane.b32.xlu0 %v4427, 256
  %v4430 = vpop.permute.xlu0 %4429
  %s4432 = sor.u32 256, 8
  %4433 = vbcast.lane.b32.xlu0 %v4427, %s4432
  %v4434 = vpop.permute.xlu0 %4433
  %v4435 = vlaneseq
  %v4436 = vshrl.u32 %v4435, 7
  %v4437 = vsub.s32 6, %v4436
  %v4438 = vrot.slane %v4368, %v4437
  %4440 = vbcast.lane.b32.xlu0 %v4438, 256
  %v4441 = vpop.permute.xlu0 %4440
  %s4443 = sor.u32 256, 8
  %4444 = vbcast.lane.b32.xlu0 %v4438, %s4443
  %v4445 = vpop.permute.xlu0 %4444
  %v4446 = vlaneseq
  %v4447 = vshrl.u32 %v4446, 7
  %v4448 = vsub.s32 7, %v4447
  %v4449 = vrot.slane %v4368, %v4448
  %4451 = vbcast.lane.b32.xlu0 %v4449, 256
  %v4452 = vpop.permute.xlu0 %4451
  %s4454 = sor.u32 256, 8
  %4455 = vbcast.lane.b32.xlu0 %v4449, %s4454
  %v4456 = vpop.permute.xlu0 %4455
  %v4457 = vmul.f32 %v4375, %v4351
  %v4458 = vmul.f32 %v4379, %v4352
  %v4459 = vmul.f32 %v4386, %v4353
  %v4460 = vmul.f32 %v4390, %v4354
  %v4461 = vmul.f32 %v4397, %v4355
  %v4462 = vmul.f32 %v4401, %v4356
  %v4463 = vmul.f32 %v4408, %v4357
  %v4464 = vmul.f32 %v4412, %v4358
  %v4465 = vmul.f32 %v4419, %v4359
  %v4466 = vmul.f32 %v4423, %v4360
  %v4467 = vmul.f32 %v4430, %v4361
  %v4468 = vmul.f32 %v4434, %v4362
  %v4469 = vmul.f32 %v4441, %v4363
  %v4470 = vmul.f32 %v4445, %v4364
  %v4471 = vmul.f32 %v4452, %v4365
  %v4472 = vmul.f32 %v4456, %v4366
  %v4473 = vsel %vm579, %v4457, 0.0
  %v4474 = vsel %vm579, %v4458, 0.0
  %v4475 = vadd.f32 %v4473, %v4474
  %v4476 = vrot.slane %v4475, 4
  %v4477 = vadd.f32 %v4475, %v4476
  %v4478 = vrot.slane %v4477, 2
  %v4479 = vadd.f32 %v4477, %v4478
  %v4480 = vrot.slane %v4479, 1
  %v4481 = vadd.f32 %v4479, %v4480
  %v4482 = vsel %vm579, %v4459, 0.0
  %v4483 = vsel %vm579, %v4460, 0.0
  %v4484 = vadd.f32 %v4482, %v4483
  %v4485 = vrot.slane %v4484, 4
  %v4486 = vadd.f32 %v4484, %v4485
  %v4487 = vrot.slane %v4486, 2
  %v4488 = vadd.f32 %v4486, %v4487
  %v4489 = vrot.slane %v4488, 1
  %v4490 = vadd.f32 %v4488, %v4489
  %v4491 = vsel %vm579, %v4461, 0.0
  %v4492 = vsel %vm579, %v4462, 0.0
  %v4493 = vadd.f32 %v4491, %v4492
  %v4494 = vrot.slane %v4493, 4
  %v4495 = vadd.f32 %v4493, %v4494
  %v4496 = vrot.slane %v4495, 2
  %v4497 = vadd.f32 %v4495, %v4496
  %v4498 = vrot.slane %v4497, 1
  %v4499 = vadd.f32 %v4497, %v4498
  %v4500 = vsel %vm579, %v4463, 0.0
  %v4501 = vsel %vm579, %v4464, 0.0
  %v4502 = vadd.f32 %v4500, %v4501
  %v4503 = vrot.slane %v4502, 4
  %v4504 = vadd.f32 %v4502, %v4503
  %v4505 = vrot.slane %v4504, 2
  %v4506 = vadd.f32 %v4504, %v4505
  %v4507 = vrot.slane %v4506, 1
  %v4508 = vadd.f32 %v4506, %v4507
  %v4509 = vsel %vm579, %v4465, 0.0
  %v4510 = vsel %vm579, %v4466, 0.0
  %v4511 = vadd.f32 %v4509, %v4510
  %v4512 = vrot.slane %v4511, 4
  %v4513 = vadd.f32 %v4511, %v4512
  %v4514 = vrot.slane %v4513, 2
  %v4515 = vadd.f32 %v4513, %v4514
  %v4516 = vrot.slane %v4515, 1
  %v4517 = vadd.f32 %v4515, %v4516
  %v4518 = vsel %vm579, %v4467, 0.0
  %v4519 = vsel %vm579, %v4468, 0.0
  %v4520 = vadd.f32 %v4518, %v4519
  %v4521 = vrot.slane %v4520, 4
  %v4522 = vadd.f32 %v4520, %v4521
  %v4523 = vrot.slane %v4522, 2
  %v4524 = vadd.f32 %v4522, %v4523
  %v4525 = vrot.slane %v4524, 1
  %v4526 = vadd.f32 %v4524, %v4525
  %v4527 = vsel %vm579, %v4469, 0.0
  %v4528 = vsel %vm579, %v4470, 0.0
  %v4529 = vadd.f32 %v4527, %v4528
  %v4530 = vrot.slane %v4529, 4
  %v4531 = vadd.f32 %v4529, %v4530
  %v4532 = vrot.slane %v4531, 2
  %v4533 = vadd.f32 %v4531, %v4532
  %v4534 = vrot.slane %v4533, 1
  %v4535 = vadd.f32 %v4533, %v4534
  %v4536 = vsel %vm579, %v4471, 0.0
  %v4537 = vsel %vm579, %v4472, 0.0
  %v4538 = vadd.f32 %v4536, %v4537
  %v4539 = vrot.slane %v4538, 4
  %v4540 = vadd.f32 %v4538, %v4539
  %v4541 = vrot.slane %v4540, 2
  %v4542 = vadd.f32 %v4540, %v4541
  %v4543 = vrot.slane %v4542, 1
  %v4544 = vadd.f32 %v4542, %v4543
  %v4553 = vsel %vm1331, %v4490, %v4481
  %v4554 = vsel %vm1333, %v4499, %v4553
  %v4555 = vsel %vm1335, %v4508, %v4554
  %v4556 = vsel %vm1337, %v4517, %v4555
  %v4557 = vsel %vm1339, %v4526, %v4556
  %v4558 = vsel %vm1341, %v4535, %v4557
  %v4559 = vsel %vm1343, %v4544, %v4558
  %s4561 = scalar_lea.vmem [#allocation6], 56
  %4562 = vst.msk [vmem:[%s4561] sm:$0xff] %vm579, %v4559
  %v4563 = vld [vmem:[#allocation6] sm:$0xff]
  %v4564 = vld [vmem:[#allocation6 + $0x8] sm:$0xff]
  %v4565 = vld [vmem:[#allocation6 + $0x10] sm:$0xff]
  %v4566 = vld [vmem:[#allocation6 + $0x18] sm:$0xff]
  %v4567 = vld [vmem:[#allocation6 + $0x20] sm:$0xff]
  %v4568 = vld [vmem:[#allocation6 + $0x28] sm:$0xff]
  %v4569 = vld [vmem:[#allocation6 + $0x30] sm:$0xff]
  %v4570 = vld [vmem:[#allocation6 + $0x38] sm:$0xff]
  %v4571 = vld [vmem:[%s11] sm:$0xff]
  %v4572 = vld [vmem:[%s11 + $0x8] sm:$0xff]
  %v4573 = vld [vmem:[%s11 + $0x10] sm:$0xff]
  %v4574 = vld [vmem:[%s11 + $0x18] sm:$0xff]
  %v4575 = vld [vmem:[#allocation5] sm:$0xff]
  %v4576 = vld [vmem:[#allocation5 + $0x8] sm:$0xff]
  %v4577 = vld [vmem:[#allocation5 + $0x10] sm:$0xff]
  %v4578 = vld [vmem:[#allocation5 + $0x18] sm:$0xff]
  %v4579 = vld [vmem:[#allocation5 + $0x20] sm:$0xff]
  %v4580 = vld [vmem:[#allocation5 + $0x28] sm:$0xff]
  %v4581 = vld [vmem:[#allocation5 + $0x30] sm:$0xff]
  %v4582 = vld [vmem:[#allocation5 + $0x38] sm:$0xff]
  %v4583 = vld [vmem:[%s12] sm:$0xff]
  %v4584 = vld [vmem:[%s12 + $0x8] sm:$0xff]
  %v4585 = vld [vmem:[%s12 + $0x10] sm:$0xff]
  %v4586 = vld [vmem:[%s12 + $0x18] sm:$0xff]
  %v4588 = vsel %vm579, %v4575, 0
  %v4591 = vsel %vm579, %v4576, 0
  %v4594 = vsel %vm579, %v4577, 0
  %v4597 = vsel %vm579, %v4578, 0
  %v4600 = vsel %vm579, %v4579, 0
  %v4603 = vsel %vm579, %v4580, 0
  %v4606 = vsel %vm579, %v4581, 0
  %v4609 = vsel %vm579, %v4582, 0
  %4611 = vmatprep.subr.mxu0 0.0
  %4612 = vmatpush1.msra.mxu0 %v4583
  %4613 = vmatprep.subr.mxu0 0.0
  %4614 = vmatpush1.msra.mxu0 %v4584
  %4615 = vmatprep.subr.mxu0 0.0
  %4616 = vmatpush1.msra.mxu0 %v4585
  %4617 = vmatprep.subr.mxu0 0.0
  %4618 = vmatpush1.msra.mxu0 %v4586
  %4619 = vmatprep.subr.mxu0 0.0
  %4620 = vmatpush1.msra.mxu0 0.0
  %4621 = vmatprep.subr.mxu0 0.0
  %4622 = vmatpush1.msra.mxu0 0.0
  %4623 = vmatprep.subr.mxu0 0.0
  %4624 = vmatpush1.msra.mxu0 0.0
  %4625 = vmatprep.subr.mxu0 0.0
  %4626 = vmatpush1.msra.mxu0 0.0
  %4627 = vmatprep.subr.mxu0 0.0
  %4628 = vmatpush1.msra.mxu0 0.0
  %4629 = vmatprep.subr.mxu0 0.0
  %4630 = vmatpush1.msra.mxu0 0.0
  %4631 = vmatprep.subr.mxu0 0.0
  %4632 = vmatpush1.msra.mxu0 0.0
  %4633 = vmatprep.subr.mxu0 0.0
  %4634 = vmatpush1.msra.mxu0 0.0
  %4635 = vmatprep.subr.mxu0 0.0
  %4636 = vmatpush1.msra.mxu0 0.0
  %4637 = vmatprep.subr.mxu0 0.0
  %4638 = vmatpush1.msra.mxu0 0.0
  %4639 = vmatprep.subr.mxu0 0.0
  %4640 = vmatpush1.msra.mxu0 0.0
  %4641 = vmatprep.subr.mxu0 0.0
  %4642 = vmatpush1.msra.mxu0 0.0
  %4643 = vmatprep.subr.mxu0 0.0
  %4644 = vmatpush1.msra.mxu0 0.0
  %4645 = vmatprep.subr.mxu0 0.0
  %4646 = vmatpush1.msra.mxu0 0.0
  %4647 = vmatprep.subr.mxu0 0.0
  %4648 = vmatpush1.msra.mxu0 0.0
  %4649 = vmatprep.subr.mxu0 0.0
  %4650 = vmatpush1.msra.mxu0 0.0
  %4651 = vmatprep.subr.mxu0 0.0
  %4652 = vmatpush1.msra.mxu0 0.0
  %4653 = vmatprep.subr.mxu0 0.0
  %4654 = vmatpush1.msra.mxu0 0.0
  %4655 = vmatprep.subr.mxu0 0.0
  %4656 = vmatpush1.msra.mxu0 0.0
  %4657 = vmatprep.subr.mxu0 0.0
  %4658 = vmatpush1.msra.mxu0 0.0
  %4659 = vmatprep.subr.mxu0 0.0
  %4660 = vmatpush1.msra.mxu0 0.0
  %4661 = vmatprep.subr.mxu0 0.0
  %4662 = vmatpush1.msra.mxu0 0.0
  %4663 = vmatprep.subr.mxu0 0.0
  %4664 = vmatpush1.msra.mxu0 0.0
  %4665 = vmatprep.subr.mxu0 0.0
  %4666 = vmatpush1.msra.mxu0 0.0
  %4667 = vmatprep.subr.mxu0 0.0
  %4668 = vmatpush1.msra.mxu0 0.0
  %4669 = vmatprep.subr.mxu0 0.0
  %4670 = vmatpush1.msra.mxu0 0.0
  %4671 = vmatprep.subr.mxu0 0.0
  %4672 = vmatpush1.msra.mxu0 0.0
  %4673 = vmatprep.subr.mxu0 0.0
  %4674 = vmatpush1.msra.mxu0 0.0
  %4675 = vmatprep.mubr.f32.mxu0 0.0
  %4676 = vmatmul.mubr.f32.gmra.mrb[0].mxu0 %v4588
  %v4677 = vpop.f32.mrb[0].mxu0
  %v4678 = vadd.f32 0.0, %v4677
  %v4679 = vpop.f32.mrb[0].mxu0
  %4680 = vmatprep.mubr.f32.mxu0 0.0
  %4681 = vmatmul.mubr.f32.gmra.mrb[0].mxu0 %v4591
  %v4682 = vpop.f32.mrb[0].mxu0
  %v4683 = vadd.f32 0.0, %v4682
  %v4684 = vpop.f32.mrb[0].mxu0
  %4685 = vmatprep.mubr.f32.mxu0 0.0
  %4686 = vmatmul.mubr.f32.gmra.mrb[0].mxu0 %v4594
  %v4687 = vpop.f32.mrb[0].mxu0
  %v4688 = vadd.f32 0.0, %v4687
  %v4689 = vpop.f32.mrb[0].mxu0
  %4690 = vmatprep.mubr.f32.mxu0 0.0
  %4691 = vmatmul.mubr.f32.gmra.mrb[0].mxu0 %v4597
  %v4692 = vpop.f32.mrb[0].mxu0
  %v4693 = vadd.f32 0.0, %v4692
  %v4694 = vpop.f32.mrb[0].mxu0
  %4695 = vmatprep.mubr.f32.mxu0 0.0
  %4696 = vmatmul.mubr.f32.gmra.mrb[0].mxu0 %v4600
  %v4697 = vpop.f32.mrb[0].mxu0
  %v4698 = vadd.f32 0.0, %v4697
  %v4699 = vpop.f32.mrb[0].mxu0
  %4700 = vmatprep.mubr.f32.mxu0 0.0
  %4701 = vmatmul.mubr.f32.gmra.mrb[0].mxu0 %v4603
  %v4702 = vpop.f32.mrb[0].mxu0
  %v4703 = vadd.f32 0.0, %v4702
  %v4704 = vpop.f32.mrb[0].mxu0
  %4705 = vmatprep.mubr.f32.mxu0 0.0
  %4706 = vmatmul.mubr.f32.gmra.mrb[0].mxu0 %v4606
  %v4707 = vpop.f32.mrb[0].mxu0
  %v4708 = vadd.f32 0.0, %v4707
  %v4709 = vpop.f32.mrb[0].mxu0
  %4710 = vmatprep.mubr.f32.mxu0 0.0
  %4711 = vmatmul.mubr.f32.gmra.mrb[0].mxu0 %v4609
  %v4712 = vpop.f32.mrb[0].mxu0
  %v4713 = vadd.f32 0.0, %v4712
  %v4714 = vpop.f32.mrb[0].mxu0
  %4715 = vdwg.mxu0
  %v4717 = vsel %vm579, %v4563, 0
  %v4720 = vsel %vm579, %v4564, 0
  %v4723 = vsel %vm579, %v4565, 0
  %v4726 = vsel %vm579, %v4566, 0
  %v4729 = vsel %vm579, %v4567, 0
  %v4732 = vsel %vm579, %v4568, 0
  %v4735 = vsel %vm579, %v4569, 0
  %v4738 = vsel %vm579, %v4570, 0
  %4740 = vmatprep.subr.mxu0 0.0
  %4741 = vmatpush1.msra.mxu0 %v4571
  %4742 = vmatprep.subr.mxu0 0.0
  %4743 = vmatpush1.msra.mxu0 %v4572
  %4744 = vmatprep.subr.mxu0 0.0
  %4745 = vmatpush1.msra.mxu0 %v4573
  %4746 = vmatprep.subr.mxu0 0.0
  %4747 = vmatpush1.msra.mxu0 %v4574
  %4748 = vmatprep.subr.mxu0 0.0
  %4749 = vmatpush1.msra.mxu0 0.0
  %4750 = vmatprep.subr.mxu0 0.0
  %4751 = vmatpush1.msra.mxu0 0.0
  %4752 = vmatprep.subr.mxu0 0.0
  %4753 = vmatpush1.msra.mxu0 0.0
  %4754 = vmatprep.subr.mxu0 0.0
  %4755 = vmatpush1.msra.mxu0 0.0
  %4756 = vmatprep.subr.mxu0 0.0
  %4757 = vmatpush1.msra.mxu0 0.0
  %4758 = vmatprep.subr.mxu0 0.0
  %4759 = vmatpush1.msra.mxu0 0.0
  %4760 = vmatprep.subr.mxu0 0.0
  %4761 = vmatpush1.msra.mxu0 0.0
  %4762 = vmatprep.subr.mxu0 0.0
  %4763 = vmatpush1.msra.mxu0 0.0
  %4764 = vmatprep.subr.mxu0 0.0
  %4765 = vmatpush1.msra.mxu0 0.0
  %4766 = vmatprep.subr.mxu0 0.0
  %4767 = vmatpush1.msra.mxu0 0.0
  %4768 = vmatprep.subr.mxu0 0.0
  %4769 = vmatpush1.msra.mxu0 0.0
  %4770 = vmatprep.subr.mxu0 0.0
  %4771 = vmatpush1.msra.mxu0 0.0
  %4772 = vmatprep.subr.mxu0 0.0
  %4773 = vmatpush1.msra.mxu0 0.0
  %4774 = vmatprep.subr.mxu0 0.0
  %4775 = vmatpush1.msra.mxu0 0.0
  %4776 = vmatprep.subr.mxu0 0.0
  %4777 = vmatpush1.msra.mxu0 0.0
  %4778 = vmatprep.subr.mxu0 0.0
  %4779 = vmatpush1.msra.mxu0 0.0
  %4780 = vmatprep.subr.mxu0 0.0
  %4781 = vmatpush1.msra.mxu0 0.0
  %4782 = vmatprep.subr.mxu0 0.0
  %4783 = vmatpush1.msra.mxu0 0.0
  %4784 = vmatprep.subr.mxu0 0.0
  %4785 = vmatpush1.msra.mxu0 0.0
  %4786 = vmatprep.subr.mxu0 0.0
  %4787 = vmatpush1.msra.mxu0 0.0
  %4788 = vmatprep.subr.mxu0 0.0
  %4789 = vmatpush1.msra.mxu0 0.0
  %4790 = vmatprep.subr.mxu0 0.0
  %4791 = vmatpush1.msra.mxu0 0.0
  %4792 = vmatprep.subr.mxu0 0.0
  %4793 = vmatpush1.msra.mxu0 0.0
  %4794 = vmatprep.subr.mxu0 0.0
  %4795 = vmatpush1.msra.mxu0 0.0
  %4796 = vmatprep.subr.mxu0 0.0
  %4797 = vmatpush1.msra.mxu0 0.0
  %4798 = vmatprep.subr.mxu0 0.0
  %4799 = vmatpush1.msra.mxu0 0.0
  %4800 = vmatprep.subr.mxu0 0.0
  %4801 = vmatpush1.msra.mxu0 0.0
  %4802 = vmatprep.subr.mxu0 0.0
  %4803 = vmatpush1.msra.mxu0 0.0
  %4804 = vmatprep.mubr.f32.mxu0 0.0
  %4805 = vmatmul.mubr.f32.gmra.mrb[0].mxu0 %v4717
  %v4806 = vpop.f32.mrb[0].mxu0
  %v4807 = vadd.f32 %v4678, %v4806
  %v4808 = vpop.f32.mrb[0].mxu0
  %4809 = vmatprep.mubr.f32.mxu0 0.0
  %4810 = vmatmul.mubr.f32.gmra.mrb[0].mxu0 %v4720
  %v4811 = vpop.f32.mrb[0].mxu0
  %v4812 = vadd.f32 %v4683, %v4811
  %v4813 = vpop.f32.mrb[0].mxu0
  %4814 = vmatprep.mubr.f32.mxu0 0.0
  %4815 = vmatmul.mubr.f32.gmra.mrb[0].mxu0 %v4723
  %v4816 = vpop.f32.mrb[0].mxu0
  %v4817 = vadd.f32 %v4688, %v4816
  %v4818 = vpop.f32.mrb[0].mxu0
  %4819 = vmatprep.mubr.f32.mxu0 0.0
  %4820 = vmatmul.mubr.f32.gmra.mrb[0].mxu0 %v4726
  %v4821 = vpop.f32.mrb[0].mxu0
  %v4822 = vadd.f32 %v4693, %v4821
  %v4823 = vpop.f32.mrb[0].mxu0
  %4824 = vmatprep.mubr.f32.mxu0 0.0
  %4825 = vmatmul.mubr.f32.gmra.mrb[0].mxu0 %v4729
  %v4826 = vpop.f32.mrb[0].mxu0
  %v4827 = vadd.f32 %v4698, %v4826
  %v4828 = vpop.f32.mrb[0].mxu0
  %4829 = vmatprep.mubr.f32.mxu0 0.0
  %4830 = vmatmul.mubr.f32.gmra.mrb[0].mxu0 %v4732
  %v4831 = vpop.f32.mrb[0].mxu0
  %v4832 = vadd.f32 %v4703, %v4831
  %v4833 = vpop.f32.mrb[0].mxu0
  %4834 = vmatprep.mubr.f32.mxu0 0.0
  %4835 = vmatmul.mubr.f32.gmra.mrb[0].mxu0 %v4735
  %v4836 = vpop.f32.mrb[0].mxu0
  %v4837 = vadd.f32 %v4708, %v4836
  %v4838 = vpop.f32.mrb[0].mxu0
  %4839 = vmatprep.mubr.f32.mxu0 0.0
  %4840 = vmatmul.mubr.f32.gmra.mrb[0].mxu0 %v4738
  %v4841 = vpop.f32.mrb[0].mxu0
  %v4842 = vadd.f32 %v4713, %v4841
  %v4843 = vpop.f32.mrb[0].mxu0
  %4844 = vdwg.mxu0
  %v4845 = vld [vmem:[%s13] sm:$0x1]
  %v4847 = vlaneseq
  %v4848 = vshrl.u32 %v4847, 7
  %v4849 = vsub.s32 0, %v4848
  %v4850 = vrot.slane %v4845, %v4849
  %v4852 = vadd.f32 %v4807, %v4850
  %v4853 = vadd.f32 %v4812, %v4850
  %v4854 = vadd.f32 %v4817, %v4850
  %v4855 = vadd.f32 %v4822, %v4850
  %v4856 = vadd.f32 %v4827, %v4850
  %v4857 = vadd.f32 %v4832, %v4850
  %v4858 = vadd.f32 %v4837, %v4850
  %v4859 = vadd.f32 %v4842, %v4850
  %v4860 = vtanh.pop %v4852
  %v4861 = vtanh.pop %v4853
  %v4862 = vtanh.pop %v4854
  %v4863 = vtanh.pop %v4855
  %v4864 = vtanh.pop %v4856
  %v4865 = vtanh.pop %v4857
  %v4866 = vtanh.pop %v4858
  %v4867 = vtanh.pop %v4859
  %v4868 = vld [vmem:[%s14] sm:$0x1]
  %v4870 = vlaneseq
  %v4871 = vshrl.u32 %v4870, 7
  %v4872 = vsub.s32 0, %v4871
  %v4873 = vrot.slane %v4868, %v4872
  %v4875 = vmul.f32 %v4860, %v4873
  %v4876 = vmul.f32 %v4861, %v4873
  %v4877 = vmul.f32 %v4862, %v4873
  %v4878 = vmul.f32 %v4863, %v4873
  %v4879 = vmul.f32 %v4864, %v4873
  %v4880 = vmul.f32 %v4865, %v4873
  %v4881 = vmul.f32 %v4866, %v4873
  %v4882 = vmul.f32 %v4867, %v4873
  %v4883 = vsel %vm579, %v4875, 0.0
  %4884 = vadd.xlane.f32.xlu0 %v4883
  %v4885 = vpop.xlane.xlu0 %4884
  %v4886 = vsel %vm579, %v4876, 0.0
  %4887 = vadd.xlane.f32.xlu0 %v4886
  %v4888 = vpop.xlane.xlu0 %4887
  %v4889 = vsel %vm579, %v4877, 0.0
  %4890 = vadd.xlane.f32.xlu0 %v4889
  %v4891 = vpop.xlane.xlu0 %4890
  %v4892 = vsel %vm579, %v4878, 0.0
  %4893 = vadd.xlane.f32.xlu0 %v4892
  %v4894 = vpop.xlane.xlu0 %4893
  %v4895 = vsel %vm579, %v4879, 0.0
  %4896 = vadd.xlane.f32.xlu0 %v4895
  %v4897 = vpop.xlane.xlu0 %4896
  %v4898 = vsel %vm579, %v4880, 0.0
  %4899 = vadd.xlane.f32.xlu0 %v4898
  %v4900 = vpop.xlane.xlu0 %4899
  %v4901 = vsel %vm579, %v4881, 0.0
  %4902 = vadd.xlane.f32.xlu0 %v4901
  %v4903 = vpop.xlane.xlu0 %4902
  %v4904 = vsel %vm579, %v4882, 0.0
  %4905 = vadd.xlane.f32.xlu0 %v4904
  %v4906 = vpop.xlane.xlu0 %4905
  %v4907 = vld [vmem:[#allocation7] sm:$0x1]
  %v4909 = vlaneseq
  %v4910 = vshrl.u32 %v4909, 7
  %v4911 = vsub.s32 0, %v4910
  %v4912 = vrot.slane %v4907, %v4911
  %v4914 = vadd.f32 %v4885, %v4912
  %v4915 = vadd.f32 %v4888, %v4912
  %v4916 = vadd.f32 %v4891, %v4912
  %v4917 = vadd.f32 %v4894, %v4912
  %v4918 = vadd.f32 %v4897, %v4912
  %v4919 = vadd.f32 %v4900, %v4912
  %v4920 = vadd.f32 %v4903, %v4912
  %v4921 = vadd.f32 %v4906, %v4912
  %v4922 = vxor.u32 %v4914, 2147483648
  %v4923 = vxor.u32 %v4915, 2147483648
  %v4924 = vxor.u32 %v4916, 2147483648
  %v4925 = vxor.u32 %v4917, 2147483648
  %v4926 = vxor.u32 %v4918, 2147483648
  %v4927 = vxor.u32 %v4919, 2147483648
  %v4928 = vxor.u32 %v4920, 2147483648
  %v4929 = vxor.u32 %v4921, 2147483648
  %v4930 = vmul.f32 %v4922, 1.442695
  %v4931 = vpow.pop %v4930
  %v4932 = vmul.f32 %v4923, 1.442695
  %v4933 = vpow.pop %v4932
  %v4934 = vmul.f32 %v4924, 1.442695
  %v4935 = vpow.pop %v4934
  %v4936 = vmul.f32 %v4925, 1.442695
  %v4937 = vpow.pop %v4936
  %v4938 = vmul.f32 %v4926, 1.442695
  %v4939 = vpow.pop %v4938
  %v4940 = vmul.f32 %v4927, 1.442695
  %v4941 = vpow.pop %v4940
  %v4942 = vmul.f32 %v4928, 1.442695
  %v4943 = vpow.pop %v4942
  %v4944 = vmul.f32 %v4929, 1.442695
  %v4945 = vpow.pop %v4944
  %v4946 = vadd.f32 %v4931, 1.0
  %v4947 = vadd.f32 %v4933, 1.0
  %v4948 = vadd.f32 %v4935, 1.0
  %v4949 = vadd.f32 %v4937, 1.0
  %v4950 = vadd.f32 %v4939, 1.0
  %v4951 = vadd.f32 %v4941, 1.0
  %v4952 = vadd.f32 %v4943, 1.0
  %v4953 = vadd.f32 %v4945, 1.0
  %v4954 = vrcp.pop %v4946
  %v4955 = vmul.f32 1.0, %v4954
  %v4956 = vrcp.pop %v4947
  %v4957 = vmul.f32 1.0, %v4956
  %v4958 = vrcp.pop %v4948
  %v4959 = vmul.f32 1.0, %v4958
  %v4960 = vrcp.pop %v4949
  %v4961 = vmul.f32 1.0, %v4960
  %v4962 = vrcp.pop %v4950
  %v4963 = vmul.f32 1.0, %v4962
  %v4964 = vrcp.pop %v4951
  %v4965 = vmul.f32 1.0, %v4964
  %v4966 = vrcp.pop %v4952
  %v4967 = vmul.f32 1.0, %v4966
  %v4968 = vrcp.pop %v4953
  %v4969 = vmul.f32 1.0, %v4968
  %vm4970 = vcmask 7168
  %4971 = vst.msk [vmem:[%s18] sm:$0xff] %vm4970, %v4955
  %4972 = vst.msk [vmem:[%s18 + $0x8] sm:$0xff] %vm4970, %v4957
  %4973 = vst.msk [vmem:[%s18 + $0x10] sm:$0xff] %vm4970, %v4959
  %4974 = vst.msk [vmem:[%s18 + $0x18] sm:$0xff] %vm4970, %v4961
  %4975 = vst.msk [vmem:[%s18 + $0x20] sm:$0xff] %vm4970, %v4963
  %4976 = vst.msk [vmem:[%s18 + $0x28] sm:$0xff] %vm4970, %v4965
  %4977 = vst.msk [vmem:[%s18 + $0x30] sm:$0xff] %vm4970, %v4967
  %4978 = vst.msk [vmem:[%s18 + $0x38] sm:$0xff] %vm4970, %v4969
  // Predicated region
  $region74: #{tpu_custom_call.1} parent=0 // pred_check
    _
  $region75: #{tpu_custom_call.1} parent=0 // pred_check_branch
    %4980 = sbr.rel (0) target = $region77
  $region76: #{tpu_custom_call.1} parent=0 // pred_region
    _
  $region77: #{tpu_custom_call.1} parent=0 // pred_fallthru
    _
  // Predicated region
  $region78: #{tpu_custom_call.1} parent=0 // pred_check
    _
  $region79: #{tpu_custom_call.1} parent=0 // pred_check_branch
    %4982 = sbr.rel (0) target = $region81
  $region80: #{tpu_custom_call.1} parent=0 // pred_region
    _
  $region81: #{tpu_custom_call.1} parent=0 // pred_fallthru
    _

</llo_original>
